<compile_context>
chip_gen: v7x
topology: tpu7x:2x2x1
jax: 0.10.0
libtpu: 0.0.40
codegen_flags: <defaults>
</compile_context>

<pallas_src>
import functools

import jax
import jax.numpy as jnp
from jax import lax
from jax.experimental import pallas as pl
from jax.experimental.pallas import tpu as pltpu


def _fused_double_conv_kernel(x_ref, w1_ref, b1_ref, w2_ref, b2_ref,
                              out_ref, act1_ref, *, H, W, Cin, C):
    """One grid step = one batch element; both conv3x3 + LeakyReLU fused.

    x_ref   : (1, Cin, P) bf16  zero-padded input, spatial flattened row-major
                                over (H+3, W+2), P = (H+3)*(W+2)
    w1_ref  : (9, C, Cin) bf16  conv1 weights, tap-major (k = dy*3+dx), transposed
    b1_ref  : (C, 1)      f32
    w2_ref  : (9, C, C)   bf16  conv2 weights, tap-major, transposed
    b2_ref  : (C, 1)      f32
    out_ref : (1, C, L)   f32   L = H*(W+2); cols W, W+1 of each row are garbage
                                (stripped by the wrapper)
    act1_ref: (C, P)      bf16  scratch: zero-padded intermediate activation
    """
    Wp = W + 2
    L = H * Wp

    # Validity mask along the flattened spatial axis: inside each Wp-wide row,
    # columns {W, W+1} are wrap-around garbage and must not leak into the
    # zero-padding halo of the intermediate activation.
    col = lax.broadcasted_iota(jnp.int32, (1, L), 1) % Wp
    valid = col < W

    # Re-zero only the thin top/bottom halo slices of act1 each step (the
    # left/right halo columns inside the interior store range are re-written
    # to zero via `valid`).  2 * (Wp+1) lanes -> negligible vst cost.
    zeros_halo = jnp.zeros((C, Wp + 1), act1_ref.dtype)
    act1_ref[:, 0:Wp + 1] = zeros_halo
    act1_ref[:, (H + 1) * Wp + 1:(H + 2) * Wp + 2] = zeros_halo

    # ---- conv1: 9 accumulating per-tap MXU matmuls (C,Cin)@(Cin,L) ----------
    acc = jnp.zeros((C, L), jnp.float32)
    for k in range(9):
        dy, dx = divmod(k, 3)
        off = dy * Wp + dx
        acc += jnp.dot(w1_ref[k], x_ref[0, :, off:off + L],
                       preferred_element_type=jnp.float32)
    a1 = acc + b1_ref[...]                      # (C, L) f32 epilogue
    a1 = jnp.where(a1 >= 0, a1, 0.1 * a1)       # LeakyReLU(0.1)
    a1 = jnp.where(valid, a1, 0.0)              # keep the padding halo at zero
    # Interior of the padded intermediate == conv1 output shifted by one
    # padded row + one padded column -> a single lane-dense store.
    act1_ref[:, Wp + 1:Wp + 1 + L] = a1.astype(act1_ref.dtype)

    # ---- conv2: 9 accumulating per-tap MXU matmuls (C,C)@(C,L) --------------
    acc = jnp.zeros((C, L), jnp.float32)
    for k in range(9):
        dy, dx = divmod(k, 3)
        off = dy * Wp + dx
        acc += jnp.dot(w2_ref[k], act1_ref[:, off:off + L],
                       preferred_element_type=jnp.float32)
    a2 = acc + b2_ref[...]
    a2 = jnp.where(a2 >= 0, a2, 0.1 * a2)       # LeakyReLU(0.1)
    out_ref[0] = a2.astype(out_ref.dtype)


def _vmem_limit_bytes(Cin, C, H, W):
    """Rough VMEM budget: double-buffered IO + scratch + live f32 values."""
    Wp = W + 2
    P = (H + 3) * Wp
    L = H * Wp
    in_bytes = Cin * P * 2 + 9 * C * Cin * 2 + 9 * C * C * 2 + 2 * C * 4
    out_bytes = C * L * 4
    scratch = C * P * 2
    live = 4 * C * L * 4
    est = 2 * (in_bytes + out_bytes) + scratch + live
    return int(min(64 * 2 ** 20, max(32 * 2 ** 20, 2 * est)))


def lte_features(x_nchw, params):
    """Fused double conv3x3 + LeakyReLU(0.1). Returns NCHW f32 features."""
    N, Cin, H, W = x_nchw.shape
    C = params["w1"].shape[-1]
    Wp = W + 2
    P = (H + 3) * Wp          # padded + flattened spatial length (one extra
                              # bottom row so the furthest tap slice stays in bounds)
    L = H * Wp                # flattened output length (2 wrap-around cols / row)

    # NCHW -> zero-pad spatial (top 1, bottom 2, left/right 1) -> flatten, bf16.
    x_pad = jnp.pad(x_nchw, ((0, 0), (0, 0), (1, 2), (1, 1))).astype(jnp.bfloat16)
    x_flat = x_pad.reshape(N, Cin, P)

    # HWIO weights -> tap-major transposed matrices (9, Cout, Cin).
    w1 = jnp.transpose(params["w1"], (0, 1, 3, 2)).reshape(9, C, Cin)
    w1 = w1.astype(jnp.bfloat16)
    b1 = params["b1"].reshape(C, 1).astype(jnp.float32)
    w2 = jnp.transpose(params["w2"], (0, 1, 3, 2)).reshape(9, C, C)
    w2 = w2.astype(jnp.bfloat16)
    b2 = params["b2"].reshape(C, 1).astype(jnp.float32)

    kernel = functools.partial(_fused_double_conv_kernel,
                               H=H, W=W, Cin=Cin, C=C)

    out_flat = pl.pallas_call(
        kernel,
        out_shape=jax.ShapeDtypeStruct((N, C, L), jnp.float32),
        grid_spec=pltpu.PrefetchScalarGridSpec(
            num_scalar_prefetch=0,
            grid=(N,),
            in_specs=[
                pl.BlockSpec((1, Cin, P), lambda n: (n, 0, 0)),
                pl.BlockSpec((9, C, Cin), lambda n: (0, 0, 0)),
                pl.BlockSpec((C, 1), lambda n: (0, 0)),
                pl.BlockSpec((9, C, C), lambda n: (0, 0, 0)),
                pl.BlockSpec((C, 1), lambda n: (0, 0)),
            ],
            out_specs=pl.BlockSpec((1, C, L), lambda n: (n, 0, 0)),
            scratch_shapes=[
                pltpu.VMEM((C, P), jnp.bfloat16),   # padded intermediate act1
            ],
        ),
        compiler_params=pltpu.CompilerParams(
            dimension_semantics=("parallel",),
            vmem_limit_bytes=_vmem_limit_bytes(Cin, C, H, W)),
    )(x_flat, w1, b1, w2, b2)

    # Lane-dense kernel output is (C, H, W+2) flattened; strip wrap-around cols.
    return out_flat.reshape(N, C, H, Wp)[:, :, :, :W]


_lte_features_jit = jax.jit(lte_features)


def lte_simple_lr_forward(x_nchw, params, islr=False):
    """Pallas equivalent of LTE_simple_lr.forward. Returns (None, None, x)."""
    return (None, None, _lte_features_jit(x_nchw, params))


def _reference_forward(x_nchw, params):
    """Pure-JAX f32 reference (lax conv) for correctness check."""
    def conv(x, w, b):
        y = lax.conv_general_dilated(
            x, w, window_strides=(1, 1), padding="SAME",
            dimension_numbers=("NCHW", "HWIO", "NCHW"))
        y = y + b[None, :, None, None]
        return jnp.where(y >= 0, y, 0.1 * y)

    x = conv(x_nchw, params["w1"], params["b1"])
    x = conv(x, params["w2"], params["b2"])
    return x


def init_params(key, mid_channels):
    k1, k2, k3, k4 = jax.random.split(key, 4)
    # HWIO weight layout.
    w1 = 0.1 * jax.random.normal(k1, (3, 3, 3, mid_channels), jnp.float32)
    b1 = 0.05 * jax.random.normal(k2, (mid_channels,), jnp.float32)
    w2 = 0.1 * jax.random.normal(k3, (3, 3, mid_channels, mid_channels),
                                 jnp.float32)
    b2 = 0.05 * jax.random.normal(k4, (mid_channels,), jnp.float32)
    return {"w1": w1, "b1": b1, "w2": w2, "b2": b2}


if __name__ == "__main__":
    key = jax.random.PRNGKey(0)
    kx, kp = jax.random.split(key)

    N, Cin, H, W = 2, 3, 16, 16       # module fixes Cin=3
    mid_channels = 32

    x = jax.random.normal(kx, (N, Cin, H, W), jnp.float32)
    params = init_params(kp, mid_channels)

    _, _, out = lte_simple_lr_forward(x, params)
    out = jax.block_until_ready(out)

    ref = jax.block_until_ready(_reference_forward(x, params))
    assert out.shape == (N, mid_channels, H, W)
    # bf16 MXU inputs + bf16 intermediate with f32 accumulation -> looser
    # tolerance than pure f32.
    assert jnp.allclose(out, ref, atol=5e-2, rtol=5e-2), "mismatch vs reference"

    print("KERNEL_OK")
</pallas_src>

<mosaic_0001>
module attributes {stable_mosaic.version = 11 : i64} {
  func.func @_fused_double_conv_kernel(%arg0: i32, %arg1: memref<1x3x342xbf16, #tpu.memory_space<vmem>>, %arg2: memref<9x32x3xbf16, #tpu.memory_space<vmem>>, %arg3: memref<32x1xf32, #tpu.memory_space<vmem>>, %arg4: memref<9x32x32xbf16, #tpu.memory_space<vmem>>, %arg5: memref<32x1xf32, #tpu.memory_space<vmem>>, %arg6: memref<1x32x288xf32, #tpu.memory_space<vmem>>, %arg7: memref<32x342xbf16, #tpu.memory_space<vmem>>) attributes {dimension_semantics = [#tpu.dimension_semantics<parallel>], iteration_bounds = array<i64: 2>, scalar_prefetch = 0 : i64, scratch_operands = 1 : i64, tpu.core_type = #tpu.core_type<tc>, window_params = [{transform_indices = @transform_0, window_bounds = array<i64: 1, 3, 342>}, {pipeline_mode = #tpu.pipeline_mode<synchronous>, transform_indices = @transform_1, window_bounds = array<i64: 9, 32, 3>}, {pipeline_mode = #tpu.pipeline_mode<synchronous>, transform_indices = @transform_2, window_bounds = array<i64: 32, 1>}, {pipeline_mode = #tpu.pipeline_mode<synchronous>, transform_indices = @transform_3, window_bounds = array<i64: 9, 32, 32>}, {pipeline_mode = #tpu.pipeline_mode<synchronous>, transform_indices = @transform_4, window_bounds = array<i64: 32, 1>}, {transform_indices = @transform_5, window_bounds = array<i64: 1, 32, 288>}]} {
    %0 = tpu.iota {dimensions = array<i32: 1>} : vector<1x288xi32>
    %c18_i32 = arith.constant 18 : i32
    %c0_i32 = arith.constant 0 : i32
    %1 = arith.cmpi eq, %c18_i32, %c0_i32 : i32
    %c1_i32 = arith.constant 1 : i32
    %2 = arith.select %1, %c1_i32, %c18_i32 : i32
    %3 = vector.broadcast %2 : i32 to vector<1x288xi32>
    %4 = arith.remsi %0, %3 : vector<1x288xi32>
    %c0_i32_0 = arith.constant 0 : i32
    %5 = vector.broadcast %c0_i32_0 : i32 to vector<1x288xi32>
    %6 = arith.cmpi ne, %4, %5 : vector<1x288xi32>
    %c0_i32_1 = arith.constant 0 : i32
    %7 = vector.broadcast %c0_i32_1 : i32 to vector<1x288xi32>
    %8 = arith.cmpi slt, %4, %7 : vector<1x288xi32>
    %c0_i32_2 = arith.constant 0 : i32
    %9 = arith.cmpi slt, %2, %c0_i32_2 : i32
    %10 = vector.broadcast %9 : i1 to vector<1x288xi1>
    %11 = vector.broadcast %10 : vector<1x288xi1> to vector<1x288xi1>
    %12 = arith.xori %8, %11 : vector<1x288xi1>
    %13 = arith.andi %12, %6 : vector<1x288xi1>
    %14 = vector.broadcast %2 : i32 to vector<1x288xi32>
    %15 = arith.addi %4, %14 : vector<1x288xi32>
    %16 = arith.select %13, %15, %4 : vector<1x288xi1>, vector<1x288xi32>
    %c16_i32 = arith.constant 16 : i32
    %17 = vector.broadcast %c16_i32 : i32 to vector<1x288xi32>
    %18 = arith.cmpi slt, %16, %17 : vector<1x288xi32>
    %cst = arith.constant 0.000000e+00 : bf16
    %19 = vector.broadcast %cst : bf16 to vector<32x19xbf16>
    %c0 = arith.constant 0 : index
    %c0_3 = arith.constant 0 : index
    %20 = vector.load %arg7[%c0, %c0_3] : memref<32x342xbf16, #tpu.memory_space<vmem>>, vector<32x19xbf16>
    tpu.vector_store %arg7[%c0, %c0_3], %19 {strides = array<i32>} : memref<32x342xbf16, #tpu.memory_space<vmem>>, vector<32x19xbf16>,
    %c0_4 = arith.constant 0 : index
    %c307 = arith.constant 307 : index
    %21 = vector.load %arg7[%c0_4, %c307] : memref<32x342xbf16, #tpu.memory_space<vmem>>, vector<32x19xbf16>
    tpu.vector_store %arg7[%c0_4, %c307], %19 {strides = array<i32>} : memref<32x342xbf16, #tpu.memory_space<vmem>>, vector<32x19xbf16>,
    %cst_5 = arith.constant 0.000000e+00 : f32
    %22 = vector.broadcast %cst_5 : f32 to vector<32x288xf32>
    %c0_6 = arith.constant 0 : index
    %c0_7 = arith.constant 0 : index
    %c0_8 = arith.constant 0 : index
    %23 = vector.load %arg2[%c0_6, %c0_7, %c0_8] : memref<9x32x3xbf16, #tpu.memory_space<vmem>>, vector<1x32x3xbf16>
    %24 = vector.shape_cast %23 : vector<1x32x3xbf16> to vector<32x3xbf16>
    %c0_9 = arith.constant 0 : index
    %c0_10 = arith.constant 0 : index
    %c0_11 = arith.constant 0 : index
    %25 = vector.load %arg1[%c0_9, %c0_10, %c0_11] : memref<1x3x342xbf16, #tpu.memory_space<vmem>>, vector<1x3x288xbf16>
    %26 = vector.shape_cast %25 : vector<1x3x288xbf16> to vector<3x288xbf16>
    %cst_12 = arith.constant dense<0.000000e+00> : vector<32x288xf32>
    %27 = tpu.matmul %24, %26, %cst_12 {dimension_numbers = #tpu.dot_dimension_numbers<[1], [0], [0], [1], [0, 0, 1, 1], [], []>} : vector<32x3xbf16>, vector<3x288xbf16>, vector<32x288xf32> -> vector<32x288xf32>
    %28 = arith.addf %22, %27 : vector<32x288xf32>
    %c1 = arith.constant 1 : index
    %c0_13 = arith.constant 0 : index
    %c0_14 = arith.constant 0 : index
    %29 = vector.load %arg2[%c1, %c0_13, %c0_14] : memref<9x32x3xbf16, #tpu.memory_space<vmem>>, vector<1x32x3xbf16>
    %30 = vector.shape_cast %29 : vector<1x32x3xbf16> to vector<32x3xbf16>
    %c0_15 = arith.constant 0 : index
    %c0_16 = arith.constant 0 : index
    %c1_17 = arith.constant 1 : index
    %31 = vector.load %arg1[%c0_15, %c0_16, %c1_17] : memref<1x3x342xbf16, #tpu.memory_space<vmem>>, vector<1x3x288xbf16>
    %32 = vector.shape_cast %31 : vector<1x3x288xbf16> to vector<3x288xbf16>
    %cst_18 = arith.constant dense<0.000000e+00> : vector<32x288xf32>
    %33 = tpu.matmul %30, %32, %cst_18 {dimension_numbers = #tpu.dot_dimension_numbers<[1], [0], [0], [1], [0, 0, 1, 1], [], []>} : vector<32x3xbf16>, vector<3x288xbf16>, vector<32x288xf32> -> vector<32x288xf32>
    %34 = arith.addf %28, %33 : vector<32x288xf32>
    %c2 = arith.constant 2 : index
    %c0_19 = arith.constant 0 : index
    %c0_20 = arith.constant 0 : index
    %35 = vector.load %arg2[%c2, %c0_19, %c0_20] : memref<9x32x3xbf16, #tpu.memory_space<vmem>>, vector<1x32x3xbf16>
    %36 = vector.shape_cast %35 : vector<1x32x3xbf16> to vector<32x3xbf16>
    %c0_21 = arith.constant 0 : index
    %c0_22 = arith.constant 0 : index
    %c2_23 = arith.constant 2 : index
    %37 = vector.load %arg1[%c0_21, %c0_22, %c2_23] : memref<1x3x342xbf16, #tpu.memory_space<vmem>>, vector<1x3x288xbf16>
    %38 = vector.shape_cast %37 : vector<1x3x288xbf16> to vector<3x288xbf16>
    %cst_24 = arith.constant dense<0.000000e+00> : vector<32x288xf32>
    %39 = tpu.matmul %36, %38, %cst_24 {dimension_numbers = #tpu.dot_dimension_numbers<[1], [0], [0], [1], [0, 0, 1, 1], [], []>} : vector<32x3xbf16>, vector<3x288xbf16>, vector<32x288xf32> -> vector<32x288xf32>
    %40 = arith.addf %34, %39 : vector<32x288xf32>
    %c3 = arith.constant 3 : index
    %c0_25 = arith.constant 0 : index
    %c0_26 = arith.constant 0 : index
    %41 = vector.load %arg2[%c3, %c0_25, %c0_26] : memref<9x32x3xbf16, #tpu.memory_space<vmem>>, vector<1x32x3xbf16>
    %42 = vector.shape_cast %41 : vector<1x32x3xbf16> to vector<32x3xbf16>
    %c0_27 = arith.constant 0 : index
    %c0_28 = arith.constant 0 : index
    %c18 = arith.constant 18 : index
    %43 = vector.load %arg1[%c0_27, %c0_28, %c18] : memref<1x3x342xbf16, #tpu.memory_space<vmem>>, vector<1x3x288xbf16>
    %44 = vector.shape_cast %43 : vector<1x3x288xbf16> to vector<3x288xbf16>
    %cst_29 = arith.constant dense<0.000000e+00> : vector<32x288xf32>
    %45 = tpu.matmul %42, %44, %cst_29 {dimension_numbers = #tpu.dot_dimension_numbers<[1], [0], [0], [1], [0, 0, 1, 1], [], []>} : vector<32x3xbf16>, vector<3x288xbf16>, vector<32x288xf32> -> vector<32x288xf32>
    %46 = arith.addf %40, %45 : vector<32x288xf32>
    %c4 = arith.constant 4 : index
    %c0_30 = arith.constant 0 : index
    %c0_31 = arith.constant 0 : index
    %47 = vector.load %arg2[%c4, %c0_30, %c0_31] : memref<9x32x3xbf16, #tpu.memory_space<vmem>>, vector<1x32x3xbf16>
    %48 = vector.shape_cast %47 : vector<1x32x3xbf16> to vector<32x3xbf16>
    %c0_32 = arith.constant 0 : index
    %c0_33 = arith.constant 0 : index
    %c19 = arith.constant 19 : index
    %49 = vector.load %arg1[%c0_32, %c0_33, %c19] : memref<1x3x342xbf16, #tpu.memory_space<vmem>>, vector<1x3x288xbf16>
    %50 = vector.shape_cast %49 : vector<1x3x288xbf16> to vector<3x288xbf16>
    %cst_34 = arith.constant dense<0.000000e+00> : vector<32x288xf32>
    %51 = tpu.matmul %48, %50, %cst_34 {dimension_numbers = #tpu.dot_dimension_numbers<[1], [0], [0], [1], [0, 0, 1, 1], [], []>} : vector<32x3xbf16>, vector<3x288xbf16>, vector<32x288xf32> -> vector<32x288xf32>
    %52 = arith.addf %46, %51 : vector<32x288xf32>
    %c5 = arith.constant 5 : index
    %c0_35 = arith.constant 0 : index
    %c0_36 = arith.constant 0 : index
    %53 = vector.load %arg2[%c5, %c0_35, %c0_36] : memref<9x32x3xbf16, #tpu.memory_space<vmem>>, vector<1x32x3xbf16>
    %54 = vector.shape_cast %53 : vector<1x32x3xbf16> to vector<32x3xbf16>
    %c0_37 = arith.constant 0 : index
    %c0_38 = arith.constant 0 : index
    %c20 = arith.constant 20 : index
    %55 = vector.load %arg1[%c0_37, %c0_38, %c20] : memref<1x3x342xbf16, #tpu.memory_space<vmem>>, vector<1x3x288xbf16>
    %56 = vector.shape_cast %55 : vector<1x3x288xbf16> to vector<3x288xbf16>
    %cst_39 = arith.constant dense<0.000000e+00> : vector<32x288xf32>
    %57 = tpu.matmul %54, %56, %cst_39 {dimension_numbers = #tpu.dot_dimension_numbers<[1], [0], [0], [1], [0, 0, 1, 1], [], []>} : vector<32x3xbf16>, vector<3x288xbf16>, vector<32x288xf32> -> vector<32x288xf32>
    %58 = arith.addf %52, %57 : vector<32x288xf32>
    %c6 = arith.constant 6 : index
    %c0_40 = arith.constant 0 : index
    %c0_41 = arith.constant 0 : index
    %59 = vector.load %arg2[%c6, %c0_40, %c0_41] : memref<9x32x3xbf16, #tpu.memory_space<vmem>>, vector<1x32x3xbf16>
    %60 = vector.shape_cast %59 : vector<1x32x3xbf16> to vector<32x3xbf16>
    %c0_42 = arith.constant 0 : index
    %c0_43 = arith.constant 0 : index
    %c36 = arith.constant 36 : index
    %61 = vector.load %arg1[%c0_42, %c0_43, %c36] : memref<1x3x342xbf16, #tpu.memory_space<vmem>>, vector<1x3x288xbf16>
    %62 = vector.shape_cast %61 : vector<1x3x288xbf16> to vector<3x288xbf16>
    %cst_44 = arith.constant dense<0.000000e+00> : vector<32x288xf32>
    %63 = tpu.matmul %60, %62, %cst_44 {dimension_numbers = #tpu.dot_dimension_numbers<[1], [0], [0], [1], [0, 0, 1, 1], [], []>} : vector<32x3xbf16>, vector<3x288xbf16>, vector<32x288xf32> -> vector<32x288xf32>
    %64 = arith.addf %58, %63 : vector<32x288xf32>
    %c7 = arith.constant 7 : index
    %c0_45 = arith.constant 0 : index
    %c0_46 = arith.constant 0 : index
    %65 = vector.load %arg2[%c7, %c0_45, %c0_46] : memref<9x32x3xbf16, #tpu.memory_space<vmem>>, vector<1x32x3xbf16>
    %66 = vector.shape_cast %65 : vector<1x32x3xbf16> to vector<32x3xbf16>
    %c0_47 = arith.constant 0 : index
    %c0_48 = arith.constant 0 : index
    %c37 = arith.constant 37 : index
    %67 = vector.load %arg1[%c0_47, %c0_48, %c37] : memref<1x3x342xbf16, #tpu.memory_space<vmem>>, vector<1x3x288xbf16>
    %68 = vector.shape_cast %67 : vector<1x3x288xbf16> to vector<3x288xbf16>
    %cst_49 = arith.constant dense<0.000000e+00> : vector<32x288xf32>
    %69 = tpu.matmul %66, %68, %cst_49 {dimension_numbers = #tpu.dot_dimension_numbers<[1], [0], [0], [1], [0, 0, 1, 1], [], []>} : vector<32x3xbf16>, vector<3x288xbf16>, vector<32x288xf32> -> vector<32x288xf32>
    %70 = arith.addf %64, %69 : vector<32x288xf32>
    %c8 = arith.constant 8 : index
    %c0_50 = arith.constant 0 : index
    %c0_51 = arith.constant 0 : index
    %71 = vector.load %arg2[%c8, %c0_50, %c0_51] : memref<9x32x3xbf16, #tpu.memory_space<vmem>>, vector<1x32x3xbf16>
    %72 = vector.shape_cast %71 : vector<1x32x3xbf16> to vector<32x3xbf16>
    %c0_52 = arith.constant 0 : index
    %c0_53 = arith.constant 0 : index
    %c38 = arith.constant 38 : index
    %73 = vector.load %arg1[%c0_52, %c0_53, %c38] : memref<1x3x342xbf16, #tpu.memory_space<vmem>>, vector<1x3x288xbf16>
    %74 = vector.shape_cast %73 : vector<1x3x288xbf16> to vector<3x288xbf16>
    %cst_54 = arith.constant dense<0.000000e+00> : vector<32x288xf32>
    %75 = tpu.matmul %72, %74, %cst_54 {dimension_numbers = #tpu.dot_dimension_numbers<[1], [0], [0], [1], [0, 0, 1, 1], [], []>} : vector<32x3xbf16>, vector<3x288xbf16>, vector<32x288xf32> -> vector<32x288xf32>
    %76 = arith.addf %70, %75 : vector<32x288xf32>
    %c0_55 = arith.constant 0 : index
    %c0_56 = arith.constant 0 : index
    %77 = vector.load %arg3[%c0_55, %c0_56] : memref<32x1xf32, #tpu.memory_space<vmem>>, vector<32x1xf32>
    %78 = vector.broadcast %77 : vector<32x1xf32> to vector<32x288xf32>
    %79 = arith.addf %76, %78 : vector<32x288xf32>
    %cst_57 = arith.constant 0.000000e+00 : f32
    %80 = vector.broadcast %cst_57 : f32 to vector<32x288xf32>
    %81 = arith.cmpf oge, %79, %80 : vector<32x288xf32>
    %cst_58 = arith.constant 1.000000e-01 : f32
    %82 = vector.broadcast %cst_58 : f32 to vector<32x288xf32>
    %83 = arith.mulf %82, %79 : vector<32x288xf32>
    %84 = arith.select %81, %79, %83 : vector<32x288xi1>, vector<32x288xf32>
    %cst_59 = arith.constant 0.000000e+00 : f32
    %85 = vector.shape_cast %18 : vector<1x288xi1> to vector<1x288xi1>
    %86 = vector.broadcast %85 : vector<1x288xi1> to vector<32x288xi1>
    %87 = vector.broadcast %cst_59 : f32 to vector<32x288xf32>
    %88 = arith.select %86, %84, %87 : vector<32x288xi1>, vector<32x288xf32>
    %89 = arith.truncf %88 : vector<32x288xf32> to vector<32x288xbf16>
    %c0_60 = arith.constant 0 : index
    %c19_61 = arith.constant 19 : index
    %90 = vector.load %arg7[%c0_60, %c19_61] : memref<32x342xbf16, #tpu.memory_space<vmem>>, vector<32x288xbf16>
    tpu.vector_store %arg7[%c0_60, %c19_61], %89 {strides = array<i32>} : memref<32x342xbf16, #tpu.memory_space<vmem>>, vector<32x288xbf16>,
    %cst_62 = arith.constant 0.000000e+00 : f32
    %91 = vector.broadcast %cst_62 : f32 to vector<32x288xf32>
    %c0_63 = arith.constant 0 : index
    %c0_64 = arith.constant 0 : index
    %c0_65 = arith.constant 0 : index
    %92 = vector.load %arg4[%c0_63, %c0_64, %c0_65] : memref<9x32x32xbf16, #tpu.memory_space<vmem>>, vector<1x32x32xbf16>
    %93 = vector.shape_cast %92 : vector<1x32x32xbf16> to vector<32x32xbf16>
    %c0_66 = arith.constant 0 : index
    %c0_67 = arith.constant 0 : index
    %94 = vector.load %arg7[%c0_66, %c0_67] : memref<32x342xbf16, #tpu.memory_space<vmem>>, vector<32x288xbf16>
    %cst_68 = arith.constant dense<0.000000e+00> : vector<32x288xf32>
    %95 = tpu.matmul %93, %94, %cst_68 {dimension_numbers = #tpu.dot_dimension_numbers<[1], [0], [0], [1], [0, 0, 1, 1], [], []>} : vector<32x32xbf16>, vector<32x288xbf16>, vector<32x288xf32> -> vector<32x288xf32>
    %96 = arith.addf %91, %95 : vector<32x288xf32>
    %c1_69 = arith.constant 1 : index
    %c0_70 = arith.constant 0 : index
    %c0_71 = arith.constant 0 : index
    %97 = vector.load %arg4[%c1_69, %c0_70, %c0_71] : memref<9x32x32xbf16, #tpu.memory_space<vmem>>, vector<1x32x32xbf16>
    %98 = vector.shape_cast %97 : vector<1x32x32xbf16> to vector<32x32xbf16>
    %c0_72 = arith.constant 0 : index
    %c1_73 = arith.constant 1 : index
    %99 = vector.load %arg7[%c0_72, %c1_73] : memref<32x342xbf16, #tpu.memory_space<vmem>>, vector<32x288xbf16>
    %cst_74 = arith.constant dense<0.000000e+00> : vector<32x288xf32>
    %100 = tpu.matmul %98, %99, %cst_74 {dimension_numbers = #tpu.dot_dimension_numbers<[1], [0], [0], [1], [0, 0, 1, 1], [], []>} : vector<32x32xbf16>, vector<32x288xbf16>, vector<32x288xf32> -> vector<32x288xf32>
    %101 = arith.addf %96, %100 : vector<32x288xf32>
    %c2_75 = arith.constant 2 : index
    %c0_76 = arith.constant 0 : index
    %c0_77 = arith.constant 0 : index
    %102 = vector.load %arg4[%c2_75, %c0_76, %c0_77] : memref<9x32x32xbf16, #tpu.memory_space<vmem>>, vector<1x32x32xbf16>
    %103 = vector.shape_cast %102 : vector<1x32x32xbf16> to vector<32x32xbf16>
    %c0_78 = arith.constant 0 : index
    %c2_79 = arith.constant 2 : index
    %104 = vector.load %arg7[%c0_78, %c2_79] : memref<32x342xbf16, #tpu.memory_space<vmem>>, vector<32x288xbf16>
    %cst_80 = arith.constant dense<0.000000e+00> : vector<32x288xf32>
    %105 = tpu.matmul %103, %104, %cst_80 {dimension_numbers = #tpu.dot_dimension_numbers<[1], [0], [0], [1], [0, 0, 1, 1], [], []>} : vector<32x32xbf16>, vector<32x288xbf16>, vector<32x288xf32> -> vector<32x288xf32>
    %106 = arith.addf %101, %105 : vector<32x288xf32>
    %c3_81 = arith.constant 3 : index
    %c0_82 = arith.constant 0 : index
    %c0_83 = arith.constant 0 : index
    %107 = vector.load %arg4[%c3_81, %c0_82, %c0_83] : memref<9x32x32xbf16, #tpu.memory_space<vmem>>, vector<1x32x32xbf16>
    %108 = vector.shape_cast %107 : vector<1x32x32xbf16> to vector<32x32xbf16>
    %c0_84 = arith.constant 0 : index
    %c18_85 = arith.constant 18 : index
    %109 = vector.load %arg7[%c0_84, %c18_85] : memref<32x342xbf16, #tpu.memory_space<vmem>>, vector<32x288xbf16>
    %cst_86 = arith.constant dense<0.000000e+00> : vector<32x288xf32>
    %110 = tpu.matmul %108, %109, %cst_86 {dimension_numbers = #tpu.dot_dimension_numbers<[1], [0], [0], [1], [0, 0, 1, 1], [], []>} : vector<32x32xbf16>, vector<32x288xbf16>, vector<32x288xf32> -> vector<32x288xf32>
    %111 = arith.addf %106, %110 : vector<32x288xf32>
    %c4_87 = arith.constant 4 : index
    %c0_88 = arith.constant 0 : index
    %c0_89 = arith.constant 0 : index
    %112 = vector.load %arg4[%c4_87, %c0_88, %c0_89] : memref<9x32x32xbf16, #tpu.memory_space<vmem>>, vector<1x32x32xbf16>
    %113 = vector.shape_cast %112 : vector<1x32x32xbf16> to vector<32x32xbf16>
    %c0_90 = arith.constant 0 : index
    %c19_91 = arith.constant 19 : index
    %114 = vector.load %arg7[%c0_90, %c19_91] : memref<32x342xbf16, #tpu.memory_space<vmem>>, vector<32x288xbf16>
    %cst_92 = arith.constant dense<0.000000e+00> : vector<32x288xf32>
    %115 = tpu.matmul %113, %114, %cst_92 {dimension_numbers = #tpu.dot_dimension_numbers<[1], [0], [0], [1], [0, 0, 1, 1], [], []>} : vector<32x32xbf16>, vector<32x288xbf16>, vector<32x288xf32> -> vector<32x288xf32>
    %116 = arith.addf %111, %115 : vector<32x288xf32>
    %c5_93 = arith.constant 5 : index
    %c0_94 = arith.constant 0 : index
    %c0_95 = arith.constant 0 : index
    %117 = vector.load %arg4[%c5_93, %c0_94, %c0_95] : memref<9x32x32xbf16, #tpu.memory_space<vmem>>, vector<1x32x32xbf16>
    %118 = vector.shape_cast %117 : vector<1x32x32xbf16> to vector<32x32xbf16>
    %c0_96 = arith.constant 0 : index
    %c20_97 = arith.constant 20 : index
    %119 = vector.load %arg7[%c0_96, %c20_97] : memref<32x342xbf16, #tpu.memory_space<vmem>>, vector<32x288xbf16>
    %cst_98 = arith.constant dense<0.000000e+00> : vector<32x288xf32>
    %120 = tpu.matmul %118, %119, %cst_98 {dimension_numbers = #tpu.dot_dimension_numbers<[1], [0], [0], [1], [0, 0, 1, 1], [], []>} : vector<32x32xbf16>, vector<32x288xbf16>, vector<32x288xf32> -> vector<32x288xf32>
    %121 = arith.addf %116, %120 : vector<32x288xf32>
    %c6_99 = arith.constant 6 : index
    %c0_100 = arith.constant 0 : index
    %c0_101 = arith.constant 0 : index
    %122 = vector.load %arg4[%c6_99, %c0_100, %c0_101] : memref<9x32x32xbf16, #tpu.memory_space<vmem>>, vector<1x32x32xbf16>
    %123 = vector.shape_cast %122 : vector<1x32x32xbf16> to vector<32x32xbf16>
    %c0_102 = arith.constant 0 : index
    %c36_103 = arith.constant 36 : index
    %124 = vector.load %arg7[%c0_102, %c36_103] : memref<32x342xbf16, #tpu.memory_space<vmem>>, vector<32x288xbf16>
    %cst_104 = arith.constant dense<0.000000e+00> : vector<32x288xf32>
    %125 = tpu.matmul %123, %124, %cst_104 {dimension_numbers = #tpu.dot_dimension_numbers<[1], [0], [0], [1], [0, 0, 1, 1], [], []>} : vector<32x32xbf16>, vector<32x288xbf16>, vector<32x288xf32> -> vector<32x288xf32>
    %126 = arith.addf %121, %125 : vector<32x288xf32>
    %c7_105 = arith.constant 7 : index
    %c0_106 = arith.constant 0 : index
    %c0_107 = arith.constant 0 : index
    %127 = vector.load %arg4[%c7_105, %c0_106, %c0_107] : memref<9x32x32xbf16, #tpu.memory_space<vmem>>, vector<1x32x32xbf16>
    %128 = vector.shape_cast %127 : vector<1x32x32xbf16> to vector<32x32xbf16>
    %c0_108 = arith.constant 0 : index
    %c37_109 = arith.constant 37 : index
    %129 = vector.load %arg7[%c0_108, %c37_109] : memref<32x342xbf16, #tpu.memory_space<vmem>>, vector<32x288xbf16>
    %cst_110 = arith.constant dense<0.000000e+00> : vector<32x288xf32>
    %130 = tpu.matmul %128, %129, %cst_110 {dimension_numbers = #tpu.dot_dimension_numbers<[1], [0], [0], [1], [0, 0, 1, 1], [], []>} : vector<32x32xbf16>, vector<32x288xbf16>, vector<32x288xf32> -> vector<32x288xf32>
    %131 = arith.addf %126, %130 : vector<32x288xf32>
    %c8_111 = arith.constant 8 : index
    %c0_112 = arith.constant 0 : index
    %c0_113 = arith.constant 0 : index
    %132 = vector.load %arg4[%c8_111, %c0_112, %c0_113] : memref<9x32x32xbf16, #tpu.memory_space<vmem>>, vector<1x32x32xbf16>
    %133 = vector.shape_cast %132 : vector<1x32x32xbf16> to vector<32x32xbf16>
    %c0_114 = arith.constant 0 : index
    %c38_115 = arith.constant 38 : index
    %134 = vector.load %arg7[%c0_114, %c38_115] : memref<32x342xbf16, #tpu.memory_space<vmem>>, vector<32x288xbf16>
    %cst_116 = arith.constant dense<0.000000e+00> : vector<32x288xf32>
    %135 = tpu.matmul %133, %134, %cst_116 {dimension_numbers = #tpu.dot_dimension_numbers<[1], [0], [0], [1], [0, 0, 1, 1], [], []>} : vector<32x32xbf16>, vector<32x288xbf16>, vector<32x288xf32> -> vector<32x288xf32>
    %136 = arith.addf %131, %135 : vector<32x288xf32>
    %c0_117 = arith.constant 0 : index
    %c0_118 = arith.constant 0 : index
    %137 = vector.load %arg5[%c0_117, %c0_118] : memref<32x1xf32, #tpu.memory_space<vmem>>, vector<32x1xf32>
    %138 = vector.broadcast %137 : vector<32x1xf32> to vector<32x288xf32>
    %139 = arith.addf %136, %138 : vector<32x288xf32>
    %cst_119 = arith.constant 0.000000e+00 : f32
    %140 = vector.broadcast %cst_119 : f32 to vector<32x288xf32>
    %141 = arith.cmpf oge, %139, %140 : vector<32x288xf32>
    %cst_120 = arith.constant 1.000000e-01 : f32
    %142 = vector.broadcast %cst_120 : f32 to vector<32x288xf32>
    %143 = arith.mulf %142, %139 : vector<32x288xf32>
    %144 = arith.select %141, %139, %143 : vector<32x288xi1>, vector<32x288xf32>
    %c0_121 = arith.constant 0 : index
    %c0_122 = arith.constant 0 : index
    %c0_123 = arith.constant 0 : index
    %145 = vector.load %arg6[%c0_121, %c0_122, %c0_123] : memref<1x32x288xf32, #tpu.memory_space<vmem>>, vector<1x32x288xf32>
    %146 = vector.shape_cast %145 : vector<1x32x288xf32> to vector<32x288xf32>
    %147 = vector.shape_cast %144 : vector<32x288xf32> to vector<1x32x288xf32>
    tpu.vector_store %arg6[%c0_121, %c0_122, %c0_123], %147 {strides = array<i32>} : memref<1x32x288xf32, #tpu.memory_space<vmem>>, vector<1x32x288xf32>,
    return
  }
  func.func @transform_0(%arg0: i32) -> (i32, i32, i32) {
    %c0_i32 = arith.constant 0 : i32
    %c0_i32_0 = arith.constant 0 : i32
    %c0_i32_1 = arith.constant 0 : i32
    return %arg0, %c0_i32, %c0_i32_0 : i32, i32, i32
  }
  func.func @transform_1(%arg0: i32) -> (i32, i32, i32) {
    %c0_i32 = arith.constant 0 : i32
    %c0_i32_0 = arith.constant 0 : i32
    %c0_i32_1 = arith.constant 0 : i32
    %c0_i32_2 = arith.constant 0 : i32
    return %c0_i32, %c0_i32_0, %c0_i32_1 : i32, i32, i32
  }
  func.func @transform_2(%arg0: i32) -> (i32, i32) {
    %c0_i32 = arith.constant 0 : i32
    %c0_i32_0 = arith.constant 0 : i32
    %c0_i32_1 = arith.constant 0 : i32
    return %c0_i32, %c0_i32_0 : i32, i32
  }
  func.func @transform_3(%arg0: i32) -> (i32, i32, i32) {
    %c0_i32 = arith.constant 0 : i32
    %c0_i32_0 = arith.constant 0 : i32
    %c0_i32_1 = arith.constant 0 : i32
    %c0_i32_2 = arith.constant 0 : i32
    return %c0_i32, %c0_i32_0, %c0_i32_1 : i32, i32, i32
  }
  func.func @transform_4(%arg0: i32) -> (i32, i32) {
    %c0_i32 = arith.constant 0 : i32
    %c0_i32_0 = arith.constant 0 : i32
    %c0_i32_1 = arith.constant 0 : i32
    return %c0_i32, %c0_i32_0 : i32, i32
  }
  func.func @transform_5(%arg0: i32) -> (i32, i32, i32) {
    %c0_i32 = arith.constant 0 : i32
    %c0_i32_0 = arith.constant 0 : i32
    %c0_i32_1 = arith.constant 0 : i32
    return %arg0, %c0_i32, %c0_i32_0 : i32, i32, i32
  }
}

</mosaic_0001>

<llo_original>
// kernel: lte_features.1
$region0: #{lte_features.1}
  #allocation0 [shape = 'u32[]', space=smem, size = 0x4, offset = 0x4, fixed_abs, tag = 'smem constant byte address 0x4 - core index']
  #allocation1 [shape = 'u32[144,128]{1,0:T(1,128)}', space=vmem, size = 0x12000, scoped, tag = 'internal scratch']
  #allocation2 [shape = 'bf16[32,342]{1,0:T(16,128)(2,1)}', space=vmem, size = 0x6000, scoped, tag = 'scratch operand']
  %s0 = inlined_call_operand.vmem [shape: bf16[2,3,342], index: 0, kind: input, shape index: {}]
  %s1 = inlined_call_operand.vmem [shape: bf16[9,32,3], index: 1, kind: input, shape index: {}]
  %s2 = inlined_call_operand.vmem [shape: f32[32,1], index: 2, kind: input, shape index: {}]
  %s3 = inlined_call_operand.vmem [shape: bf16[9,32,32], index: 3, kind: input, shape index: {}]
  %s4 = inlined_call_operand.vmem [shape: f32[32,1], index: 4, kind: input, shape index: {}]
  %s5 = inlined_call_operand.vmem [shape: f32[2,32,288], index: 5, kind: output, shape index: {}]
  %s6 = sld [smem:[#allocation0]]
  $region53: #{lte_features.1} parent=0
    _
  %s8 = ssub.s32 1, %s6
  %s9 = scalar_select 0, %s8, %s6
  loop: start=0, step=1, limit=4
  $region2: #{lte_features.1} parent=0 // loop_pre_header
    _
  $region3: #{lte_features.1} parent=0 // loop_header
    %s11 = sphi 0, %s15
    %p12 = scmp.ge.s32.totalorder %s11, 4
    %s21 = sphi 0, %s23
    %s24 = sphi 0, %s21
    %s25 = sphi 0, %s24
    %s41 = sphi 0, %s25
    %s45 = sphi 0, %s45
    %s47 = sphi 0, %s45
    %s48 = sphi 0, %s47
    %s62 = sphi 0, %s48
    %s66 = sphi 0, %s66
    %s68 = sphi 0, %s66
    %s69 = sphi 0, %s68
    %s83 = sphi 0, %s69
    %s87 = sphi 0, %s87
    %s89 = sphi 0, %s87
    %s90 = sphi 0, %s89
    %s104 = sphi 0, %s90
    %s108 = sphi 0, %s108
    %s110 = sphi 0, %s108
    %s111 = sphi 0, %s110
    %s125 = sphi 0, %s111
    %s131 = sphi 0, %s133
    %s134 = sphi 0, %s131
    %s135 = sphi 0, %s134
    %s151 = sphi 0, %s135
  $region4: #{lte_features.1} parent=0 // loop_header_branch
    %14 = sbr.rel (%p12) target = $region8
  $region5: #{lte_features.1} parent=0 // loop_body
    %s16 = ssub.s32 %s11, 1
    %s17 = ssub.s32 %s11, 2
    %s18 = sadd.s32 %s11, 1
    %s19 = ssub.s32 %s11, %s18
    %p20 = scmp.eq.s32.totalorder %s19, 0
    %s22 = sadd.s32 %s21, 1
    %s23 = scalar_select %p20, %s21, %s22
    %p26 = pneg %p20
    %p27 = scmp.eq.s32.totalorder %s11, 1
    %p28 = por %p26, %p27
    %p29 = scmp.ne.s32.totalorder %s21, %s24
    %p30 = scmp.eq.s32.totalorder %s11, 0
    %p31 = por %p29, %p30
    %p32 = scmp.ne.s32.totalorder %s21, %s24
    %p33 = scmp.eq.s32.totalorder %s16, 1
    %p34 = por %p32, %p33
    %p35 = scmp.ne.s32.totalorder %s24, %s25
    %p36 = scmp.eq.s32.totalorder %s16, 0
    %p37 = por %p35, %p36
    %p38 = scmp.ne.s32.totalorder %s24, %s25
    %p39 = scmp.eq.s32.totalorder %s17, 1
    %p40 = por %p38, %p39
    %p42 = scmp.ne.s32.totalorder %s25, %s41
    %p43 = scmp.eq.s32.totalorder %s17, 0
    %p44 = por %p42, %p43
    %s46 = sadd.s32 %s45, 1
    %p49 = scmp.eq.s32.totalorder %s11, 1
    %p50 = scmp.ne.s32.totalorder %s45, %s47
    %p51 = scmp.eq.s32.totalorder %s11, 0
    %p52 = por %p50, %p51
    %p53 = scmp.ne.s32.totalorder %s45, %s47
    %p54 = scmp.eq.s32.totalorder %s16, 1
    %p55 = por %p53, %p54
    %p56 = scmp.ne.s32.totalorder %s47, %s48
    %p57 = scmp.eq.s32.totalorder %s16, 0
    %p58 = por %p56, %p57
    %p59 = scmp.ne.s32.totalorder %s47, %s48
    %p60 = scmp.eq.s32.totalorder %s17, 1
    %p61 = por %p59, %p60
    %p63 = scmp.ne.s32.totalorder %s48, %s62
    %p64 = scmp.eq.s32.totalorder %s17, 0
    %p65 = por %p63, %p64
    %s67 = sadd.s32 %s66, 1
    %p70 = scmp.eq.s32.totalorder %s11, 1
    %p71 = scmp.ne.s32.totalorder %s66, %s68
    %p72 = scmp.eq.s32.totalorder %s11, 0
    %p73 = por %p71, %p72
    %p74 = scmp.ne.s32.totalorder %s66, %s68
    %p75 = scmp.eq.s32.totalorder %s16, 1
    %p76 = por %p74, %p75
    %p77 = scmp.ne.s32.totalorder %s68, %s69
    %p78 = scmp.eq.s32.totalorder %s16, 0
    %p79 = por %p77, %p78
    %p80 = scmp.ne.s32.totalorder %s68, %s69
    %p81 = scmp.eq.s32.totalorder %s17, 1
    %p82 = por %p80, %p81
    %p84 = scmp.ne.s32.totalorder %s69, %s83
    %p85 = scmp.eq.s32.totalorder %s17, 0
    %p86 = por %p84, %p85
    %s88 = sadd.s32 %s87, 1
    %p91 = scmp.eq.s32.totalorder %s11, 1
    %p92 = scmp.ne.s32.totalorder %s87, %s89
    %p93 = scmp.eq.s32.totalorder %s11, 0
    %p94 = por %p92, %p93
    %p95 = scmp.ne.s32.totalorder %s87, %s89
    %p96 = scmp.eq.s32.totalorder %s16, 1
    %p97 = por %p95, %p96
    %p98 = scmp.ne.s32.totalorder %s89, %s90
    %p99 = scmp.eq.s32.totalorder %s16, 0
    %p100 = por %p98, %p99
    %p101 = scmp.ne.s32.totalorder %s89, %s90
    %p102 = scmp.eq.s32.totalorder %s17, 1
    %p103 = por %p101, %p102
    %p105 = scmp.ne.s32.totalorder %s90, %s104
    %p106 = scmp.eq.s32.totalorder %s17, 0
    %p107 = por %p105, %p106
    %s109 = sadd.s32 %s108, 1
    %p112 = scmp.eq.s32.totalorder %s11, 1
    %p113 = scmp.ne.s32.totalorder %s108, %s110
    %p114 = scmp.eq.s32.totalorder %s11, 0
    %p115 = por %p113, %p114
    %p116 = scmp.ne.s32.totalorder %s108, %s110
    %p117 = scmp.eq.s32.totalorder %s16, 1
    %p118 = por %p116, %p117
    %p119 = scmp.ne.s32.totalorder %s110, %s111
    %p120 = scmp.eq.s32.totalorder %s16, 0
    %p121 = por %p119, %p120
    %p122 = scmp.ne.s32.totalorder %s110, %s111
    %p123 = scmp.eq.s32.totalorder %s17, 1
    %p124 = por %p122, %p123
    %p126 = scmp.ne.s32.totalorder %s111, %s125
    %p127 = scmp.eq.s32.totalorder %s17, 0
    %p128 = por %p126, %p127
    %s129 = ssub.s32 %s11, %s18
    %p130 = scmp.eq.s32.totalorder %s129, 0
    %s132 = sadd.s32 %s131, 1
    %s133 = scalar_select %p130, %s131, %s132
    %p136 = pneg %p130
    %p137 = scmp.eq.s32.totalorder %s11, 1
    %p138 = por %p136, %p137
    %p139 = scmp.ne.s32.totalorder %s131, %s134
    %p140 = scmp.eq.s32.totalorder %s11, 0
    %p141 = por %p139, %p140
    %p142 = scmp.ne.s32.totalorder %s131, %s134
    %p143 = scmp.eq.s32.totalorder %s16, 1
    %p144 = por %p142, %p143
    %p145 = scmp.ne.s32.totalorder %s134, %s135
    %p146 = scmp.eq.s32.totalorder %s16, 0
    %p147 = por %p145, %p146
    %p148 = scmp.ne.s32.totalorder %s134, %s135
    %p149 = scmp.eq.s32.totalorder %s17, 1
    %p150 = por %p148, %p149
    %p152 = scmp.ne.s32.totalorder %s135, %s151
    %p153 = scmp.eq.s32.totalorder %s17, 0
    %p154 = por %p152, %p153
    %p155 = scmp.le.s32.totalorder 1, %s11
    %p156 = scmp.lt.s32.totalorder %s11, 3
    %p157 = pnand %p155, %p156
    %p158 = pneg %p157
    // Predicated region
    $region9: #{lte_features.1} parent=5 // pred_check
      _
    $region10: #{lte_features.1} parent=5 // pred_check_branch
      %160 = sbr.rel (%p157) target = $region12
    $region11: #{lte_features.1} parent=5 // pred_region
      %s161 = ssub.s32 %s11, 1
      // Predicated region
      $region13: #{lte_features.1} parent=11 // pred_check
        %p162 = pneg %p58
      $region14: #{lte_features.1} parent=11 // pred_check_branch
        %164 = sbr.rel (%p162) target = $region16
      $region15: #{lte_features.1} parent=11 // pred_region
        _
      $region16: #{lte_features.1} parent=11 // pred_fallthru
        _
      // Predicated region
      $region17: #{lte_features.1} parent=11 // pred_check
        %p165 = pneg %p79
      $region18: #{lte_features.1} parent=11 // pred_check_branch
        %167 = sbr.rel (%p165) target = $region20
      $region19: #{lte_features.1} parent=11 // pred_region
        _
      $region20: #{lte_features.1} parent=11 // pred_fallthru
        _
      // Predicated region
      $region21: #{lte_features.1} parent=11 // pred_check
        %p168 = pneg %p100
      $region22: #{lte_features.1} parent=11 // pred_check_branch
        %170 = sbr.rel (%p168) target = $region24
      $region23: #{lte_features.1} parent=11 // pred_region
        _
      $region24: #{lte_features.1} parent=11 // pred_fallthru
        _
      // Predicated region
      $region25: #{lte_features.1} parent=11 // pred_check
        %p171 = pneg %p121
      $region26: #{lte_features.1} parent=11 // pred_check_branch
        %173 = sbr.rel (%p171) target = $region28
      $region27: #{lte_features.1} parent=11 // pred_region
        _
      $region28: #{lte_features.1} parent=11 // pred_fallthru
        _
    $region12: #{lte_features.1} parent=5 // pred_fallthru
      _
    %p174 = scmp.lt.s32.totalorder %s11, 2
    // Predicated region
    $region29: #{lte_features.1} parent=5 // pred_check
      %p175 = pneg %p174
    $region30: #{lte_features.1} parent=5 // pred_check_branch
      %177 = sbr.rel (%p175) target = $region32
    $region31: #{lte_features.1} parent=5 // pred_region
      // Predicated region
      $region33: #{lte_features.1} parent=31 // pred_check
        %p178 = pneg %p31
      $region34: #{lte_features.1} parent=31 // pred_check_branch
        %180 = sbr.rel (%p178) target = $region36
      $region35: #{lte_features.1} parent=31 // pred_region
        %p181 = scmp.lt.s32.totalorder %s11, 1
        %s182 = scalar_select %p181, %s11, 1
        %s183 = smul.addr %s182, 3
        %s184 = smul.addr %s183, 2
        %s185 = scalar_lea.vmem %s0, %s184
      $region36: #{lte_features.1} parent=31 // pred_fallthru
        _
    $region32: #{lte_features.1} parent=5 // pred_fallthru
      _
    %p186 = scmp.le.s32.totalorder 1, %s11
    %p187 = scmp.lt.s32.totalorder %s11, 3
    %p188 = pnand %p186, %p187
    %p189 = pneg %p188
    // Predicated region
    $region37: #{lte_features.1} parent=5 // pred_check
      _
    $region38: #{lte_features.1} parent=5 // pred_check_branch
      %191 = sbr.rel (%p188) target = $region40
    $region39: #{lte_features.1} parent=5 // pred_region
      %s192 = ssub.s32 %s11, 1
      %p193 = scmp.lt.s32.totalorder %s16, 1
      %s194 = scalar_select %p193, %s16, 1
      %s195 = smul.addr %s194, 3
      %s196 = smul.addr %s195, 2
      %s197 = scalar_lea.vmem %s0, %s196
      %p198 = pneg %p37
      %p199 = pneg %p34
      %p200 = pneg %p58
      %p201 = pneg %p55
      %p202 = pneg %p79
      %p203 = pneg %p76
      %p204 = pneg %p100
      %p205 = pneg %p97
      %p206 = pneg %p121
      %p207 = pneg %p118
      %p208 = pneg %p147
      %p209 = pneg %p144
      %p210 = scmp.lt.s32.totalorder %s16, 1
      %s211 = scalar_select %p210, %s16, 1
      %s212 = smul.addr %s211, 12
      %s213 = smul.addr %s212, 8
      %s214 = scalar_lea.vmem %s5, %s213
      %p215 = scmp.lt.s32.totalorder %s16, 1
      %s216 = scalar_select %p215, %s16, 1
      %s217 = smul.addr %s216, 3
      %s218 = smul.addr %s217, 2
      %s219 = scalar_lea.vmem %s0, %s218
      %p220 = scmp.lt.s32.totalorder %s16, 1
      %s221 = scalar_select %p220, %s16, 1
      %s222 = smul.addr %s221, 12
      %s223 = smul.addr %s222, 8
      %s224 = scalar_lea.vmem %s5, %s223
      %v226 = vlaneseq
      %v227 = vand.u32 %v226, 127
      %v228 = vadd.s32 %v227, 128
      %v229 = vadd.s32 %v227, 256
      %vm230 = vcmp.lt.s32.totalorder %v227, 0
      %v231 = vsub.s32 0, %v227
      %v232 = vsel %vm230, %v231, %v227
      %v233 = vmul.u32.u64.compose %v232, 3817748708
      %v234 = vextract.low.u32 %v233
      %v235 = vextract.high.u32 %v233
      %v236 = vshrl.u32 %v235, 4
      %v237 = vmul.u32 %v236, 18
      %v238 = vsub.s32 %v232, %v237
      %v239 = vsub.s32 0, %v238
      %v240 = vsel %vm230, %v239, %v238
      %vm241 = vcmp.lt.s32.totalorder %v228, 0
      %v242 = vsub.s32 0, %v228
      %v243 = vsel %vm241, %v242, %v228
      %v244 = vmul.u32.u64.compose %v243, 3817748708
      %v245 = vextract.low.u32 %v244
      %v246 = vextract.high.u32 %v244
      %v247 = vshrl.u32 %v246, 4
      %v248 = vmul.u32 %v247, 18
      %v249 = vsub.s32 %v243, %v248
      %v250 = vsub.s32 0, %v249
      %v251 = vsel %vm241, %v250, %v249
      %vm252 = vcmp.lt.s32.totalorder %v229, 0
      %v253 = vsub.s32 0, %v229
      %v254 = vsel %vm252, %v253, %v229
      %v255 = vmul.u32.u64.compose %v254, 3817748708
      %v256 = vextract.low.u32 %v255
      %v257 = vextract.high.u32 %v255
      %v258 = vshrl.u32 %v257, 4
      %v259 = vmul.u32 %v258, 18
      %v260 = vsub.s32 %v254, %v259
      %v261 = vsub.s32 0, %v260
      %v262 = vsel %vm252, %v261, %v260
      %vm263 = vcmp.ne.s32.totalorder %v240, 0
      %vm264 = vcmp.ne.s32.totalorder %v251, 0
      %vm265 = vcmp.ne.s32.totalorder %v262, 0
      %vm266 = vcmp.lt.s32.totalorder %v240, 0
      %vm267 = vcmp.lt.s32.totalorder %v251, 0
      %vm268 = vcmp.lt.s32.totalorder %v262, 0
      %vm269 = vmand %vm266, %vm263
      %vm270 = vmand %vm267, %vm264
      %vm271 = vmand %vm268, %vm265
      %v272 = vadd.s32 %v240, 18
      %v273 = vadd.s32 %v251, 18
      %v274 = vadd.s32 %v262, 18
      %v275 = vsel %vm269, %v272, %v240
      %v276 = vsel %vm270, %v273, %v251
      %v277 = vsel %vm271, %v274, %v262
      %vm278 = vcmp.lt.s32.totalorder %v275, 16
      %vm279 = vcmp.lt.s32.totalorder %v276, 16
      %vm280 = vcmp.lt.s32.totalorder %v277, 16
      %vm281 = vcmask 154624
      %282 = vst.msk [vmem:[#allocation2] sm:$0xff] %vm281, 0
      %283 = vst.msk [vmem:[#allocation2 + $0x18] sm:$0xff] %vm281, 0
      %vm284 = vcmask 572824
      %285 = vst.msk [vmem:[#allocation2 + $0x10] sm:$0xff] %vm284, 0
      %286 = vst.msk [vmem:[#allocation2 + $0x28] sm:$0xff] %vm284, 0
      %v287 = vld [vmem:[%s1] sm:$0xf]
      %v288 = vld [vmem:[%s1 + $0x4] sm:$0xf]
      %v289 = vld [vmem:[%s1 + $0x8] sm:$0xf]
      %v290 = vld [vmem:[%s1 + $0xc] sm:$0xf]
      %v291 = vld [vmem:[%s219] sm:$0x3f]
      %s292 = scalar_lea.vmem %s1, 16
      %v293 = vld [vmem:[%s292] sm:$0xf]
      %v294 = vld [vmem:[%s292 + $0x4] sm:$0xf]
      %v295 = vld [vmem:[%s292 + $0x8] sm:$0xf]
      %v296 = vld [vmem:[%s292 + $0xc] sm:$0xf]
      %v301 = vunpack.c.l.b16 %v293
      %v302 = vunpack.c.l.b16 %v294
      %v303 = vunpack.c.l.b16 %v295
      %v304 = vunpack.c.l.b16 %v296
      %v305 = vpack.c.b16 %v302, %v301
      %v306 = vpack.c.b16 %v304, %v303
      %v308 = vcombine.high %v291, %v291
      %v310 = vunpack.c.l.s4 1983009808
      %v311 = vunpack.c.0.s8 %v310
      %v312 = vlaneseq
      %v313 = vshrl.u32 %v312, 7
      %v314 = vsub.s32 %v311, %v313
      %v315 = vrot.slane %v291, %v314
      %v317 = vunpack.c.l.s4 1983009808
      %v318 = vunpack.c.0.s8 %v317
      %v319 = vlaneseq
      %v320 = vshrl.u32 %v319, 7
      %v321 = vsub.s32 %v318, %v320
      %v322 = vrot.slane %v308, %v321
      %v323 = vcombine.high %v315, %v315
      %324 = vrot.lane.b32.xlu0 %v315, 127
      %v325 = vpop.permute.xlu0 %324
      %326 = vrot.lane.b32.xlu0 %v323, 127
      %v327 = vpop.permute.xlu0 %326
      %328 = vrot.lane.b32.xlu0 %v322, 127
      %v329 = vpop.permute.xlu0 %328
      %vm330 = vcmask 1039360
      %v331 = vsel %vm330, %v325, %v327
      %v332 = vsel %vm330, %v327, %v329
      %vm333 = vcmask 23552
      %v335 = vsel %vm333, %v305, 0
      %v338 = vsel %vm333, %v306, 0
      %vm340 = vcmask 1040384
      %vm341 = vcmask 1041408
      %v342 = vsel %vm340, 4294967295, 65535
      %v343 = vsel %vm341, %v342, 0
      %v345 = vand.u32 %v331, %v343
      %v348 = vand.u32 %v332, %v343
      %v351 = vand.u32 %v329, %v343
      %353 = vmatprep.subr.bf16.mxu0 %v348
      %354 = vmatpush1.bf16.msra.mxu0 %v345
      %355 = vmatprep.subr.bf16.mxu0 0
      %356 = vmatpush1.bf16.msra.mxu0 0
      %357 = vmatprep.subr.bf16.mxu0 0
      %358 = vmatpush1.bf16.msra.mxu0 0
      %359 = vmatprep.subr.bf16.mxu0 0
      %360 = vmatpush1.bf16.msra.mxu0 0
      %361 = vmatprep.subr.bf16.mxu0 0
      %362 = vmatpush1.bf16.msra.mxu0 0
      %363 = vmatprep.subr.bf16.mxu0 0
      %364 = vmatpush1.bf16.msra.mxu0 0
      %365 = vmatprep.subr.bf16.mxu0 0
      %366 = vmatpush1.bf16.msra.mxu0 0
      %367 = vmatprep.subr.bf16.mxu0 0
      %368 = vmatpush1.bf16.msra.mxu0 0
      %369 = vmatprep.subr.bf16.mxu0 0
      %370 = vmatpush1.bf16.msra.mxu0 0
      %371 = vmatprep.subr.bf16.mxu0 0
      %372 = vmatpush1.bf16.msra.mxu0 0
      %373 = vmatprep.subr.bf16.mxu0 0
      %374 = vmatpush1.bf16.msra.mxu0 0
      %375 = vmatprep.subr.bf16.mxu0 0
      %376 = vmatpush1.bf16.msra.mxu0 0
      %377 = vmatprep.subr.bf16.mxu0 0
      %378 = vmatpush1.bf16.msra.mxu0 0
      %379 = vmatprep.subr.bf16.mxu0 0
      %380 = vmatpush1.bf16.msra.mxu0 0
      %381 = vmatprep.subr.bf16.mxu0 0
      %382 = vmatpush1.bf16.msra.mxu0 0
      %383 = vmatprep.subr.bf16.mxu0 0
      %384 = vmatpush1.bf16.msra.mxu0 0
      %385 = vmatprep.mubr.bf16.mxu0 0
      %386 = vmatmul.mubr.bf16.gmra.mrb[0].mxu0 %v335
      %v387 = vpop.f32.mrb[0].mxu0
      %v388 = vadd.f32 0.0, %v387
      %v389 = vpop.f32.mrb[0].mxu0
      %v390 = vadd.f32 0.0, %v389
      %v391 = vpop.f32.mrb[0].mxu0
      %v392 = vadd.f32 0.0, %v391
      %v393 = vpop.f32.mrb[0].mxu0
      %v394 = vadd.f32 0.0, %v393
      %395 = vmatprep.mubr.bf16.mxu0 0
      %396 = vmatmul.mubr.bf16.gmra.mrb[0].mxu0 %v338
      %v397 = vpop.f32.mrb[0].mxu0
      %v398 = vadd.f32 0.0, %v397
      %v399 = vpop.f32.mrb[0].mxu0
      %v400 = vadd.f32 0.0, %v399
      %v401 = vpop.f32.mrb[0].mxu0
      %v402 = vadd.f32 0.0, %v401
      %v403 = vpop.f32.mrb[0].mxu0
      %v404 = vadd.f32 0.0, %v403
      %405 = vdwg.mxu0
      %406 = vmatprep.subr.bf16.mxu0 0
      %407 = vmatpush1.bf16.msra.mxu0 %v351
      %408 = vmatprep.subr.bf16.mxu0 0
      %409 = vmatpush1.bf16.msra.mxu0 0
      %410 = vmatprep.subr.bf16.mxu0 0
      %411 = vmatpush1.bf16.msra.mxu0 0
      %412 = vmatprep.subr.bf16.mxu0 0
      %413 = vmatpush1.bf16.msra.mxu0 0
      %414 = vmatprep.subr.bf16.mxu0 0
      %415 = vmatpush1.bf16.msra.mxu0 0
      %416 = vmatprep.subr.bf16.mxu0 0
      %417 = vmatpush1.bf16.msra.mxu0 0
      %418 = vmatprep.subr.bf16.mxu0 0
      %419 = vmatpush1.bf16.msra.mxu0 0
      %420 = vmatprep.subr.bf16.mxu0 0
      %421 = vmatpush1.bf16.msra.mxu0 0
      %422 = vmatprep.subr.bf16.mxu0 0
      %423 = vmatpush1.bf16.msra.mxu0 0
      %424 = vmatprep.subr.bf16.mxu0 0
      %425 = vmatpush1.bf16.msra.mxu0 0
      %426 = vmatprep.subr.bf16.mxu0 0
      %427 = vmatpush1.bf16.msra.mxu0 0
      %428 = vmatprep.subr.bf16.mxu0 0
      %429 = vmatpush1.bf16.msra.mxu0 0
      %430 = vmatprep.subr.bf16.mxu0 0
      %431 = vmatpush1.bf16.msra.mxu0 0
      %432 = vmatprep.subr.bf16.mxu0 0
      %433 = vmatpush1.bf16.msra.mxu0 0
      %434 = vmatprep.subr.bf16.mxu0 0
      %435 = vmatpush1.bf16.msra.mxu0 0
      %436 = vmatprep.subr.bf16.mxu0 0
      %437 = vmatpush1.bf16.msra.mxu0 0
      %438 = vmatprep.mubr.bf16.mxu0 0
      %439 = vmatmul.mubr.bf16.gmra.mrb[0].mxu0 %v335
      %v440 = vpop.f32.mrb[0].mxu0
      %v441 = vadd.f32 0.0, %v440
      %v442 = vpop.f32.mrb[0].mxu0
      %v443 = vpop.f32.mrb[0].mxu0
      %v444 = vadd.f32 0.0, %v443
      %v445 = vpop.f32.mrb[0].mxu0
      %446 = vmatprep.mubr.bf16.mxu0 0
      %447 = vmatmul.mubr.bf16.gmra.mrb[0].mxu0 %v338
      %v448 = vpop.f32.mrb[0].mxu0
      %v449 = vadd.f32 0.0, %v448
      %v450 = vpop.f32.mrb[0].mxu0
      %v451 = vpop.f32.mrb[0].mxu0
      %v452 = vadd.f32 0.0, %v451
      %v453 = vpop.f32.mrb[0].mxu0
      %454 = vdwg.mxu0
      %v459 = vunpack.c.l.b16 %v287
      %v460 = vunpack.c.l.b16 %v288
      %v461 = vunpack.c.l.b16 %v289
      %v462 = vunpack.c.l.b16 %v290
      %v463 = vpack.c.b16 %v460, %v459
      %v464 = vpack.c.b16 %v462, %v461
      %v466 = vsel %vm333, %v463, 0
      %v469 = vsel %vm333, %v464, 0
      %v472 = vand.u32 %v315, %v343
      %v475 = vand.u32 %v323, %v343
      %v478 = vand.u32 %v322, %v343
      %480 = vmatprep.subr.bf16.mxu0 %v475
      %481 = vmatpush1.bf16.msra.mxu0 %v472
      %482 = vmatprep.subr.bf16.mxu0 0
      %483 = vmatpush1.bf16.msra.mxu0 0
      %484 = vmatprep.subr.bf16.mxu0 0
      %485 = vmatpush1.bf16.msra.mxu0 0
      %486 = vmatprep.subr.bf16.mxu0 0
      %487 = vmatpush1.bf16.msra.mxu0 0
      %488 = vmatprep.subr.bf16.mxu0 0
      %489 = vmatpush1.bf16.msra.mxu0 0
      %490 = vmatprep.subr.bf16.mxu0 0
      %491 = vmatpush1.bf16.msra.mxu0 0
      %492 = vmatprep.subr.bf16.mxu0 0
      %493 = vmatpush1.bf16.msra.mxu0 0
      %494 = vmatprep.subr.bf16.mxu0 0
      %495 = vmatpush1.bf16.msra.mxu0 0
      %496 = vmatprep.subr.bf16.mxu0 0
      %497 = vmatpush1.bf16.msra.mxu0 0
      %498 = vmatprep.subr.bf16.mxu0 0
      %499 = vmatpush1.bf16.msra.mxu0 0
      %500 = vmatprep.subr.bf16.mxu0 0
      %501 = vmatpush1.bf16.msra.mxu0 0
      %502 = vmatprep.subr.bf16.mxu0 0
      %503 = vmatpush1.bf16.msra.mxu0 0
      %504 = vmatprep.subr.bf16.mxu0 0
      %505 = vmatpush1.bf16.msra.mxu0 0
      %506 = vmatprep.subr.bf16.mxu0 0
      %507 = vmatpush1.bf16.msra.mxu0 0
      %508 = vmatprep.subr.bf16.mxu0 0
      %509 = vmatpush1.bf16.msra.mxu0 0
      %510 = vmatprep.subr.bf16.mxu0 0
      %511 = vmatpush1.bf16.msra.mxu0 0
      %512 = vmatprep.mubr.bf16.mxu0 0
      %513 = vmatmul.mubr.bf16.gmra.mrb[0].mxu0 %v466
      %v514 = vpop.f32.mrb[0].mxu0
      %v515 = vadd.f32 %v388, %v514
      %v516 = vpop.f32.mrb[0].mxu0
      %v517 = vadd.f32 %v390, %v516
      %v518 = vpop.f32.mrb[0].mxu0
      %v519 = vadd.f32 %v392, %v518
      %v520 = vpop.f32.mrb[0].mxu0
      %v521 = vadd.f32 %v394, %v520
      %522 = vmatprep.mubr.bf16.mxu0 0
      %523 = vmatmul.mubr.bf16.gmra.mrb[0].mxu0 %v469
      %v524 = vpop.f32.mrb[0].mxu0
      %v525 = vadd.f32 %v398, %v524
      %v526 = vpop.f32.mrb[0].mxu0
      %v527 = vadd.f32 %v400, %v526
      %v528 = vpop.f32.mrb[0].mxu0
      %v529 = vadd.f32 %v402, %v528
      %v530 = vpop.f32.mrb[0].mxu0
      %v531 = vadd.f32 %v404, %v530
      %532 = vdwg.mxu0
      %533 = vmatprep.subr.bf16.mxu0 0
      %534 = vmatpush1.bf16.msra.mxu0 %v478
      %535 = vmatprep.subr.bf16.mxu0 0
      %536 = vmatpush1.bf16.msra.mxu0 0
      %537 = vmatprep.subr.bf16.mxu0 0
      %538 = vmatpush1.bf16.msra.mxu0 0
      %539 = vmatprep.subr.bf16.mxu0 0
      %540 = vmatpush1.bf16.msra.mxu0 0
      %541 = vmatprep.subr.bf16.mxu0 0
      %542 = vmatpush1.bf16.msra.mxu0 0
      %543 = vmatprep.subr.bf16.mxu0 0
      %544 = vmatpush1.bf16.msra.mxu0 0
      %545 = vmatprep.subr.bf16.mxu0 0
      %546 = vmatpush1.bf16.msra.mxu0 0
      %547 = vmatprep.subr.bf16.mxu0 0
      %548 = vmatpush1.bf16.msra.mxu0 0
      %549 = vmatprep.subr.bf16.mxu0 0
      %550 = vmatpush1.bf16.msra.mxu0 0
      %551 = vmatprep.subr.bf16.mxu0 0
      %552 = vmatpush1.bf16.msra.mxu0 0
      %553 = vmatprep.subr.bf16.mxu0 0
      %554 = vmatpush1.bf16.msra.mxu0 0
      %555 = vmatprep.subr.bf16.mxu0 0
      %556 = vmatpush1.bf16.msra.mxu0 0
      %557 = vmatprep.subr.bf16.mxu0 0
      %558 = vmatpush1.bf16.msra.mxu0 0
      %559 = vmatprep.subr.bf16.mxu0 0
      %560 = vmatpush1.bf16.msra.mxu0 0
      %561 = vmatprep.subr.bf16.mxu0 0
      %562 = vmatpush1.bf16.msra.mxu0 0
      %563 = vmatprep.subr.bf16.mxu0 0
      %564 = vmatpush1.bf16.msra.mxu0 0
      %565 = vmatprep.mubr.bf16.mxu0 0
      %566 = vmatmul.mubr.bf16.gmra.mrb[0].mxu0 %v466
      %v567 = vpop.f32.mrb[0].mxu0
      %v568 = vadd.f32 %v441, %v567
      %v569 = vpop.f32.mrb[0].mxu0
      %v570 = vpop.f32.mrb[0].mxu0
      %v571 = vadd.f32 %v444, %v570
      %v572 = vpop.f32.mrb[0].mxu0
      %573 = vmatprep.mubr.bf16.mxu0 0
      %574 = vmatmul.mubr.bf16.gmra.mrb[0].mxu0 %v469
      %v575 = vpop.f32.mrb[0].mxu0
      %v576 = vadd.f32 %v449, %v575
      %v577 = vpop.f32.mrb[0].mxu0
      %v578 = vpop.f32.mrb[0].mxu0
      %v579 = vadd.f32 %v452, %v578
      %v580 = vpop.f32.mrb[0].mxu0
      %581 = vdwg.mxu0
      %s582 = scalar_lea.vmem %s1, 32
      %v583 = vld [vmem:[%s582] sm:$0xf]
      %v584 = vld [vmem:[%s582 + $0x4] sm:$0xf]
      %v585 = vld [vmem:[%s582 + $0x8] sm:$0xf]
      %v586 = vld [vmem:[%s582 + $0xc] sm:$0xf]
      %v587 = vld [vmem:[%s219] sm:$0x3f]
      %v592 = vunpack.c.l.b16 %v583
      %v593 = vunpack.c.l.b16 %v584
      %v594 = vunpack.c.l.b16 %v585
      %v595 = vunpack.c.l.b16 %v586
      %v596 = vpack.c.b16 %v593, %v592
      %v597 = vpack.c.b16 %v595, %v594
      %v599 = vcombine.high %v587, %v587
      %v601 = vunpack.c.l.s4 1983009808
      %v602 = vunpack.c.0.s8 %v601
      %v603 = vlaneseq
      %v604 = vshrl.u32 %v603, 7
      %v605 = vsub.s32 %v602, %v604
      %v606 = vrot.slane %v587, %v605
      %v608 = vunpack.c.l.s4 1983009808
      %v609 = vunpack.c.0.s8 %v608
      %v610 = vlaneseq
      %v611 = vshrl.u32 %v610, 7
      %v612 = vsub.s32 %v609, %v611
      %v613 = vrot.slane %v599, %v612
      %v614 = vcombine.high %v606, %v606
      %615 = vrot.lane.b32.xlu0 %v606, 126
      %v616 = vpop.permute.xlu0 %615
      %617 = vrot.lane.b32.xlu0 %v614, 126
      %v618 = vpop.permute.xlu0 %617
      %619 = vrot.lane.b32.xlu0 %v613, 126
      %v620 = vpop.permute.xlu0 %619
      %vm621 = vcmask 1031168
      %v622 = vsel %vm621, %v616, %v618
      %v623 = vsel %vm621, %v618, %v620
      %v625 = vsel %vm333, %v596, 0
      %v628 = vsel %vm333, %v597, 0
      %v631 = vand.u32 %v622, %v343
      %v634 = vand.u32 %v623, %v343
      %v637 = vand.u32 %v620, %v343
      %639 = vmatprep.subr.bf16.mxu0 %v634
      %640 = vmatpush1.bf16.msra.mxu0 %v631
      %641 = vmatprep.subr.bf16.mxu0 0
      %642 = vmatpush1.bf16.msra.mxu0 0
      %643 = vmatprep.subr.bf16.mxu0 0
      %644 = vmatpush1.bf16.msra.mxu0 0
      %645 = vmatprep.subr.bf16.mxu0 0
      %646 = vmatpush1.bf16.msra.mxu0 0
      %647 = vmatprep.subr.bf16.mxu0 0
      %648 = vmatpush1.bf16.msra.mxu0 0
      %649 = vmatprep.subr.bf16.mxu0 0
      %650 = vmatpush1.bf16.msra.mxu0 0
      %651 = vmatprep.subr.bf16.mxu0 0
      %652 = vmatpush1.bf16.msra.mxu0 0
      %653 = vmatprep.subr.bf16.mxu0 0
      %654 = vmatpush1.bf16.msra.mxu0 0
      %655 = vmatprep.subr.bf16.mxu0 0
      %656 = vmatpush1.bf16.msra.mxu0 0
      %657 = vmatprep.subr.bf16.mxu0 0
      %658 = vmatpush1.bf16.msra.mxu0 0
      %659 = vmatprep.subr.bf16.mxu0 0
      %660 = vmatpush1.bf16.msra.mxu0 0
      %661 = vmatprep.subr.bf16.mxu0 0
      %662 = vmatpush1.bf16.msra.mxu0 0
      %663 = vmatprep.subr.bf16.mxu0 0
      %664 = vmatpush1.bf16.msra.mxu0 0
      %665 = vmatprep.subr.bf16.mxu0 0
      %666 = vmatpush1.bf16.msra.mxu0 0
      %667 = vmatprep.subr.bf16.mxu0 0
      %668 = vmatpush1.bf16.msra.mxu0 0
      %669 = vmatprep.subr.bf16.mxu0 0
      %670 = vmatpush1.bf16.msra.mxu0 0
      %671 = vmatprep.mubr.bf16.mxu0 0
      %672 = vmatmul.mubr.bf16.gmra.mrb[0].mxu0 %v625
      %v673 = vpop.f32.mrb[0].mxu0
      %v674 = vadd.f32 0.0, %v673
      %v675 = vpop.f32.mrb[0].mxu0
      %v676 = vadd.f32 0.0, %v675
      %v677 = vpop.f32.mrb[0].mxu0
      %v678 = vadd.f32 0.0, %v677
      %v679 = vpop.f32.mrb[0].mxu0
      %v680 = vadd.f32 0.0, %v679
      %681 = vmatprep.mubr.bf16.mxu0 0
      %682 = vmatmul.mubr.bf16.gmra.mrb[0].mxu0 %v628
      %v683 = vpop.f32.mrb[0].mxu0
      %v684 = vadd.f32 0.0, %v683
      %v685 = vpop.f32.mrb[0].mxu0
      %v686 = vadd.f32 0.0, %v685
      %v687 = vpop.f32.mrb[0].mxu0
      %v688 = vadd.f32 0.0, %v687
      %v689 = vpop.f32.mrb[0].mxu0
      %v690 = vadd.f32 0.0, %v689
      %691 = vdwg.mxu0
      %692 = vmatprep.subr.bf16.mxu0 0
      %693 = vmatpush1.bf16.msra.mxu0 %v637
      %694 = vmatprep.subr.bf16.mxu0 0
      %695 = vmatpush1.bf16.msra.mxu0 0
      %696 = vmatprep.subr.bf16.mxu0 0
      %697 = vmatpush1.bf16.msra.mxu0 0
      %698 = vmatprep.subr.bf16.mxu0 0
      %699 = vmatpush1.bf16.msra.mxu0 0
      %700 = vmatprep.subr.bf16.mxu0 0
      %701 = vmatpush1.bf16.msra.mxu0 0
      %702 = vmatprep.subr.bf16.mxu0 0
      %703 = vmatpush1.bf16.msra.mxu0 0
      %704 = vmatprep.subr.bf16.mxu0 0
      %705 = vmatpush1.bf16.msra.mxu0 0
      %706 = vmatprep.subr.bf16.mxu0 0
      %707 = vmatpush1.bf16.msra.mxu0 0
      %708 = vmatprep.subr.bf16.mxu0 0
      %709 = vmatpush1.bf16.msra.mxu0 0
      %710 = vmatprep.subr.bf16.mxu0 0
      %711 = vmatpush1.bf16.msra.mxu0 0
      %712 = vmatprep.subr.bf16.mxu0 0
      %713 = vmatpush1.bf16.msra.mxu0 0
      %714 = vmatprep.subr.bf16.mxu0 0
      %715 = vmatpush1.bf16.msra.mxu0 0
      %716 = vmatprep.subr.bf16.mxu0 0
      %717 = vmatpush1.bf16.msra.mxu0 0
      %718 = vmatprep.subr.bf16.mxu0 0
      %719 = vmatpush1.bf16.msra.mxu0 0
      %720 = vmatprep.subr.bf16.mxu0 0
      %721 = vmatpush1.bf16.msra.mxu0 0
      %722 = vmatprep.subr.bf16.mxu0 0
      %723 = vmatpush1.bf16.msra.mxu0 0
      %724 = vmatprep.mubr.bf16.mxu0 0
      %725 = vmatmul.mubr.bf16.gmra.mrb[0].mxu0 %v625
      %v726 = vpop.f32.mrb[0].mxu0
      %v727 = vadd.f32 0.0, %v726
      %v728 = vpop.f32.mrb[0].mxu0
      %v729 = vpop.f32.mrb[0].mxu0
      %v730 = vadd.f32 0.0, %v729
      %v731 = vpop.f32.mrb[0].mxu0
      %732 = vmatprep.mubr.bf16.mxu0 0
      %733 = vmatmul.mubr.bf16.gmra.mrb[0].mxu0 %v628
      %v734 = vpop.f32.mrb[0].mxu0
      %v735 = vadd.f32 0.0, %v734
      %v736 = vpop.f32.mrb[0].mxu0
      %v737 = vpop.f32.mrb[0].mxu0
      %v738 = vadd.f32 0.0, %v737
      %v739 = vpop.f32.mrb[0].mxu0
      %740 = vdwg.mxu0
      %v741 = vadd.f32 %v515, %v674
      %v742 = vadd.f32 %v517, %v676
      %v743 = vadd.f32 %v568, %v727
      %v744 = vadd.f32 %v519, %v678
      %v745 = vadd.f32 %v521, %v680
      %v746 = vadd.f32 %v571, %v730
      %v747 = vadd.f32 %v525, %v684
      %v748 = vadd.f32 %v527, %v686
      %v749 = vadd.f32 %v576, %v735
      %v750 = vadd.f32 %v529, %v688
      %v751 = vadd.f32 %v531, %v690
      %v752 = vadd.f32 %v579, %v738
      %s753 = scalar_lea.vmem %s1, 48
      %v754 = vld [vmem:[%s753] sm:$0xf]
      %v755 = vld [vmem:[%s753 + $0x4] sm:$0xf]
      %v756 = vld [vmem:[%s753 + $0x8] sm:$0xf]
      %v757 = vld [vmem:[%s753 + $0xc] sm:$0xf]
      %v758 = vld [vmem:[%s219] sm:$0x3f]
      %v763 = vunpack.c.l.b16 %v754
      %v764 = vunpack.c.l.b16 %v755
      %v765 = vunpack.c.l.b16 %v756
      %v766 = vunpack.c.l.b16 %v757
      %v767 = vpack.c.b16 %v764, %v763
      %v768 = vpack.c.b16 %v766, %v765
      %v770 = vcombine.high %v758, %v758
      %v772 = vunpack.c.l.s4 1983009808
      %v773 = vunpack.c.0.s8 %v772
      %v774 = vlaneseq
      %v775 = vshrl.u32 %v774, 7
      %v776 = vsub.s32 %v773, %v775
      %v777 = vrot.slane %v758, %v776
      %v779 = vunpack.c.l.s4 1983009808
      %v780 = vunpack.c.0.s8 %v779
      %v781 = vlaneseq
      %v782 = vshrl.u32 %v781, 7
      %v783 = vsub.s32 %v780, %v782
      %v784 = vrot.slane %v770, %v783
      %v785 = vcombine.high %v777, %v777
      %786 = vrot.lane.b32.xlu0 %v777, 110
      %v787 = vpop.permute.xlu0 %786
      %788 = vrot.lane.b32.xlu0 %v785, 110
      %v789 = vpop.permute.xlu0 %788
      %790 = vrot.lane.b32.xlu0 %v784, 110
      %v791 = vpop.permute.xlu0 %790
      %vm792 = vcmask 900096
      %v793 = vsel %vm792, %v787, %v789
      %v794 = vsel %vm792, %v789, %v791
      %v796 = vsel %vm333, %v767, 0
      %v799 = vsel %vm333, %v768, 0
      %v802 = vand.u32 %v793, %v343
      %v805 = vand.u32 %v794, %v343
      %v808 = vand.u32 %v791, %v343
      %810 = vmatprep.subr.bf16.mxu0 %v805
      %811 = vmatpush1.bf16.msra.mxu0 %v802
      %812 = vmatprep.subr.bf16.mxu0 0
      %813 = vmatpush1.bf16.msra.mxu0 0
      %814 = vmatprep.subr.bf16.mxu0 0
      %815 = vmatpush1.bf16.msra.mxu0 0
      %816 = vmatprep.subr.bf16.mxu0 0
      %817 = vmatpush1.bf16.msra.mxu0 0
      %818 = vmatprep.subr.bf16.mxu0 0
      %819 = vmatpush1.bf16.msra.mxu0 0
      %820 = vmatprep.subr.bf16.mxu0 0
      %821 = vmatpush1.bf16.msra.mxu0 0
      %822 = vmatprep.subr.bf16.mxu0 0
      %823 = vmatpush1.bf16.msra.mxu0 0
      %824 = vmatprep.subr.bf16.mxu0 0
      %825 = vmatpush1.bf16.msra.mxu0 0
      %826 = vmatprep.subr.bf16.mxu0 0
      %827 = vmatpush1.bf16.msra.mxu0 0
      %828 = vmatprep.subr.bf16.mxu0 0
      %829 = vmatpush1.bf16.msra.mxu0 0
      %830 = vmatprep.subr.bf16.mxu0 0
      %831 = vmatpush1.bf16.msra.mxu0 0
      %832 = vmatprep.subr.bf16.mxu0 0
      %833 = vmatpush1.bf16.msra.mxu0 0
      %834 = vmatprep.subr.bf16.mxu0 0
      %835 = vmatpush1.bf16.msra.mxu0 0
      %836 = vmatprep.subr.bf16.mxu0 0
      %837 = vmatpush1.bf16.msra.mxu0 0
      %838 = vmatprep.subr.bf16.mxu0 0
      %839 = vmatpush1.bf16.msra.mxu0 0
      %840 = vmatprep.subr.bf16.mxu0 0
      %841 = vmatpush1.bf16.msra.mxu0 0
      %842 = vmatprep.mubr.bf16.mxu0 0
      %843 = vmatmul.mubr.bf16.gmra.mrb[0].mxu0 %v796
      %v844 = vpop.f32.mrb[0].mxu0
      %v845 = vadd.f32 0.0, %v844
      %v846 = vpop.f32.mrb[0].mxu0
      %v847 = vadd.f32 0.0, %v846
      %v848 = vpop.f32.mrb[0].mxu0
      %v849 = vadd.f32 0.0, %v848
      %v850 = vpop.f32.mrb[0].mxu0
      %v851 = vadd.f32 0.0, %v850
      %852 = vmatprep.mubr.bf16.mxu0 0
      %853 = vmatmul.mubr.bf16.gmra.mrb[0].mxu0 %v799
      %v854 = vpop.f32.mrb[0].mxu0
      %v855 = vadd.f32 0.0, %v854
      %v856 = vpop.f32.mrb[0].mxu0
      %v857 = vadd.f32 0.0, %v856
      %v858 = vpop.f32.mrb[0].mxu0
      %v859 = vadd.f32 0.0, %v858
      %v860 = vpop.f32.mrb[0].mxu0
      %v861 = vadd.f32 0.0, %v860
      %862 = vdwg.mxu0
      %863 = vmatprep.subr.bf16.mxu0 0
      %864 = vmatpush1.bf16.msra.mxu0 %v808
      %865 = vmatprep.subr.bf16.mxu0 0
      %866 = vmatpush1.bf16.msra.mxu0 0
      %867 = vmatprep.subr.bf16.mxu0 0
      %868 = vmatpush1.bf16.msra.mxu0 0
      %869 = vmatprep.subr.bf16.mxu0 0
      %870 = vmatpush1.bf16.msra.mxu0 0
      %871 = vmatprep.subr.bf16.mxu0 0
      %872 = vmatpush1.bf16.msra.mxu0 0
      %873 = vmatprep.subr.bf16.mxu0 0
      %874 = vmatpush1.bf16.msra.mxu0 0
      %875 = vmatprep.subr.bf16.mxu0 0
      %876 = vmatpush1.bf16.msra.mxu0 0
      %877 = vmatprep.subr.bf16.mxu0 0
      %878 = vmatpush1.bf16.msra.mxu0 0
      %879 = vmatprep.subr.bf16.mxu0 0
      %880 = vmatpush1.bf16.msra.mxu0 0
      %881 = vmatprep.subr.bf16.mxu0 0
      %882 = vmatpush1.bf16.msra.mxu0 0
      %883 = vmatprep.subr.bf16.mxu0 0
      %884 = vmatpush1.bf16.msra.mxu0 0
      %885 = vmatprep.subr.bf16.mxu0 0
      %886 = vmatpush1.bf16.msra.mxu0 0
      %887 = vmatprep.subr.bf16.mxu0 0
      %888 = vmatpush1.bf16.msra.mxu0 0
      %889 = vmatprep.subr.bf16.mxu0 0
      %890 = vmatpush1.bf16.msra.mxu0 0
      %891 = vmatprep.subr.bf16.mxu0 0
      %892 = vmatpush1.bf16.msra.mxu0 0
      %893 = vmatprep.subr.bf16.mxu0 0
      %894 = vmatpush1.bf16.msra.mxu0 0
      %895 = vmatprep.mubr.bf16.mxu0 0
      %896 = vmatmul.mubr.bf16.gmra.mrb[0].mxu0 %v796
      %v897 = vpop.f32.mrb[0].mxu0
      %v898 = vadd.f32 0.0, %v897
      %v899 = vpop.f32.mrb[0].mxu0
      %v900 = vpop.f32.mrb[0].mxu0
      %v901 = vadd.f32 0.0, %v900
      %v902 = vpop.f32.mrb[0].mxu0
      %903 = vmatprep.mubr.bf16.mxu0 0
      %904 = vmatmul.mubr.bf16.gmra.mrb[0].mxu0 %v799
      %v905 = vpop.f32.mrb[0].mxu0
      %v906 = vadd.f32 0.0, %v905
      %v907 = vpop.f32.mrb[0].mxu0
      %v908 = vpop.f32.mrb[0].mxu0
      %v909 = vadd.f32 0.0, %v908
      %v910 = vpop.f32.mrb[0].mxu0
      %911 = vdwg.mxu0
      %v912 = vadd.f32 %v741, %v845
      %v913 = vadd.f32 %v742, %v847
      %v914 = vadd.f32 %v743, %v898
      %v915 = vadd.f32 %v744, %v849
      %v916 = vadd.f32 %v745, %v851
      %v917 = vadd.f32 %v746, %v901
      %v918 = vadd.f32 %v747, %v855
      %v919 = vadd.f32 %v748, %v857
      %v920 = vadd.f32 %v749, %v906
      %v921 = vadd.f32 %v750, %v859
      %v922 = vadd.f32 %v751, %v861
      %v923 = vadd.f32 %v752, %v909
      %s924 = scalar_lea.vmem %s1, 64
      %v925 = vld [vmem:[%s924] sm:$0xf]
      %v926 = vld [vmem:[%s924 + $0x4] sm:$0xf]
      %v927 = vld [vmem:[%s924 + $0x8] sm:$0xf]
      %v928 = vld [vmem:[%s924 + $0xc] sm:$0xf]
      %v929 = vld [vmem:[%s219] sm:$0x3f]
      %v934 = vunpack.c.l.b16 %v925
      %v935 = vunpack.c.l.b16 %v926
      %v936 = vunpack.c.l.b16 %v927
      %v937 = vunpack.c.l.b16 %v928
      %v938 = vpack.c.b16 %v935, %v934
      %v939 = vpack.c.b16 %v937, %v936
      %v941 = vcombine.high %v929, %v929
      %v943 = vunpack.c.l.s4 1983009808
      %v944 = vunpack.c.0.s8 %v943
      %v945 = vlaneseq
      %v946 = vshrl.u32 %v945, 7
      %v947 = vsub.s32 %v944, %v946
      %v948 = vrot.slane %v929, %v947
      %v950 = vunpack.c.l.s4 1983009808
      %v951 = vunpack.c.0.s8 %v950
      %v952 = vlaneseq
      %v953 = vshrl.u32 %v952, 7
      %v954 = vsub.s32 %v951, %v953
      %v955 = vrot.slane %v941, %v954
      %v956 = vcombine.high %v948, %v948
      %957 = vrot.lane.b32.xlu0 %v948, 109
      %v958 = vpop.permute.xlu0 %957
      %959 = vrot.lane.b32.xlu0 %v956, 109
      %v960 = vpop.permute.xlu0 %959
      %961 = vrot.lane.b32.xlu0 %v955, 109
      %v962 = vpop.permute.xlu0 %961
      %vm963 = vcmask 891904
      %v964 = vsel %vm963, %v958, %v960
      %v965 = vsel %vm963, %v960, %v962
      %v967 = vsel %vm333, %v938, 0
      %v970 = vsel %vm333, %v939, 0
      %v973 = vand.u32 %v964, %v343
      %v976 = vand.u32 %v965, %v343
      %v979 = vand.u32 %v962, %v343
      %981 = vmatprep.subr.bf16.mxu0 %v976
      %982 = vmatpush1.bf16.msra.mxu0 %v973
      %983 = vmatprep.subr.bf16.mxu0 0
      %984 = vmatpush1.bf16.msra.mxu0 0
      %985 = vmatprep.subr.bf16.mxu0 0
      %986 = vmatpush1.bf16.msra.mxu0 0
      %987 = vmatprep.subr.bf16.mxu0 0
      %988 = vmatpush1.bf16.msra.mxu0 0
      %989 = vmatprep.subr.bf16.mxu0 0
      %990 = vmatpush1.bf16.msra.mxu0 0
      %991 = vmatprep.subr.bf16.mxu0 0
      %992 = vmatpush1.bf16.msra.mxu0 0
      %993 = vmatprep.subr.bf16.mxu0 0
      %994 = vmatpush1.bf16.msra.mxu0 0
      %995 = vmatprep.subr.bf16.mxu0 0
      %996 = vmatpush1.bf16.msra.mxu0 0
      %997 = vmatprep.subr.bf16.mxu0 0
      %998 = vmatpush1.bf16.msra.mxu0 0
      %999 = vmatprep.subr.bf16.mxu0 0
      %1000 = vmatpush1.bf16.msra.mxu0 0
      %1001 = vmatprep.subr.bf16.mxu0 0
      %1002 = vmatpush1.bf16.msra.mxu0 0
      %1003 = vmatprep.subr.bf16.mxu0 0
      %1004 = vmatpush1.bf16.msra.mxu0 0
      %1005 = vmatprep.subr.bf16.mxu0 0
      %1006 = vmatpush1.bf16.msra.mxu0 0
      %1007 = vmatprep.subr.bf16.mxu0 0
      %1008 = vmatpush1.bf16.msra.mxu0 0
      %1009 = vmatprep.subr.bf16.mxu0 0
      %1010 = vmatpush1.bf16.msra.mxu0 0
      %1011 = vmatprep.subr.bf16.mxu0 0
      %1012 = vmatpush1.bf16.msra.mxu0 0
      %1013 = vmatprep.mubr.bf16.mxu0 0
      %1014 = vmatmul.mubr.bf16.gmra.mrb[0].mxu0 %v967
      %v1015 = vpop.f32.mrb[0].mxu0
      %v1016 = vadd.f32 0.0, %v1015
      %v1017 = vpop.f32.mrb[0].mxu0
      %v1018 = vadd.f32 0.0, %v1017
      %v1019 = vpop.f32.mrb[0].mxu0
      %v1020 = vadd.f32 0.0, %v1019
      %v1021 = vpop.f32.mrb[0].mxu0
      %v1022 = vadd.f32 0.0, %v1021
      %1023 = vmatprep.mubr.bf16.mxu0 0
      %1024 = vmatmul.mubr.bf16.gmra.mrb[0].mxu0 %v970
      %v1025 = vpop.f32.mrb[0].mxu0
      %v1026 = vadd.f32 0.0, %v1025
      %v1027 = vpop.f32.mrb[0].mxu0
      %v1028 = vadd.f32 0.0, %v1027
      %v1029 = vpop.f32.mrb[0].mxu0
      %v1030 = vadd.f32 0.0, %v1029
      %v1031 = vpop.f32.mrb[0].mxu0
      %v1032 = vadd.f32 0.0, %v1031
      %1033 = vdwg.mxu0
      %1034 = vmatprep.subr.bf16.mxu0 0
      %1035 = vmatpush1.bf16.msra.mxu0 %v979
      %1036 = vmatprep.subr.bf16.mxu0 0
      %1037 = vmatpush1.bf16.msra.mxu0 0
      %1038 = vmatprep.subr.bf16.mxu0 0
      %1039 = vmatpush1.bf16.msra.mxu0 0
      %1040 = vmatprep.subr.bf16.mxu0 0
      %1041 = vmatpush1.bf16.msra.mxu0 0
      %1042 = vmatprep.subr.bf16.mxu0 0
      %1043 = vmatpush1.bf16.msra.mxu0 0
      %1044 = vmatprep.subr.bf16.mxu0 0
      %1045 = vmatpush1.bf16.msra.mxu0 0
      %1046 = vmatprep.subr.bf16.mxu0 0
      %1047 = vmatpush1.bf16.msra.mxu0 0
      %1048 = vmatprep.subr.bf16.mxu0 0
      %1049 = vmatpush1.bf16.msra.mxu0 0
      %1050 = vmatprep.subr.bf16.mxu0 0
      %1051 = vmatpush1.bf16.msra.mxu0 0
      %1052 = vmatprep.subr.bf16.mxu0 0
      %1053 = vmatpush1.bf16.msra.mxu0 0
      %1054 = vmatprep.subr.bf16.mxu0 0
      %1055 = vmatpush1.bf16.msra.mxu0 0
      %1056 = vmatprep.subr.bf16.mxu0 0
      %1057 = vmatpush1.bf16.msra.mxu0 0
      %1058 = vmatprep.subr.bf16.mxu0 0
      %1059 = vmatpush1.bf16.msra.mxu0 0
      %1060 = vmatprep.subr.bf16.mxu0 0
      %1061 = vmatpush1.bf16.msra.mxu0 0
      %1062 = vmatprep.subr.bf16.mxu0 0
      %1063 = vmatpush1.bf16.msra.mxu0 0
      %1064 = vmatprep.subr.bf16.mxu0 0
      %1065 = vmatpush1.bf16.msra.mxu0 0
      %1066 = vmatprep.mubr.bf16.mxu0 0
      %1067 = vmatmul.mubr.bf16.gmra.mrb[0].mxu0 %v967
      %v1068 = vpop.f32.mrb[0].mxu0
      %v1069 = vadd.f32 0.0, %v1068
      %v1070 = vpop.f32.mrb[0].mxu0
      %v1071 = vpop.f32.mrb[0].mxu0
      %v1072 = vadd.f32 0.0, %v1071
      %v1073 = vpop.f32.mrb[0].mxu0
      %1074 = vmatprep.mubr.bf16.mxu0 0
      %1075 = vmatmul.mubr.bf16.gmra.mrb[0].mxu0 %v970
      %v1076 = vpop.f32.mrb[0].mxu0
      %v1077 = vadd.f32 0.0, %v1076
      %v1078 = vpop.f32.mrb[0].mxu0
      %v1079 = vpop.f32.mrb[0].mxu0
      %v1080 = vadd.f32 0.0, %v1079
      %v1081 = vpop.f32.mrb[0].mxu0
      %1082 = vdwg.mxu0
      %v1083 = vadd.f32 %v912, %v1016
      %v1084 = vadd.f32 %v913, %v1018
      %v1085 = vadd.f32 %v914, %v1069
      %v1086 = vadd.f32 %v915, %v1020
      %v1087 = vadd.f32 %v916, %v1022
      %v1088 = vadd.f32 %v917, %v1072
      %v1089 = vadd.f32 %v918, %v1026
      %v1090 = vadd.f32 %v919, %v1028
      %v1091 = vadd.f32 %v920, %v1077
      %v1092 = vadd.f32 %v921, %v1030
      %v1093 = vadd.f32 %v922, %v1032
      %v1094 = vadd.f32 %v923, %v1080
      %s1095 = scalar_lea.vmem %s1, 80
      %v1096 = vld [vmem:[%s1095] sm:$0xf]
      %v1097 = vld [vmem:[%s1095 + $0x4] sm:$0xf]
      %v1098 = vld [vmem:[%s1095 + $0x8] sm:$0xf]
      %v1099 = vld [vmem:[%s1095 + $0xc] sm:$0xf]
      %v1100 = vld [vmem:[%s219] sm:$0x3f]
      %v1105 = vunpack.c.l.b16 %v1096
      %v1106 = vunpack.c.l.b16 %v1097
      %v1107 = vunpack.c.l.b16 %v1098
      %v1108 = vunpack.c.l.b16 %v1099
      %v1109 = vpack.c.b16 %v1106, %v1105
      %v1110 = vpack.c.b16 %v1108, %v1107
      %v1112 = vcombine.high %v1100, %v1100
      %v1114 = vunpack.c.l.s4 1983009808
      %v1115 = vunpack.c.0.s8 %v1114
      %v1116 = vlaneseq
      %v1117 = vshrl.u32 %v1116, 7
      %v1118 = vsub.s32 %v1115, %v1117
      %v1119 = vrot.slane %v1100, %v1118
      %v1121 = vunpack.c.l.s4 1983009808
      %v1122 = vunpack.c.0.s8 %v1121
      %v1123 = vlaneseq
      %v1124 = vshrl.u32 %v1123, 7
      %v1125 = vsub.s32 %v1122, %v1124
      %v1126 = vrot.slane %v1112, %v1125
      %v1127 = vcombine.high %v1119, %v1119
      %1128 = vrot.lane.b32.xlu0 %v1119, 108
      %v1129 = vpop.permute.xlu0 %1128
      %1130 = vrot.lane.b32.xlu0 %v1127, 108
      %v1131 = vpop.permute.xlu0 %1130
      %1132 = vrot.lane.b32.xlu0 %v1126, 108
      %v1133 = vpop.permute.xlu0 %1132
      %vm1134 = vcmask 883712
      %v1135 = vsel %vm1134, %v1129, %v1131
      %v1136 = vsel %vm1134, %v1131, %v1133
      %v1138 = vsel %vm333, %v1109, 0
      %v1141 = vsel %vm333, %v1110, 0
      %v1144 = vand.u32 %v1135, %v343
      %v1147 = vand.u32 %v1136, %v343
      %v1150 = vand.u32 %v1133, %v343
      %1152 = vmatprep.subr.bf16.mxu0 %v1147
      %1153 = vmatpush1.bf16.msra.mxu0 %v1144
      %1154 = vmatprep.subr.bf16.mxu0 0
      %1155 = vmatpush1.bf16.msra.mxu0 0
      %1156 = vmatprep.subr.bf16.mxu0 0
      %1157 = vmatpush1.bf16.msra.mxu0 0
      %1158 = vmatprep.subr.bf16.mxu0 0
      %1159 = vmatpush1.bf16.msra.mxu0 0
      %1160 = vmatprep.subr.bf16.mxu0 0
      %1161 = vmatpush1.bf16.msra.mxu0 0
      %1162 = vmatprep.subr.bf16.mxu0 0
      %1163 = vmatpush1.bf16.msra.mxu0 0
      %1164 = vmatprep.subr.bf16.mxu0 0
      %1165 = vmatpush1.bf16.msra.mxu0 0
      %1166 = vmatprep.subr.bf16.mxu0 0
      %1167 = vmatpush1.bf16.msra.mxu0 0
      %1168 = vmatprep.subr.bf16.mxu0 0
      %1169 = vmatpush1.bf16.msra.mxu0 0
      %1170 = vmatprep.subr.bf16.mxu0 0
      %1171 = vmatpush1.bf16.msra.mxu0 0
      %1172 = vmatprep.subr.bf16.mxu0 0
      %1173 = vmatpush1.bf16.msra.mxu0 0
      %1174 = vmatprep.subr.bf16.mxu0 0
      %1175 = vmatpush1.bf16.msra.mxu0 0
      %1176 = vmatprep.subr.bf16.mxu0 0
      %1177 = vmatpush1.bf16.msra.mxu0 0
      %1178 = vmatprep.subr.bf16.mxu0 0
      %1179 = vmatpush1.bf16.msra.mxu0 0
      %1180 = vmatprep.subr.bf16.mxu0 0
      %1181 = vmatpush1.bf16.msra.mxu0 0
      %1182 = vmatprep.subr.bf16.mxu0 0
      %1183 = vmatpush1.bf16.msra.mxu0 0
      %1184 = vmatprep.mubr.bf16.mxu0 0
      %1185 = vmatmul.mubr.bf16.gmra.mrb[0].mxu0 %v1138
      %v1186 = vpop.f32.mrb[0].mxu0
      %v1187 = vadd.f32 0.0, %v1186
      %v1188 = vpop.f32.mrb[0].mxu0
      %v1189 = vadd.f32 0.0, %v1188
      %v1190 = vpop.f32.mrb[0].mxu0
      %v1191 = vadd.f32 0.0, %v1190
      %v1192 = vpop.f32.mrb[0].mxu0
      %v1193 = vadd.f32 0.0, %v1192
      %1194 = vmatprep.mubr.bf16.mxu0 0
      %1195 = vmatmul.mubr.bf16.gmra.mrb[0].mxu0 %v1141
      %v1196 = vpop.f32.mrb[0].mxu0
      %v1197 = vadd.f32 0.0, %v1196
      %v1198 = vpop.f32.mrb[0].mxu0
      %v1199 = vadd.f32 0.0, %v1198
      %v1200 = vpop.f32.mrb[0].mxu0
      %v1201 = vadd.f32 0.0, %v1200
      %v1202 = vpop.f32.mrb[0].mxu0
      %v1203 = vadd.f32 0.0, %v1202
      %1204 = vdwg.mxu0
      %1205 = vmatprep.subr.bf16.mxu0 0
      %1206 = vmatpush1.bf16.msra.mxu0 %v1150
      %1207 = vmatprep.subr.bf16.mxu0 0
      %1208 = vmatpush1.bf16.msra.mxu0 0
      %1209 = vmatprep.subr.bf16.mxu0 0
      %1210 = vmatpush1.bf16.msra.mxu0 0
      %1211 = vmatprep.subr.bf16.mxu0 0
      %1212 = vmatpush1.bf16.msra.mxu0 0
      %1213 = vmatprep.subr.bf16.mxu0 0
      %1214 = vmatpush1.bf16.msra.mxu0 0
      %1215 = vmatprep.subr.bf16.mxu0 0
      %1216 = vmatpush1.bf16.msra.mxu0 0
      %1217 = vmatprep.subr.bf16.mxu0 0
      %1218 = vmatpush1.bf16.msra.mxu0 0
      %1219 = vmatprep.subr.bf16.mxu0 0
      %1220 = vmatpush1.bf16.msra.mxu0 0
      %1221 = vmatprep.subr.bf16.mxu0 0
      %1222 = vmatpush1.bf16.msra.mxu0 0
      %1223 = vmatprep.subr.bf16.mxu0 0
      %1224 = vmatpush1.bf16.msra.mxu0 0
      %1225 = vmatprep.subr.bf16.mxu0 0
      %1226 = vmatpush1.bf16.msra.mxu0 0
      %1227 = vmatprep.subr.bf16.mxu0 0
      %1228 = vmatpush1.bf16.msra.mxu0 0
      %1229 = vmatprep.subr.bf16.mxu0 0
      %1230 = vmatpush1.bf16.msra.mxu0 0
      %1231 = vmatprep.subr.bf16.mxu0 0
      %1232 = vmatpush1.bf16.msra.mxu0 0
      %1233 = vmatprep.subr.bf16.mxu0 0
      %1234 = vmatpush1.bf16.msra.mxu0 0
      %1235 = vmatprep.subr.bf16.mxu0 0
      %1236 = vmatpush1.bf16.msra.mxu0 0
      %1237 = vmatprep.mubr.bf16.mxu0 0
      %1238 = vmatmul.mubr.bf16.gmra.mrb[0].mxu0 %v1138
      %v1239 = vpop.f32.mrb[0].mxu0
      %v1240 = vadd.f32 0.0, %v1239
      %v1241 = vpop.f32.mrb[0].mxu0
      %v1242 = vpop.f32.mrb[0].mxu0
      %v1243 = vadd.f32 0.0, %v1242
      %v1244 = vpop.f32.mrb[0].mxu0
      %1245 = vmatprep.mubr.bf16.mxu0 0
      %1246 = vmatmul.mubr.bf16.gmra.mrb[0].mxu0 %v1141
      %v1247 = vpop.f32.mrb[0].mxu0
      %v1248 = vadd.f32 0.0, %v1247
      %v1249 = vpop.f32.mrb[0].mxu0
      %v1250 = vpop.f32.mrb[0].mxu0
      %v1251 = vadd.f32 0.0, %v1250
      %v1252 = vpop.f32.mrb[0].mxu0
      %1253 = vdwg.mxu0
      %v1254 = vadd.f32 %v1083, %v1187
      %v1255 = vadd.f32 %v1084, %v1189
      %v1256 = vadd.f32 %v1085, %v1240
      %v1257 = vadd.f32 %v1086, %v1191
      %v1258 = vadd.f32 %v1087, %v1193
      %v1259 = vadd.f32 %v1088, %v1243
      %v1260 = vadd.f32 %v1089, %v1197
      %v1261 = vadd.f32 %v1090, %v1199
      %v1262 = vadd.f32 %v1091, %v1248
      %v1263 = vadd.f32 %v1092, %v1201
      %v1264 = vadd.f32 %v1093, %v1203
      %v1265 = vadd.f32 %v1094, %v1251
      %s1266 = scalar_lea.vmem %s1, 96
      %v1267 = vld [vmem:[%s1266] sm:$0xf]
      %v1268 = vld [vmem:[%s1266 + $0x4] sm:$0xf]
      %v1269 = vld [vmem:[%s1266 + $0x8] sm:$0xf]
      %v1270 = vld [vmem:[%s1266 + $0xc] sm:$0xf]
      %v1271 = vld [vmem:[%s219] sm:$0x3f]
      %v1276 = vunpack.c.l.b16 %v1267
      %v1277 = vunpack.c.l.b16 %v1268
      %v1278 = vunpack.c.l.b16 %v1269
      %v1279 = vunpack.c.l.b16 %v1270
      %v1280 = vpack.c.b16 %v1277, %v1276
      %v1281 = vpack.c.b16 %v1279, %v1278
      %v1283 = vcombine.high %v1271, %v1271
      %v1285 = vunpack.c.l.s4 1983009808
      %v1286 = vunpack.c.0.s8 %v1285
      %v1287 = vlaneseq
      %v1288 = vshrl.u32 %v1287, 7
      %v1289 = vsub.s32 %v1286, %v1288
      %v1290 = vrot.slane %v1271, %v1289
      %v1292 = vunpack.c.l.s4 1983009808
      %v1293 = vunpack.c.0.s8 %v1292
      %v1294 = vlaneseq
      %v1295 = vshrl.u32 %v1294, 7
      %v1296 = vsub.s32 %v1293, %v1295
      %v1297 = vrot.slane %v1283, %v1296
      %v1298 = vcombine.high %v1290, %v1290
      %1299 = vrot.lane.b32.xlu0 %v1290, 92
      %v1300 = vpop.permute.xlu0 %1299
      %1301 = vrot.lane.b32.xlu0 %v1298, 92
      %v1302 = vpop.permute.xlu0 %1301
      %1303 = vrot.lane.b32.xlu0 %v1297, 92
      %v1304 = vpop.permute.xlu0 %1303
      %vm1305 = vcmask 752640
      %v1306 = vsel %vm1305, %v1300, %v1302
      %v1307 = vsel %vm1305, %v1302, %v1304
      %v1309 = vsel %vm333, %v1280, 0
      %v1312 = vsel %vm333, %v1281, 0
      %v1315 = vand.u32 %v1306, %v343
      %v1318 = vand.u32 %v1307, %v343
      %v1321 = vand.u32 %v1304, %v343
      %1323 = vmatprep.subr.bf16.mxu0 %v1318
      %1324 = vmatpush1.bf16.msra.mxu0 %v1315
      %1325 = vmatprep.subr.bf16.mxu0 0
      %1326 = vmatpush1.bf16.msra.mxu0 0
      %1327 = vmatprep.subr.bf16.mxu0 0
      %1328 = vmatpush1.bf16.msra.mxu0 0
      %1329 = vmatprep.subr.bf16.mxu0 0
      %1330 = vmatpush1.bf16.msra.mxu0 0
      %1331 = vmatprep.subr.bf16.mxu0 0
      %1332 = vmatpush1.bf16.msra.mxu0 0
      %1333 = vmatprep.subr.bf16.mxu0 0
      %1334 = vmatpush1.bf16.msra.mxu0 0
      %1335 = vmatprep.subr.bf16.mxu0 0
      %1336 = vmatpush1.bf16.msra.mxu0 0
      %1337 = vmatprep.subr.bf16.mxu0 0
      %1338 = vmatpush1.bf16.msra.mxu0 0
      %1339 = vmatprep.subr.bf16.mxu0 0
      %1340 = vmatpush1.bf16.msra.mxu0 0
      %1341 = vmatprep.subr.bf16.mxu0 0
      %1342 = vmatpush1.bf16.msra.mxu0 0
      %1343 = vmatprep.subr.bf16.mxu0 0
      %1344 = vmatpush1.bf16.msra.mxu0 0
      %1345 = vmatprep.subr.bf16.mxu0 0
      %1346 = vmatpush1.bf16.msra.mxu0 0
      %1347 = vmatprep.subr.bf16.mxu0 0
      %1348 = vmatpush1.bf16.msra.mxu0 0
      %1349 = vmatprep.subr.bf16.mxu0 0
      %1350 = vmatpush1.bf16.msra.mxu0 0
      %1351 = vmatprep.subr.bf16.mxu0 0
      %1352 = vmatpush1.bf16.msra.mxu0 0
      %1353 = vmatprep.subr.bf16.mxu0 0
      %1354 = vmatpush1.bf16.msra.mxu0 0
      %1355 = vmatprep.mubr.bf16.mxu0 0
      %1356 = vmatmul.mubr.bf16.gmra.mrb[0].mxu0 %v1309
      %v1357 = vpop.f32.mrb[0].mxu0
      %v1358 = vadd.f32 0.0, %v1357
      %v1359 = vpop.f32.mrb[0].mxu0
      %v1360 = vadd.f32 0.0, %v1359
      %v1361 = vpop.f32.mrb[0].mxu0
      %v1362 = vadd.f32 0.0, %v1361
      %v1363 = vpop.f32.mrb[0].mxu0
      %v1364 = vadd.f32 0.0, %v1363
      %1365 = vmatprep.mubr.bf16.mxu0 0
      %1366 = vmatmul.mubr.bf16.gmra.mrb[0].mxu0 %v1312
      %v1367 = vpop.f32.mrb[0].mxu0
      %v1368 = vadd.f32 0.0, %v1367
      %v1369 = vpop.f32.mrb[0].mxu0
      %v1370 = vadd.f32 0.0, %v1369
      %v1371 = vpop.f32.mrb[0].mxu0
      %v1372 = vadd.f32 0.0, %v1371
      %v1373 = vpop.f32.mrb[0].mxu0
      %v1374 = vadd.f32 0.0, %v1373
      %1375 = vdwg.mxu0
      %1376 = vmatprep.subr.bf16.mxu0 0
      %1377 = vmatpush1.bf16.msra.mxu0 %v1321
      %1378 = vmatprep.subr.bf16.mxu0 0
      %1379 = vmatpush1.bf16.msra.mxu0 0
      %1380 = vmatprep.subr.bf16.mxu0 0
      %1381 = vmatpush1.bf16.msra.mxu0 0
      %1382 = vmatprep.subr.bf16.mxu0 0
      %1383 = vmatpush1.bf16.msra.mxu0 0
      %1384 = vmatprep.subr.bf16.mxu0 0
      %1385 = vmatpush1.bf16.msra.mxu0 0
      %1386 = vmatprep.subr.bf16.mxu0 0
      %1387 = vmatpush1.bf16.msra.mxu0 0
      %1388 = vmatprep.subr.bf16.mxu0 0
      %1389 = vmatpush1.bf16.msra.mxu0 0
      %1390 = vmatprep.subr.bf16.mxu0 0
      %1391 = vmatpush1.bf16.msra.mxu0 0
      %1392 = vmatprep.subr.bf16.mxu0 0
      %1393 = vmatpush1.bf16.msra.mxu0 0
      %1394 = vmatprep.subr.bf16.mxu0 0
      %1395 = vmatpush1.bf16.msra.mxu0 0
      %1396 = vmatprep.subr.bf16.mxu0 0
      %1397 = vmatpush1.bf16.msra.mxu0 0
      %1398 = vmatprep.subr.bf16.mxu0 0
      %1399 = vmatpush1.bf16.msra.mxu0 0
      %1400 = vmatprep.subr.bf16.mxu0 0
      %1401 = vmatpush1.bf16.msra.mxu0 0
      %1402 = vmatprep.subr.bf16.mxu0 0
      %1403 = vmatpush1.bf16.msra.mxu0 0
      %1404 = vmatprep.subr.bf16.mxu0 0
      %1405 = vmatpush1.bf16.msra.mxu0 0
      %1406 = vmatprep.subr.bf16.mxu0 0
      %1407 = vmatpush1.bf16.msra.mxu0 0
      %1408 = vmatprep.mubr.bf16.mxu0 0
      %1409 = vmatmul.mubr.bf16.gmra.mrb[0].mxu0 %v1309
      %v1410 = vpop.f32.mrb[0].mxu0
      %v1411 = vadd.f32 0.0, %v1410
      %v1412 = vpop.f32.mrb[0].mxu0
      %v1413 = vpop.f32.mrb[0].mxu0
      %v1414 = vadd.f32 0.0, %v1413
      %v1415 = vpop.f32.mrb[0].mxu0
      %1416 = vmatprep.mubr.bf16.mxu0 0
      %1417 = vmatmul.mubr.bf16.gmra.mrb[0].mxu0 %v1312
      %v1418 = vpop.f32.mrb[0].mxu0
      %v1419 = vadd.f32 0.0, %v1418
      %v1420 = vpop.f32.mrb[0].mxu0
      %v1421 = vpop.f32.mrb[0].mxu0
      %v1422 = vadd.f32 0.0, %v1421
      %v1423 = vpop.f32.mrb[0].mxu0
      %1424 = vdwg.mxu0
      %v1425 = vadd.f32 %v1254, %v1358
      %v1426 = vadd.f32 %v1255, %v1360
      %v1427 = vadd.f32 %v1256, %v1411
      %v1428 = vadd.f32 %v1257, %v1362
      %v1429 = vadd.f32 %v1258, %v1364
      %v1430 = vadd.f32 %v1259, %v1414
      %v1431 = vadd.f32 %v1260, %v1368
      %v1432 = vadd.f32 %v1261, %v1370
      %v1433 = vadd.f32 %v1262, %v1419
      %v1434 = vadd.f32 %v1263, %v1372
      %v1435 = vadd.f32 %v1264, %v1374
      %v1436 = vadd.f32 %v1265, %v1422
      %s1437 = scalar_lea.vmem %s1, 112
      %v1438 = vld [vmem:[%s1437] sm:$0xf]
      %v1439 = vld [vmem:[%s1437 + $0x4] sm:$0xf]
      %v1440 = vld [vmem:[%s1437 + $0x8] sm:$0xf]
      %v1441 = vld [vmem:[%s1437 + $0xc] sm:$0xf]
      %v1442 = vld [vmem:[%s219] sm:$0x3f]
      %v1447 = vunpack.c.l.b16 %v1438
      %v1448 = vunpack.c.l.b16 %v1439
      %v1449 = vunpack.c.l.b16 %v1440
      %v1450 = vunpack.c.l.b16 %v1441
      %v1451 = vpack.c.b16 %v1448, %v1447
      %v1452 = vpack.c.b16 %v1450, %v1449
      %v1454 = vcombine.high %v1442, %v1442
      %v1456 = vunpack.c.l.s4 1983009808
      %v1457 = vunpack.c.0.s8 %v1456
      %v1458 = vlaneseq
      %v1459 = vshrl.u32 %v1458, 7
      %v1460 = vsub.s32 %v1457, %v1459
      %v1461 = vrot.slane %v1442, %v1460
      %v1463 = vunpack.c.l.s4 1983009808
      %v1464 = vunpack.c.0.s8 %v1463
      %v1465 = vlaneseq
      %v1466 = vshrl.u32 %v1465, 7
      %v1467 = vsub.s32 %v1464, %v1466
      %v1468 = vrot.slane %v1454, %v1467
      %v1469 = vcombine.high %v1461, %v1461
      %1470 = vrot.lane.b32.xlu0 %v1461, 91
      %v1471 = vpop.permute.xlu0 %1470
      %1472 = vrot.lane.b32.xlu0 %v1469, 91
      %v1473 = vpop.permute.xlu0 %1472
      %1474 = vrot.lane.b32.xlu0 %v1468, 91
      %v1475 = vpop.permute.xlu0 %1474
      %vm1476 = vcmask 744448
      %v1477 = vsel %vm1476, %v1471, %v1473
      %v1478 = vsel %vm1476, %v1473, %v1475
      %v1480 = vsel %vm333, %v1451, 0
      %v1483 = vsel %vm333, %v1452, 0
      %v1486 = vand.u32 %v1477, %v343
      %v1489 = vand.u32 %v1478, %v343
      %v1492 = vand.u32 %v1475, %v343
      %1494 = vmatprep.subr.bf16.mxu0 %v1489
      %1495 = vmatpush1.bf16.msra.mxu0 %v1486
      %1496 = vmatprep.subr.bf16.mxu0 0
      %1497 = vmatpush1.bf16.msra.mxu0 0
      %1498 = vmatprep.subr.bf16.mxu0 0
      %1499 = vmatpush1.bf16.msra.mxu0 0
      %1500 = vmatprep.subr.bf16.mxu0 0
      %1501 = vmatpush1.bf16.msra.mxu0 0
      %1502 = vmatprep.subr.bf16.mxu0 0
      %1503 = vmatpush1.bf16.msra.mxu0 0
      %1504 = vmatprep.subr.bf16.mxu0 0
      %1505 = vmatpush1.bf16.msra.mxu0 0
      %1506 = vmatprep.subr.bf16.mxu0 0
      %1507 = vmatpush1.bf16.msra.mxu0 0
      %1508 = vmatprep.subr.bf16.mxu0 0
      %1509 = vmatpush1.bf16.msra.mxu0 0
      %1510 = vmatprep.subr.bf16.mxu0 0
      %1511 = vmatpush1.bf16.msra.mxu0 0
      %1512 = vmatprep.subr.bf16.mxu0 0
      %1513 = vmatpush1.bf16.msra.mxu0 0
      %1514 = vmatprep.subr.bf16.mxu0 0
      %1515 = vmatpush1.bf16.msra.mxu0 0
      %1516 = vmatprep.subr.bf16.mxu0 0
      %1517 = vmatpush1.bf16.msra.mxu0 0
      %1518 = vmatprep.subr.bf16.mxu0 0
      %1519 = vmatpush1.bf16.msra.mxu0 0
      %1520 = vmatprep.subr.bf16.mxu0 0
      %1521 = vmatpush1.bf16.msra.mxu0 0
      %1522 = vmatprep.subr.bf16.mxu0 0
      %1523 = vmatpush1.bf16.msra.mxu0 0
      %1524 = vmatprep.subr.bf16.mxu0 0
      %1525 = vmatpush1.bf16.msra.mxu0 0
      %1526 = vmatprep.mubr.bf16.mxu0 0
      %1527 = vmatmul.mubr.bf16.gmra.mrb[0].mxu0 %v1480
      %v1528 = vpop.f32.mrb[0].mxu0
      %v1529 = vadd.f32 0.0, %v1528
      %v1530 = vpop.f32.mrb[0].mxu0
      %v1531 = vadd.f32 0.0, %v1530
      %v1532 = vpop.f32.mrb[0].mxu0
      %v1533 = vadd.f32 0.0, %v1532
      %v1534 = vpop.f32.mrb[0].mxu0
      %v1535 = vadd.f32 0.0, %v1534
      %1536 = vmatprep.mubr.bf16.mxu0 0
      %1537 = vmatmul.mubr.bf16.gmra.mrb[0].mxu0 %v1483
      %v1538 = vpop.f32.mrb[0].mxu0
      %v1539 = vadd.f32 0.0, %v1538
      %v1540 = vpop.f32.mrb[0].mxu0
      %v1541 = vadd.f32 0.0, %v1540
      %v1542 = vpop.f32.mrb[0].mxu0
      %v1543 = vadd.f32 0.0, %v1542
      %v1544 = vpop.f32.mrb[0].mxu0
      %v1545 = vadd.f32 0.0, %v1544
      %1546 = vdwg.mxu0
      %1547 = vmatprep.subr.bf16.mxu0 0
      %1548 = vmatpush1.bf16.msra.mxu0 %v1492
      %1549 = vmatprep.subr.bf16.mxu0 0
      %1550 = vmatpush1.bf16.msra.mxu0 0
      %1551 = vmatprep.subr.bf16.mxu0 0
      %1552 = vmatpush1.bf16.msra.mxu0 0
      %1553 = vmatprep.subr.bf16.mxu0 0
      %1554 = vmatpush1.bf16.msra.mxu0 0
      %1555 = vmatprep.subr.bf16.mxu0 0
      %1556 = vmatpush1.bf16.msra.mxu0 0
      %1557 = vmatprep.subr.bf16.mxu0 0
      %1558 = vmatpush1.bf16.msra.mxu0 0
      %1559 = vmatprep.subr.bf16.mxu0 0
      %1560 = vmatpush1.bf16.msra.mxu0 0
      %1561 = vmatprep.subr.bf16.mxu0 0
      %1562 = vmatpush1.bf16.msra.mxu0 0
      %1563 = vmatprep.subr.bf16.mxu0 0
      %1564 = vmatpush1.bf16.msra.mxu0 0
      %1565 = vmatprep.subr.bf16.mxu0 0
      %1566 = vmatpush1.bf16.msra.mxu0 0
      %1567 = vmatprep.subr.bf16.mxu0 0
      %1568 = vmatpush1.bf16.msra.mxu0 0
      %1569 = vmatprep.subr.bf16.mxu0 0
      %1570 = vmatpush1.bf16.msra.mxu0 0
      %1571 = vmatprep.subr.bf16.mxu0 0
      %1572 = vmatpush1.bf16.msra.mxu0 0
      %1573 = vmatprep.subr.bf16.mxu0 0
      %1574 = vmatpush1.bf16.msra.mxu0 0
      %1575 = vmatprep.subr.bf16.mxu0 0
      %1576 = vmatpush1.bf16.msra.mxu0 0
      %1577 = vmatprep.subr.bf16.mxu0 0
      %1578 = vmatpush1.bf16.msra.mxu0 0
      %1579 = vmatprep.mubr.bf16.mxu0 0
      %1580 = vmatmul.mubr.bf16.gmra.mrb[0].mxu0 %v1480
      %v1581 = vpop.f32.mrb[0].mxu0
      %v1582 = vadd.f32 0.0, %v1581
      %v1583 = vpop.f32.mrb[0].mxu0
      %v1584 = vpop.f32.mrb[0].mxu0
      %v1585 = vadd.f32 0.0, %v1584
      %v1586 = vpop.f32.mrb[0].mxu0
      %1587 = vmatprep.mubr.bf16.mxu0 0
      %1588 = vmatmul.mubr.bf16.gmra.mrb[0].mxu0 %v1483
      %v1589 = vpop.f32.mrb[0].mxu0
      %v1590 = vadd.f32 0.0, %v1589
      %v1591 = vpop.f32.mrb[0].mxu0
      %v1592 = vpop.f32.mrb[0].mxu0
      %v1593 = vadd.f32 0.0, %v1592
      %v1594 = vpop.f32.mrb[0].mxu0
      %1595 = vdwg.mxu0
      %v1596 = vadd.f32 %v1425, %v1529
      %v1597 = vadd.f32 %v1426, %v1531
      %v1598 = vadd.f32 %v1427, %v1582
      %v1599 = vadd.f32 %v1428, %v1533
      %v1600 = vadd.f32 %v1429, %v1535
      %v1601 = vadd.f32 %v1430, %v1585
      %v1602 = vadd.f32 %v1431, %v1539
      %v1603 = vadd.f32 %v1432, %v1541
      %v1604 = vadd.f32 %v1433, %v1590
      %v1605 = vadd.f32 %v1434, %v1543
      %v1606 = vadd.f32 %v1435, %v1545
      %v1607 = vadd.f32 %v1436, %v1593
      %s1608 = scalar_lea.vmem %s1, 128
      %v1609 = vld [vmem:[%s1608] sm:$0xf]
      %v1610 = vld [vmem:[%s1608 + $0x4] sm:$0xf]
      %v1611 = vld [vmem:[%s1608 + $0x8] sm:$0xf]
      %v1612 = vld [vmem:[%s1608 + $0xc] sm:$0xf]
      %v1613 = vld [vmem:[%s219] sm:$0x3f]
      %v1618 = vunpack.c.l.b16 %v1609
      %v1619 = vunpack.c.l.b16 %v1610
      %v1620 = vunpack.c.l.b16 %v1611
      %v1621 = vunpack.c.l.b16 %v1612
      %v1622 = vpack.c.b16 %v1619, %v1618
      %v1623 = vpack.c.b16 %v1621, %v1620
      %v1625 = vcombine.high %v1613, %v1613
      %v1627 = vunpack.c.l.s4 1983009808
      %v1628 = vunpack.c.0.s8 %v1627
      %v1629 = vlaneseq
      %v1630 = vshrl.u32 %v1629, 7
      %v1631 = vsub.s32 %v1628, %v1630
      %v1632 = vrot.slane %v1613, %v1631
      %v1634 = vunpack.c.l.s4 1983009808
      %v1635 = vunpack.c.0.s8 %v1634
      %v1636 = vlaneseq
      %v1637 = vshrl.u32 %v1636, 7
      %v1638 = vsub.s32 %v1635, %v1637
      %v1639 = vrot.slane %v1625, %v1638
      %v1640 = vcombine.high %v1632, %v1632
      %1641 = vrot.lane.b32.xlu0 %v1632, 90
      %v1642 = vpop.permute.xlu0 %1641
      %1643 = vrot.lane.b32.xlu0 %v1640, 90
      %v1644 = vpop.permute.xlu0 %1643
      %1645 = vrot.lane.b32.xlu0 %v1639, 90
      %v1646 = vpop.permute.xlu0 %1645
      %vm1647 = vcmask 736256
      %v1648 = vsel %vm1647, %v1642, %v1644
      %v1649 = vsel %vm1647, %v1644, %v1646
      %v1651 = vsel %vm333, %v1622, 0
      %v1654 = vsel %vm333, %v1623, 0
      %v1657 = vand.u32 %v1648, %v343
      %v1660 = vand.u32 %v1649, %v343
      %v1663 = vand.u32 %v1646, %v343
      %1665 = vmatprep.subr.bf16.mxu0 %v1660
      %1666 = vmatpush1.bf16.msra.mxu0 %v1657
      %1667 = vmatprep.subr.bf16.mxu0 0
      %1668 = vmatpush1.bf16.msra.mxu0 0
      %1669 = vmatprep.subr.bf16.mxu0 0
      %1670 = vmatpush1.bf16.msra.mxu0 0
      %1671 = vmatprep.subr.bf16.mxu0 0
      %1672 = vmatpush1.bf16.msra.mxu0 0
      %1673 = vmatprep.subr.bf16.mxu0 0
      %1674 = vmatpush1.bf16.msra.mxu0 0
      %1675 = vmatprep.subr.bf16.mxu0 0
      %1676 = vmatpush1.bf16.msra.mxu0 0
      %1677 = vmatprep.subr.bf16.mxu0 0
      %1678 = vmatpush1.bf16.msra.mxu0 0
      %1679 = vmatprep.subr.bf16.mxu0 0
      %1680 = vmatpush1.bf16.msra.mxu0 0
      %1681 = vmatprep.subr.bf16.mxu0 0
      %1682 = vmatpush1.bf16.msra.mxu0 0
      %1683 = vmatprep.subr.bf16.mxu0 0
      %1684 = vmatpush1.bf16.msra.mxu0 0
      %1685 = vmatprep.subr.bf16.mxu0 0
      %1686 = vmatpush1.bf16.msra.mxu0 0
      %1687 = vmatprep.subr.bf16.mxu0 0
      %1688 = vmatpush1.bf16.msra.mxu0 0
      %1689 = vmatprep.subr.bf16.mxu0 0
      %1690 = vmatpush1.bf16.msra.mxu0 0
      %1691 = vmatprep.subr.bf16.mxu0 0
      %1692 = vmatpush1.bf16.msra.mxu0 0
      %1693 = vmatprep.subr.bf16.mxu0 0
      %1694 = vmatpush1.bf16.msra.mxu0 0
      %1695 = vmatprep.subr.bf16.mxu0 0
      %1696 = vmatpush1.bf16.msra.mxu0 0
      %1697 = vmatprep.mubr.bf16.mxu0 0
      %1698 = vmatmul.mubr.bf16.gmra.mrb[0].mxu0 %v1651
      %v1699 = vpop.f32.mrb[0].mxu0
      %v1700 = vadd.f32 0.0, %v1699
      %v1701 = vpop.f32.mrb[0].mxu0
      %v1702 = vadd.f32 0.0, %v1701
      %v1703 = vpop.f32.mrb[0].mxu0
      %v1704 = vadd.f32 0.0, %v1703
      %v1705 = vpop.f32.mrb[0].mxu0
      %v1706 = vadd.f32 0.0, %v1705
      %1707 = vmatprep.mubr.bf16.mxu0 0
      %1708 = vmatmul.mubr.bf16.gmra.mrb[0].mxu0 %v1654
      %v1709 = vpop.f32.mrb[0].mxu0
      %v1710 = vadd.f32 0.0, %v1709
      %v1711 = vpop.f32.mrb[0].mxu0
      %v1712 = vadd.f32 0.0, %v1711
      %v1713 = vpop.f32.mrb[0].mxu0
      %v1714 = vadd.f32 0.0, %v1713
      %v1715 = vpop.f32.mrb[0].mxu0
      %v1716 = vadd.f32 0.0, %v1715
      %1717 = vdwg.mxu0
      %1718 = vmatprep.subr.bf16.mxu0 0
      %1719 = vmatpush1.bf16.msra.mxu0 %v1663
      %1720 = vmatprep.subr.bf16.mxu0 0
      %1721 = vmatpush1.bf16.msra.mxu0 0
      %1722 = vmatprep.subr.bf16.mxu0 0
      %1723 = vmatpush1.bf16.msra.mxu0 0
      %1724 = vmatprep.subr.bf16.mxu0 0
      %1725 = vmatpush1.bf16.msra.mxu0 0
      %1726 = vmatprep.subr.bf16.mxu0 0
      %1727 = vmatpush1.bf16.msra.mxu0 0
      %1728 = vmatprep.subr.bf16.mxu0 0
      %1729 = vmatpush1.bf16.msra.mxu0 0
      %1730 = vmatprep.subr.bf16.mxu0 0
      %1731 = vmatpush1.bf16.msra.mxu0 0
      %1732 = vmatprep.subr.bf16.mxu0 0
      %1733 = vmatpush1.bf16.msra.mxu0 0
      %1734 = vmatprep.subr.bf16.mxu0 0
      %1735 = vmatpush1.bf16.msra.mxu0 0
      %1736 = vmatprep.subr.bf16.mxu0 0
      %1737 = vmatpush1.bf16.msra.mxu0 0
      %1738 = vmatprep.subr.bf16.mxu0 0
      %1739 = vmatpush1.bf16.msra.mxu0 0
      %1740 = vmatprep.subr.bf16.mxu0 0
      %1741 = vmatpush1.bf16.msra.mxu0 0
      %1742 = vmatprep.subr.bf16.mxu0 0
      %1743 = vmatpush1.bf16.msra.mxu0 0
      %1744 = vmatprep.subr.bf16.mxu0 0
      %1745 = vmatpush1.bf16.msra.mxu0 0
      %1746 = vmatprep.subr.bf16.mxu0 0
      %1747 = vmatpush1.bf16.msra.mxu0 0
      %1748 = vmatprep.subr.bf16.mxu0 0
      %1749 = vmatpush1.bf16.msra.mxu0 0
      %1750 = vmatprep.mubr.bf16.mxu0 0
      %1751 = vmatmul.mubr.bf16.gmra.mrb[0].mxu0 %v1651
      %v1752 = vpop.f32.mrb[0].mxu0
      %v1753 = vadd.f32 0.0, %v1752
      %v1754 = vpop.f32.mrb[0].mxu0
      %v1755 = vpop.f32.mrb[0].mxu0
      %v1756 = vadd.f32 0.0, %v1755
      %v1757 = vpop.f32.mrb[0].mxu0
      %1758 = vmatprep.mubr.bf16.mxu0 0
      %1759 = vmatmul.mubr.bf16.gmra.mrb[0].mxu0 %v1654
      %v1760 = vpop.f32.mrb[0].mxu0
      %v1761 = vadd.f32 0.0, %v1760
      %v1762 = vpop.f32.mrb[0].mxu0
      %v1763 = vpop.f32.mrb[0].mxu0
      %v1764 = vadd.f32 0.0, %v1763
      %v1765 = vpop.f32.mrb[0].mxu0
      %1766 = vdwg.mxu0
      %v1767 = vadd.f32 %v1596, %v1700
      %v1768 = vadd.f32 %v1597, %v1702
      %v1769 = vadd.f32 %v1598, %v1753
      %v1770 = vadd.f32 %v1599, %v1704
      %v1771 = vadd.f32 %v1600, %v1706
      %v1772 = vadd.f32 %v1601, %v1756
      %v1773 = vadd.f32 %v1602, %v1710
      %v1774 = vadd.f32 %v1603, %v1712
      %v1775 = vadd.f32 %v1604, %v1761
      %v1776 = vadd.f32 %v1605, %v1714
      %v1777 = vadd.f32 %v1606, %v1716
      %v1778 = vadd.f32 %v1607, %v1764
      %v1779 = vld [vmem:[%s2] sm:$0xff]
      %v1780 = vld [vmem:[%s2 + $0x8] sm:$0xff]
      %v1781 = vld [vmem:[%s2 + $0x10] sm:$0xff]
      %v1782 = vld [vmem:[%s2 + $0x18] sm:$0xff]
      %1784 = vset.pattern.permute.xlu0 0
      %1785 = vperm.xlu0 %1784, %v1779
      %v1786 = vpop.permute.xlu0 %1785
      %1789 = vset.pattern.permute.xlu0 0
      %1790 = vperm.xlu0 %1789, %v1780
      %v1791 = vpop.permute.xlu0 %1790
      %1794 = vset.pattern.permute.xlu0 0
      %1795 = vperm.xlu0 %1794, %v1781
      %v1796 = vpop.permute.xlu0 %1795
      %1799 = vset.pattern.permute.xlu0 0
      %1800 = vperm.xlu0 %1799, %v1782
      %v1801 = vpop.permute.xlu0 %1800
      %v1803 = vadd.f32 %v1767, %v1786
      %v1804 = vadd.f32 %v1768, %v1786
      %v1805 = vadd.f32 %v1769, %v1786
      %v1806 = vadd.f32 %v1770, %v1791
      %v1807 = vadd.f32 %v1771, %v1791
      %v1808 = vadd.f32 %v1772, %v1791
      %v1809 = vadd.f32 %v1773, %v1796
      %v1810 = vadd.f32 %v1774, %v1796
      %v1811 = vadd.f32 %v1775, %v1796
      %v1812 = vadd.f32 %v1776, %v1801
      %v1813 = vadd.f32 %v1777, %v1801
      %v1814 = vadd.f32 %v1778, %v1801
      %vm1815 = vcmp.ge.f32.partialorder %v1803, 0.0
      %vm1816 = vcmp.ge.f32.partialorder %v1804, 0.0
      %vm1817 = vcmp.ge.f32.partialorder %v1805, 0.0
      %vm1818 = vcmp.ge.f32.partialorder %v1806, 0.0
      %vm1819 = vcmp.ge.f32.partialorder %v1807, 0.0
      %vm1820 = vcmp.ge.f32.partialorder %v1808, 0.0
      %vm1821 = vcmp.ge.f32.partialorder %v1809, 0.0
      %vm1822 = vcmp.ge.f32.partialorder %v1810, 0.0
      %vm1823 = vcmp.ge.f32.partialorder %v1811, 0.0
      %vm1824 = vcmp.ge.f32.partialorder %v1812, 0.0
      %vm1825 = vcmp.ge.f32.partialorder %v1813, 0.0
      %vm1826 = vcmp.ge.f32.partialorder %v1814, 0.0
      %v1827 = vmul.f32 %v1803, 0.1
      %v1828 = vmul.f32 %v1804, 0.1
      %v1829 = vmul.f32 %v1805, 0.1
      %v1830 = vmul.f32 %v1806, 0.1
      %v1831 = vmul.f32 %v1807, 0.1
      %v1832 = vmul.f32 %v1808, 0.1
      %v1833 = vmul.f32 %v1809, 0.1
      %v1834 = vmul.f32 %v1810, 0.1
      %v1835 = vmul.f32 %v1811, 0.1
      %v1836 = vmul.f32 %v1812, 0.1
      %v1837 = vmul.f32 %v1813, 0.1
      %v1838 = vmul.f32 %v1814, 0.1
      %v1839 = vsel %vm1815, %v1803, %v1827
      %v1840 = vsel %vm1816, %v1804, %v1828
      %v1841 = vsel %vm1817, %v1805, %v1829
      %v1842 = vsel %vm1818, %v1806, %v1830
      %v1843 = vsel %vm1819, %v1807, %v1831
      %v1844 = vsel %vm1820, %v1808, %v1832
      %v1845 = vsel %vm1821, %v1809, %v1833
      %v1846 = vsel %vm1822, %v1810, %v1834
      %v1847 = vsel %vm1823, %v1811, %v1835
      %v1848 = vsel %vm1824, %v1812, %v1836
      %v1849 = vsel %vm1825, %v1813, %v1837
      %v1850 = vsel %vm1826, %v1814, %v1838
      %v1851 = vsel %vm278, 1, 0
      %v1852 = vsel %vm279, 1, 0
      %v1853 = vsel %vm280, 1, 0
      %vm1854 = vcmp.eq.s32.totalorder %v1851, 1
      %vm1855 = vcmp.eq.s32.totalorder %v1852, 1
      %vm1856 = vcmp.eq.s32.totalorder %v1853, 1
      %v1857 = vsel %vm1854, %v1839, 0.0
      %v1858 = vsel %vm1855, %v1840, 0.0
      %v1859 = vsel %vm1856, %v1841, 0.0
      %v1860 = vsel %vm1854, %v1842, 0.0
      %v1861 = vsel %vm1855, %v1843, 0.0
      %v1862 = vsel %vm1856, %v1844, 0.0
      %v1863 = vsel %vm1854, %v1845, 0.0
      %v1864 = vsel %vm1855, %v1846, 0.0
      %v1865 = vsel %vm1856, %v1847, 0.0
      %v1866 = vsel %vm1854, %v1848, 0.0
      %v1867 = vsel %vm1855, %v1849, 0.0
      %v1868 = vsel %vm1856, %v1850, 0.0
      %v1869 = vpack.c.bf16 %v1860, %v1857
      %v1870 = vpack.c.bf16 %v1861, %v1858
      %v1871 = vpack.c.bf16 %v1862, %v1859
      %v1872 = vpack.c.bf16 %v1866, %v1863
      %v1873 = vpack.c.bf16 %v1867, %v1864
      %v1874 = vpack.c.bf16 %v1868, %v1865
      %1881 = vrot.lane.b32.xlu0 %v1869, 19
      %v1882 = vpop.permute.xlu0 %1881
      %1883 = vrot.lane.b32.xlu0 %v1870, 19
      %v1884 = vpop.permute.xlu0 %1883
      %1885 = vrot.lane.b32.xlu0 %v1871, 19
      %v1886 = vpop.permute.xlu0 %1885
      %1887 = vrot.lane.b32.xlu0 %v1872, 19
      %v1888 = vpop.permute.xlu0 %1887
      %1889 = vrot.lane.b32.xlu0 %v1873, 19
      %v1890 = vpop.permute.xlu0 %1889
      %1891 = vrot.lane.b32.xlu0 %v1874, 19
      %v1892 = vpop.permute.xlu0 %1891
      %vm1893 = vcmask 154624
      %v1894 = vsel %vm1893, %v1882, %v1884
      %v1895 = vsel %vm1893, %v1884, %v1886
      %v1896 = vsel %vm1893, %v1888, %v1890
      %v1897 = vsel %vm1893, %v1890, %v1892
      %vm1904 = vcmask 1047704
      %1905 = vst.msk [vmem:[#allocation2] sm:$0xff] %vm1904, %v1882
      %1906 = vst [vmem:[#allocation2 + $0x8] sm:$0xff] %v1894
      %vm1907 = vcmask 416768
      %1908 = vst.msk [vmem:[#allocation2 + $0x10] sm:$0xff] %vm1907, %v1895
      %1909 = vst.msk [vmem:[#allocation2 + $0x18] sm:$0xff] %vm1904, %v1888
      %1910 = vst [vmem:[#allocation2 + $0x20] sm:$0xff] %v1896
      %1911 = vst.msk [vmem:[#allocation2 + $0x28] sm:$0xff] %vm1907, %v1897
      %v1912 = vld [vmem:[%s3] sm:$0xf]
      %v1913 = vld [vmem:[%s3 + $0x4] sm:$0xf]
      %v1914 = vld [vmem:[%s3 + $0x8] sm:$0xf]
      %v1915 = vld [vmem:[%s3 + $0xc] sm:$0xf]
      %v1916 = vld [vmem:[#allocation2] sm:$0xff]
      %v1917 = vld [vmem:[#allocation2 + $0x8] sm:$0xff]
      %v1918 = vld [vmem:[#allocation2 + $0x10] sm:$0xff]
      %v1919 = vld [vmem:[#allocation2 + $0x18] sm:$0xff]
      %v1920 = vld [vmem:[#allocation2 + $0x20] sm:$0xff]
      %v1921 = vld [vmem:[#allocation2 + $0x28] sm:$0xff]
      %s1922 = scalar_lea.vmem %s3, 16
      %v1923 = vld [vmem:[%s1922] sm:$0xf]
      %v1924 = vld [vmem:[%s1922 + $0x4] sm:$0xf]
      %v1925 = vld [vmem:[%s1922 + $0x8] sm:$0xf]
      %v1926 = vld [vmem:[%s1922 + $0xc] sm:$0xf]
      %v1931 = vunpack.c.l.b16 %v1923
      %v1932 = vunpack.c.l.b16 %v1924
      %v1933 = vunpack.c.l.b16 %v1925
      %v1934 = vunpack.c.l.b16 %v1926
      %v1935 = vpack.c.b16 %v1932, %v1931
      %v1936 = vpack.c.b16 %v1934, %v1933
      %1943 = vrot.lane.b32.xlu0 %v1916, 127
      %v1944 = vpop.permute.xlu0 %1943
      %1945 = vrot.lane.b32.xlu0 %v1917, 127
      %v1946 = vpop.permute.xlu0 %1945
      %1947 = vrot.lane.b32.xlu0 %v1918, 127
      %v1948 = vpop.permute.xlu0 %1947
      %1949 = vrot.lane.b32.xlu0 %v1919, 127
      %v1950 = vpop.permute.xlu0 %1949
      %1951 = vrot.lane.b32.xlu0 %v1920, 127
      %v1952 = vpop.permute.xlu0 %1951
      %1953 = vrot.lane.b32.xlu0 %v1921, 127
      %v1954 = vpop.permute.xlu0 %1953
      %v1955 = vsel %vm330, %v1944, %v1946
      %v1956 = vsel %vm330, %v1946, %v1948
      %v1957 = vsel %vm330, %v1950, %v1952
      %v1958 = vsel %vm330, %v1952, %v1954
      %vm1965 = vcmask 261120
      %v1967 = vsel %vm1965, %v1935, 0
      %v1970 = vsel %vm1965, %v1936, 0
      %1972 = vmatprep.subr.bf16.mxu0 %v1956
      %1973 = vmatpush1.bf16.msra.mxu0 %v1955
      %1974 = vmatprep.subr.bf16.mxu0 %v1958
      %1975 = vmatpush1.bf16.msra.mxu0 %v1957
      %1976 = vmatprep.subr.bf16.mxu0 0
      %1977 = vmatpush1.bf16.msra.mxu0 0
      %1978 = vmatprep.subr.bf16.mxu0 0
      %1979 = vmatpush1.bf16.msra.mxu0 0
      %1980 = vmatprep.subr.bf16.mxu0 0
      %1981 = vmatpush1.bf16.msra.mxu0 0
      %1982 = vmatprep.subr.bf16.mxu0 0
      %1983 = vmatpush1.bf16.msra.mxu0 0
      %1984 = vmatprep.subr.bf16.mxu0 0
      %1985 = vmatpush1.bf16.msra.mxu0 0
      %1986 = vmatprep.subr.bf16.mxu0 0
      %1987 = vmatpush1.bf16.msra.mxu0 0
      %1988 = vmatprep.subr.bf16.mxu0 0
      %1989 = vmatpush1.bf16.msra.mxu0 0
      %1990 = vmatprep.subr.bf16.mxu0 0
      %1991 = vmatpush1.bf16.msra.mxu0 0
      %1992 = vmatprep.subr.bf16.mxu0 0
      %1993 = vmatpush1.bf16.msra.mxu0 0
      %1994 = vmatprep.subr.bf16.mxu0 0
      %1995 = vmatpush1.bf16.msra.mxu0 0
      %1996 = vmatprep.subr.bf16.mxu0 0
      %1997 = vmatpush1.bf16.msra.mxu0 0
      %1998 = vmatprep.subr.bf16.mxu0 0
      %1999 = vmatpush1.bf16.msra.mxu0 0
      %2000 = vmatprep.subr.bf16.mxu0 0
      %2001 = vmatpush1.bf16.msra.mxu0 0
      %2002 = vmatprep.subr.bf16.mxu0 0
      %2003 = vmatpush1.bf16.msra.mxu0 0
      %2004 = vmatprep.mubr.bf16.mxu0 0
      %2005 = vmatmul.mubr.bf16.gmra.mrb[0].mxu0 %v1967
      %v2006 = vpop.f32.mrb[0].mxu0
      %v2007 = vadd.f32 0.0, %v2006
      %v2008 = vpop.f32.mrb[0].mxu0
      %v2009 = vadd.f32 0.0, %v2008
      %v2010 = vpop.f32.mrb[0].mxu0
      %v2011 = vadd.f32 0.0, %v2010
      %v2012 = vpop.f32.mrb[0].mxu0
      %v2013 = vadd.f32 0.0, %v2012
      %2014 = vmatprep.mubr.bf16.mxu0 0
      %2015 = vmatmul.mubr.bf16.gmra.mrb[0].mxu0 %v1970
      %v2016 = vpop.f32.mrb[0].mxu0
      %v2017 = vadd.f32 0.0, %v2016
      %v2018 = vpop.f32.mrb[0].mxu0
      %v2019 = vadd.f32 0.0, %v2018
      %v2020 = vpop.f32.mrb[0].mxu0
      %v2021 = vadd.f32 0.0, %v2020
      %v2022 = vpop.f32.mrb[0].mxu0
      %v2023 = vadd.f32 0.0, %v2022
      %2024 = vdwg.mxu0
      %2025 = vmatprep.subr.bf16.mxu0 0
      %2026 = vmatpush1.bf16.msra.mxu0 %v1948
      %2027 = vmatprep.subr.bf16.mxu0 0
      %2028 = vmatpush1.bf16.msra.mxu0 %v1954
      %2029 = vmatprep.subr.bf16.mxu0 0
      %2030 = vmatpush1.bf16.msra.mxu0 0
      %2031 = vmatprep.subr.bf16.mxu0 0
      %2032 = vmatpush1.bf16.msra.mxu0 0
      %2033 = vmatprep.subr.bf16.mxu0 0
      %2034 = vmatpush1.bf16.msra.mxu0 0
      %2035 = vmatprep.subr.bf16.mxu0 0
      %2036 = vmatpush1.bf16.msra.mxu0 0
      %2037 = vmatprep.subr.bf16.mxu0 0
      %2038 = vmatpush1.bf16.msra.mxu0 0
      %2039 = vmatprep.subr.bf16.mxu0 0
      %2040 = vmatpush1.bf16.msra.mxu0 0
      %2041 = vmatprep.subr.bf16.mxu0 0
      %2042 = vmatpush1.bf16.msra.mxu0 0
      %2043 = vmatprep.subr.bf16.mxu0 0
      %2044 = vmatpush1.bf16.msra.mxu0 0
      %2045 = vmatprep.subr.bf16.mxu0 0
      %2046 = vmatpush1.bf16.msra.mxu0 0
      %2047 = vmatprep.subr.bf16.mxu0 0
      %2048 = vmatpush1.bf16.msra.mxu0 0
      %2049 = vmatprep.subr.bf16.mxu0 0
      %2050 = vmatpush1.bf16.msra.mxu0 0
      %2051 = vmatprep.subr.bf16.mxu0 0
      %2052 = vmatpush1.bf16.msra.mxu0 0
      %2053 = vmatprep.subr.bf16.mxu0 0
      %2054 = vmatpush1.bf16.msra.mxu0 0
      %2055 = vmatprep.subr.bf16.mxu0 0
      %2056 = vmatpush1.bf16.msra.mxu0 0
      %2057 = vmatprep.mubr.bf16.mxu0 0
      %2058 = vmatmul.mubr.bf16.gmra.mrb[0].mxu0 %v1967
      %v2059 = vpop.f32.mrb[0].mxu0
      %v2060 = vadd.f32 0.0, %v2059
      %v2061 = vpop.f32.mrb[0].mxu0
      %v2062 = vpop.f32.mrb[0].mxu0
      %v2063 = vadd.f32 0.0, %v2062
      %v2064 = vpop.f32.mrb[0].mxu0
      %2065 = vmatprep.mubr.bf16.mxu0 0
      %2066 = vmatmul.mubr.bf16.gmra.mrb[0].mxu0 %v1970
      %v2067 = vpop.f32.mrb[0].mxu0
      %v2068 = vadd.f32 0.0, %v2067
      %v2069 = vpop.f32.mrb[0].mxu0
      %v2070 = vpop.f32.mrb[0].mxu0
      %v2071 = vadd.f32 0.0, %v2070
      %v2072 = vpop.f32.mrb[0].mxu0
      %2073 = vdwg.mxu0
      %v2078 = vunpack.c.l.b16 %v1912
      %v2079 = vunpack.c.l.b16 %v1913
      %v2080 = vunpack.c.l.b16 %v1914
      %v2081 = vunpack.c.l.b16 %v1915
      %v2082 = vpack.c.b16 %v2079, %v2078
      %v2083 = vpack.c.b16 %v2081, %v2080
      %v2085 = vsel %vm1965, %v2082, 0
      %v2088 = vsel %vm1965, %v2083, 0
      %2090 = vmatprep.subr.bf16.mxu0 %v1917
      %2091 = vmatpush1.bf16.msra.mxu0 %v1916
      %2092 = vmatprep.subr.bf16.mxu0 %v1920
      %2093 = vmatpush1.bf16.msra.mxu0 %v1919
      %2094 = vmatprep.subr.bf16.mxu0 0
      %2095 = vmatpush1.bf16.msra.mxu0 0
      %2096 = vmatprep.subr.bf16.mxu0 0
      %2097 = vmatpush1.bf16.msra.mxu0 0
      %2098 = vmatprep.subr.bf16.mxu0 0
      %2099 = vmatpush1.bf16.msra.mxu0 0
      %2100 = vmatprep.subr.bf16.mxu0 0
      %2101 = vmatpush1.bf16.msra.mxu0 0
      %2102 = vmatprep.subr.bf16.mxu0 0
      %2103 = vmatpush1.bf16.msra.mxu0 0
      %2104 = vmatprep.subr.bf16.mxu0 0
      %2105 = vmatpush1.bf16.msra.mxu0 0
      %2106 = vmatprep.subr.bf16.mxu0 0
      %2107 = vmatpush1.bf16.msra.mxu0 0
      %2108 = vmatprep.subr.bf16.mxu0 0
      %2109 = vmatpush1.bf16.msra.mxu0 0
      %2110 = vmatprep.subr.bf16.mxu0 0
      %2111 = vmatpush1.bf16.msra.mxu0 0
      %2112 = vmatprep.subr.bf16.mxu0 0
      %2113 = vmatpush1.bf16.msra.mxu0 0
      %2114 = vmatprep.subr.bf16.mxu0 0
      %2115 = vmatpush1.bf16.msra.mxu0 0
      %2116 = vmatprep.subr.bf16.mxu0 0
      %2117 = vmatpush1.bf16.msra.mxu0 0
      %2118 = vmatprep.subr.bf16.mxu0 0
      %2119 = vmatpush1.bf16.msra.mxu0 0
      %2120 = vmatprep.subr.bf16.mxu0 0
      %2121 = vmatpush1.bf16.msra.mxu0 0
      %2122 = vmatprep.mubr.bf16.mxu0 0
      %2123 = vmatmul.mubr.bf16.gmra.mrb[0].mxu0 %v2085
      %v2124 = vpop.f32.mrb[0].mxu0
      %v2125 = vadd.f32 %v2007, %v2124
      %v2126 = vpop.f32.mrb[0].mxu0
      %v2127 = vadd.f32 %v2009, %v2126
      %v2128 = vpop.f32.mrb[0].mxu0
      %v2129 = vadd.f32 %v2011, %v2128
      %v2130 = vpop.f32.mrb[0].mxu0
      %v2131 = vadd.f32 %v2013, %v2130
      %2132 = vmatprep.mubr.bf16.mxu0 0
      %2133 = vmatmul.mubr.bf16.gmra.mrb[0].mxu0 %v2088
      %v2134 = vpop.f32.mrb[0].mxu0
      %v2135 = vadd.f32 %v2017, %v2134
      %v2136 = vpop.f32.mrb[0].mxu0
      %v2137 = vadd.f32 %v2019, %v2136
      %v2138 = vpop.f32.mrb[0].mxu0
      %v2139 = vadd.f32 %v2021, %v2138
      %v2140 = vpop.f32.mrb[0].mxu0
      %v2141 = vadd.f32 %v2023, %v2140
      %2142 = vdwg.mxu0
      %2143 = vmatprep.subr.bf16.mxu0 0
      %2144 = vmatpush1.bf16.msra.mxu0 %v1918
      %2145 = vmatprep.subr.bf16.mxu0 0
      %2146 = vmatpush1.bf16.msra.mxu0 %v1921
      %2147 = vmatprep.subr.bf16.mxu0 0
      %2148 = vmatpush1.bf16.msra.mxu0 0
      %2149 = vmatprep.subr.bf16.mxu0 0
      %2150 = vmatpush1.bf16.msra.mxu0 0
      %2151 = vmatprep.subr.bf16.mxu0 0
      %2152 = vmatpush1.bf16.msra.mxu0 0
      %2153 = vmatprep.subr.bf16.mxu0 0
      %2154 = vmatpush1.bf16.msra.mxu0 0
      %2155 = vmatprep.subr.bf16.mxu0 0
      %2156 = vmatpush1.bf16.msra.mxu0 0
      %2157 = vmatprep.subr.bf16.mxu0 0
      %2158 = vmatpush1.bf16.msra.mxu0 0
      %2159 = vmatprep.subr.bf16.mxu0 0
      %2160 = vmatpush1.bf16.msra.mxu0 0
      %2161 = vmatprep.subr.bf16.mxu0 0
      %2162 = vmatpush1.bf16.msra.mxu0 0
      %2163 = vmatprep.subr.bf16.mxu0 0
      %2164 = vmatpush1.bf16.msra.mxu0 0
      %2165 = vmatprep.subr.bf16.mxu0 0
      %2166 = vmatpush1.bf16.msra.mxu0 0
      %2167 = vmatprep.subr.bf16.mxu0 0
      %2168 = vmatpush1.bf16.msra.mxu0 0
      %2169 = vmatprep.subr.bf16.mxu0 0
      %2170 = vmatpush1.bf16.msra.mxu0 0
      %2171 = vmatprep.subr.bf16.mxu0 0
      %2172 = vmatpush1.bf16.msra.mxu0 0
      %2173 = vmatprep.subr.bf16.mxu0 0
      %2174 = vmatpush1.bf16.msra.mxu0 0
      %2175 = vmatprep.mubr.bf16.mxu0 0
      %2176 = vmatmul.mubr.bf16.gmra.mrb[0].mxu0 %v2085
      %v2177 = vpop.f32.mrb[0].mxu0
      %v2178 = vadd.f32 %v2060, %v2177
      %v2179 = vpop.f32.mrb[0].mxu0
      %v2180 = vpop.f32.mrb[0].mxu0
      %v2181 = vadd.f32 %v2063, %v2180
      %v2182 = vpop.f32.mrb[0].mxu0
      %2183 = vmatprep.mubr.bf16.mxu0 0
      %2184 = vmatmul.mubr.bf16.gmra.mrb[0].mxu0 %v2088
      %v2185 = vpop.f32.mrb[0].mxu0
      %v2186 = vadd.f32 %v2068, %v2185
      %v2187 = vpop.f32.mrb[0].mxu0
      %v2188 = vpop.f32.mrb[0].mxu0
      %v2189 = vadd.f32 %v2071, %v2188
      %v2190 = vpop.f32.mrb[0].mxu0
      %2191 = vdwg.mxu0
      %s2192 = scalar_lea.vmem %s3, 32
      %v2193 = vld [vmem:[%s2192] sm:$0xf]
      %v2194 = vld [vmem:[%s2192 + $0x4] sm:$0xf]
      %v2195 = vld [vmem:[%s2192 + $0x8] sm:$0xf]
      %v2196 = vld [vmem:[%s2192 + $0xc] sm:$0xf]
      %v2201 = vunpack.c.l.b16 %v2193
      %v2202 = vunpack.c.l.b16 %v2194
      %v2203 = vunpack.c.l.b16 %v2195
      %v2204 = vunpack.c.l.b16 %v2196
      %v2205 = vpack.c.b16 %v2202, %v2201
      %v2206 = vpack.c.b16 %v2204, %v2203
      %2207 = vrot.lane.b32.xlu0 %v1916, 126
      %v2208 = vpop.permute.xlu0 %2207
      %2209 = vrot.lane.b32.xlu0 %v1917, 126
      %v2210 = vpop.permute.xlu0 %2209
      %2211 = vrot.lane.b32.xlu0 %v1918, 126
      %v2212 = vpop.permute.xlu0 %2211
      %2213 = vrot.lane.b32.xlu0 %v1919, 126
      %v2214 = vpop.permute.xlu0 %2213
      %2215 = vrot.lane.b32.xlu0 %v1920, 126
      %v2216 = vpop.permute.xlu0 %2215
      %2217 = vrot.lane.b32.xlu0 %v1921, 126
      %v2218 = vpop.permute.xlu0 %2217
      %v2219 = vsel %vm621, %v2208, %v2210
      %v2220 = vsel %vm621, %v2210, %v2212
      %v2221 = vsel %vm621, %v2214, %v2216
      %v2222 = vsel %vm621, %v2216, %v2218
      %v2230 = vsel %vm1965, %v2205, 0
      %v2233 = vsel %vm1965, %v2206, 0
      %2235 = vmatprep.subr.bf16.mxu0 %v2220
      %2236 = vmatpush1.bf16.msra.mxu0 %v2219
      %2237 = vmatprep.subr.bf16.mxu0 %v2222
      %2238 = vmatpush1.bf16.msra.mxu0 %v2221
      %2239 = vmatprep.subr.bf16.mxu0 0
      %2240 = vmatpush1.bf16.msra.mxu0 0
      %2241 = vmatprep.subr.bf16.mxu0 0
      %2242 = vmatpush1.bf16.msra.mxu0 0
      %2243 = vmatprep.subr.bf16.mxu0 0
      %2244 = vmatpush1.bf16.msra.mxu0 0
      %2245 = vmatprep.subr.bf16.mxu0 0
      %2246 = vmatpush1.bf16.msra.mxu0 0
      %2247 = vmatprep.subr.bf16.mxu0 0
      %2248 = vmatpush1.bf16.msra.mxu0 0
      %2249 = vmatprep.subr.bf16.mxu0 0
      %2250 = vmatpush1.bf16.msra.mxu0 0
      %2251 = vmatprep.subr.bf16.mxu0 0
      %2252 = vmatpush1.bf16.msra.mxu0 0
      %2253 = vmatprep.subr.bf16.mxu0 0
      %2254 = vmatpush1.bf16.msra.mxu0 0
      %2255 = vmatprep.subr.bf16.mxu0 0
      %2256 = vmatpush1.bf16.msra.mxu0 0
      %2257 = vmatprep.subr.bf16.mxu0 0
      %2258 = vmatpush1.bf16.msra.mxu0 0
      %2259 = vmatprep.subr.bf16.mxu0 0
      %2260 = vmatpush1.bf16.msra.mxu0 0
      %2261 = vmatprep.subr.bf16.mxu0 0
      %2262 = vmatpush1.bf16.msra.mxu0 0
      %2263 = vmatprep.subr.bf16.mxu0 0
      %2264 = vmatpush1.bf16.msra.mxu0 0
      %2265 = vmatprep.subr.bf16.mxu0 0
      %2266 = vmatpush1.bf16.msra.mxu0 0
      %2267 = vmatprep.mubr.bf16.mxu0 0
      %2268 = vmatmul.mubr.bf16.gmra.mrb[0].mxu0 %v2230
      %v2269 = vpop.f32.mrb[0].mxu0
      %v2270 = vadd.f32 0.0, %v2269
      %v2271 = vpop.f32.mrb[0].mxu0
      %v2272 = vadd.f32 0.0, %v2271
      %v2273 = vpop.f32.mrb[0].mxu0
      %v2274 = vadd.f32 0.0, %v2273
      %v2275 = vpop.f32.mrb[0].mxu0
      %v2276 = vadd.f32 0.0, %v2275
      %2277 = vmatprep.mubr.bf16.mxu0 0
      %2278 = vmatmul.mubr.bf16.gmra.mrb[0].mxu0 %v2233
      %v2279 = vpop.f32.mrb[0].mxu0
      %v2280 = vadd.f32 0.0, %v2279
      %v2281 = vpop.f32.mrb[0].mxu0
      %v2282 = vadd.f32 0.0, %v2281
      %v2283 = vpop.f32.mrb[0].mxu0
      %v2284 = vadd.f32 0.0, %v2283
      %v2285 = vpop.f32.mrb[0].mxu0
      %v2286 = vadd.f32 0.0, %v2285
      %2287 = vdwg.mxu0
      %2288 = vmatprep.subr.bf16.mxu0 0
      %2289 = vmatpush1.bf16.msra.mxu0 %v2212
      %2290 = vmatprep.subr.bf16.mxu0 0
      %2291 = vmatpush1.bf16.msra.mxu0 %v2218
      %2292 = vmatprep.subr.bf16.mxu0 0
      %2293 = vmatpush1.bf16.msra.mxu0 0
      %2294 = vmatprep.subr.bf16.mxu0 0
      %2295 = vmatpush1.bf16.msra.mxu0 0
      %2296 = vmatprep.subr.bf16.mxu0 0
      %2297 = vmatpush1.bf16.msra.mxu0 0
      %2298 = vmatprep.subr.bf16.mxu0 0
      %2299 = vmatpush1.bf16.msra.mxu0 0
      %2300 = vmatprep.subr.bf16.mxu0 0
      %2301 = vmatpush1.bf16.msra.mxu0 0
      %2302 = vmatprep.subr.bf16.mxu0 0
      %2303 = vmatpush1.bf16.msra.mxu0 0
      %2304 = vmatprep.subr.bf16.mxu0 0
      %2305 = vmatpush1.bf16.msra.mxu0 0
      %2306 = vmatprep.subr.bf16.mxu0 0
      %2307 = vmatpush1.bf16.msra.mxu0 0
      %2308 = vmatprep.subr.bf16.mxu0 0
      %2309 = vmatpush1.bf16.msra.mxu0 0
      %2310 = vmatprep.subr.bf16.mxu0 0
      %2311 = vmatpush1.bf16.msra.mxu0 0
      %2312 = vmatprep.subr.bf16.mxu0 0
      %2313 = vmatpush1.bf16.msra.mxu0 0
      %2314 = vmatprep.subr.bf16.mxu0 0
      %2315 = vmatpush1.bf16.msra.mxu0 0
      %2316 = vmatprep.subr.bf16.mxu0 0
      %2317 = vmatpush1.bf16.msra.mxu0 0
      %2318 = vmatprep.subr.bf16.mxu0 0
      %2319 = vmatpush1.bf16.msra.mxu0 0
      %2320 = vmatprep.mubr.bf16.mxu0 0
      %2321 = vmatmul.mubr.bf16.gmra.mrb[0].mxu0 %v2230
      %v2322 = vpop.f32.mrb[0].mxu0
      %v2323 = vadd.f32 0.0, %v2322
      %v2324 = vpop.f32.mrb[0].mxu0
      %v2325 = vpop.f32.mrb[0].mxu0
      %v2326 = vadd.f32 0.0, %v2325
      %v2327 = vpop.f32.mrb[0].mxu0
      %2328 = vmatprep.mubr.bf16.mxu0 0
      %2329 = vmatmul.mubr.bf16.gmra.mrb[0].mxu0 %v2233
      %v2330 = vpop.f32.mrb[0].mxu0
      %v2331 = vadd.f32 0.0, %v2330
      %v2332 = vpop.f32.mrb[0].mxu0
      %v2333 = vpop.f32.mrb[0].mxu0
      %v2334 = vadd.f32 0.0, %v2333
      %v2335 = vpop.f32.mrb[0].mxu0
      %2336 = vdwg.mxu0
      %v2337 = vadd.f32 %v2125, %v2270
      %v2338 = vadd.f32 %v2127, %v2272
      %v2339 = vadd.f32 %v2178, %v2323
      %v2340 = vadd.f32 %v2129, %v2274
      %v2341 = vadd.f32 %v2131, %v2276
      %v2342 = vadd.f32 %v2181, %v2326
      %v2343 = vadd.f32 %v2135, %v2280
      %v2344 = vadd.f32 %v2137, %v2282
      %v2345 = vadd.f32 %v2186, %v2331
      %v2346 = vadd.f32 %v2139, %v2284
      %v2347 = vadd.f32 %v2141, %v2286
      %v2348 = vadd.f32 %v2189, %v2334
      %s2349 = scalar_lea.vmem %s3, 48
      %v2350 = vld [vmem:[%s2349] sm:$0xf]
      %v2351 = vld [vmem:[%s2349 + $0x4] sm:$0xf]
      %v2352 = vld [vmem:[%s2349 + $0x8] sm:$0xf]
      %v2353 = vld [vmem:[%s2349 + $0xc] sm:$0xf]
      %v2358 = vunpack.c.l.b16 %v2350
      %v2359 = vunpack.c.l.b16 %v2351
      %v2360 = vunpack.c.l.b16 %v2352
      %v2361 = vunpack.c.l.b16 %v2353
      %v2362 = vpack.c.b16 %v2359, %v2358
      %v2363 = vpack.c.b16 %v2361, %v2360
      %2364 = vrot.lane.b32.xlu0 %v1916, 110
      %v2365 = vpop.permute.xlu0 %2364
      %2366 = vrot.lane.b32.xlu0 %v1917, 110
      %v2367 = vpop.permute.xlu0 %2366
      %2368 = vrot.lane.b32.xlu0 %v1918, 110
      %v2369 = vpop.permute.xlu0 %2368
      %2370 = vrot.lane.b32.xlu0 %v1919, 110
      %v2371 = vpop.permute.xlu0 %2370
      %2372 = vrot.lane.b32.xlu0 %v1920, 110
      %v2373 = vpop.permute.xlu0 %2372
      %2374 = vrot.lane.b32.xlu0 %v1921, 110
      %v2375 = vpop.permute.xlu0 %2374
      %v2376 = vsel %vm792, %v2365, %v2367
      %v2377 = vsel %vm792, %v2367, %v2369
      %v2378 = vsel %vm792, %v2371, %v2373
      %v2379 = vsel %vm792, %v2373, %v2375
      %v2387 = vsel %vm1965, %v2362, 0
      %v2390 = vsel %vm1965, %v2363, 0
      %2392 = vmatprep.subr.bf16.mxu0 %v2377
      %2393 = vmatpush1.bf16.msra.mxu0 %v2376
      %2394 = vmatprep.subr.bf16.mxu0 %v2379
      %2395 = vmatpush1.bf16.msra.mxu0 %v2378
      %2396 = vmatprep.subr.bf16.mxu0 0
      %2397 = vmatpush1.bf16.msra.mxu0 0
      %2398 = vmatprep.subr.bf16.mxu0 0
      %2399 = vmatpush1.bf16.msra.mxu0 0
      %2400 = vmatprep.subr.bf16.mxu0 0
      %2401 = vmatpush1.bf16.msra.mxu0 0
      %2402 = vmatprep.subr.bf16.mxu0 0
      %2403 = vmatpush1.bf16.msra.mxu0 0
      %2404 = vmatprep.subr.bf16.mxu0 0
      %2405 = vmatpush1.bf16.msra.mxu0 0
      %2406 = vmatprep.subr.bf16.mxu0 0
      %2407 = vmatpush1.bf16.msra.mxu0 0
      %2408 = vmatprep.subr.bf16.mxu0 0
      %2409 = vmatpush1.bf16.msra.mxu0 0
      %2410 = vmatprep.subr.bf16.mxu0 0
      %2411 = vmatpush1.bf16.msra.mxu0 0
      %2412 = vmatprep.subr.bf16.mxu0 0
      %2413 = vmatpush1.bf16.msra.mxu0 0
      %2414 = vmatprep.subr.bf16.mxu0 0
      %2415 = vmatpush1.bf16.msra.mxu0 0
      %2416 = vmatprep.subr.bf16.mxu0 0
      %2417 = vmatpush1.bf16.msra.mxu0 0
      %2418 = vmatprep.subr.bf16.mxu0 0
      %2419 = vmatpush1.bf16.msra.mxu0 0
      %2420 = vmatprep.subr.bf16.mxu0 0
      %2421 = vmatpush1.bf16.msra.mxu0 0
      %2422 = vmatprep.subr.bf16.mxu0 0
      %2423 = vmatpush1.bf16.msra.mxu0 0
      %2424 = vmatprep.mubr.bf16.mxu0 0
      %2425 = vmatmul.mubr.bf16.gmra.mrb[0].mxu0 %v2387
      %v2426 = vpop.f32.mrb[0].mxu0
      %v2427 = vadd.f32 0.0, %v2426
      %v2428 = vpop.f32.mrb[0].mxu0
      %v2429 = vadd.f32 0.0, %v2428
      %v2430 = vpop.f32.mrb[0].mxu0
      %v2431 = vadd.f32 0.0, %v2430
      %v2432 = vpop.f32.mrb[0].mxu0
      %v2433 = vadd.f32 0.0, %v2432
      %2434 = vmatprep.mubr.bf16.mxu0 0
      %2435 = vmatmul.mubr.bf16.gmra.mrb[0].mxu0 %v2390
      %v2436 = vpop.f32.mrb[0].mxu0
      %v2437 = vadd.f32 0.0, %v2436
      %v2438 = vpop.f32.mrb[0].mxu0
      %v2439 = vadd.f32 0.0, %v2438
      %v2440 = vpop.f32.mrb[0].mxu0
      %v2441 = vadd.f32 0.0, %v2440
      %v2442 = vpop.f32.mrb[0].mxu0
      %v2443 = vadd.f32 0.0, %v2442
      %2444 = vdwg.mxu0
      %2445 = vmatprep.subr.bf16.mxu0 0
      %2446 = vmatpush1.bf16.msra.mxu0 %v2369
      %2447 = vmatprep.subr.bf16.mxu0 0
      %2448 = vmatpush1.bf16.msra.mxu0 %v2375
      %2449 = vmatprep.subr.bf16.mxu0 0
      %2450 = vmatpush1.bf16.msra.mxu0 0
      %2451 = vmatprep.subr.bf16.mxu0 0
      %2452 = vmatpush1.bf16.msra.mxu0 0
      %2453 = vmatprep.subr.bf16.mxu0 0
      %2454 = vmatpush1.bf16.msra.mxu0 0
      %2455 = vmatprep.subr.bf16.mxu0 0
      %2456 = vmatpush1.bf16.msra.mxu0 0
      %2457 = vmatprep.subr.bf16.mxu0 0
      %2458 = vmatpush1.bf16.msra.mxu0 0
      %2459 = vmatprep.subr.bf16.mxu0 0
      %2460 = vmatpush1.bf16.msra.mxu0 0
      %2461 = vmatprep.subr.bf16.mxu0 0
      %2462 = vmatpush1.bf16.msra.mxu0 0
      %2463 = vmatprep.subr.bf16.mxu0 0
      %2464 = vmatpush1.bf16.msra.mxu0 0
      %2465 = vmatprep.subr.bf16.mxu0 0
      %2466 = vmatpush1.bf16.msra.mxu0 0
      %2467 = vmatprep.subr.bf16.mxu0 0
      %2468 = vmatpush1.bf16.msra.mxu0 0
      %2469 = vmatprep.subr.bf16.mxu0 0
      %2470 = vmatpush1.bf16.msra.mxu0 0
      %2471 = vmatprep.subr.bf16.mxu0 0
      %2472 = vmatpush1.bf16.msra.mxu0 0
      %2473 = vmatprep.subr.bf16.mxu0 0
      %2474 = vmatpush1.bf16.msra.mxu0 0
      %2475 = vmatprep.subr.bf16.mxu0 0
      %2476 = vmatpush1.bf16.msra.mxu0 0
      %2477 = vmatprep.mubr.bf16.mxu0 0
      %2478 = vmatmul.mubr.bf16.gmra.mrb[0].mxu0 %v2387
      %v2479 = vpop.f32.mrb[0].mxu0
      %v2480 = vadd.f32 0.0, %v2479
      %v2481 = vpop.f32.mrb[0].mxu0
      %v2482 = vpop.f32.mrb[0].mxu0
      %v2483 = vadd.f32 0.0, %v2482
      %v2484 = vpop.f32.mrb[0].mxu0
      %2485 = vmatprep.mubr.bf16.mxu0 0
      %2486 = vmatmul.mubr.bf16.gmra.mrb[0].mxu0 %v2390
      %v2487 = vpop.f32.mrb[0].mxu0
      %v2488 = vadd.f32 0.0, %v2487
      %v2489 = vpop.f32.mrb[0].mxu0
      %v2490 = vpop.f32.mrb[0].mxu0
      %v2491 = vadd.f32 0.0, %v2490
      %v2492 = vpop.f32.mrb[0].mxu0
      %2493 = vdwg.mxu0
      %v2494 = vadd.f32 %v2337, %v2427
      %v2495 = vadd.f32 %v2338, %v2429
      %v2496 = vadd.f32 %v2339, %v2480
      %v2497 = vadd.f32 %v2340, %v2431
      %v2498 = vadd.f32 %v2341, %v2433
      %v2499 = vadd.f32 %v2342, %v2483
      %v2500 = vadd.f32 %v2343, %v2437
      %v2501 = vadd.f32 %v2344, %v2439
      %v2502 = vadd.f32 %v2345, %v2488
      %v2503 = vadd.f32 %v2346, %v2441
      %v2504 = vadd.f32 %v2347, %v2443
      %v2505 = vadd.f32 %v2348, %v2491
      %s2506 = scalar_lea.vmem %s3, 64
      %v2507 = vld [vmem:[%s2506] sm:$0xf]
      %v2508 = vld [vmem:[%s2506 + $0x4] sm:$0xf]
      %v2509 = vld [vmem:[%s2506 + $0x8] sm:$0xf]
      %v2510 = vld [vmem:[%s2506 + $0xc] sm:$0xf]
      %v2515 = vunpack.c.l.b16 %v2507
      %v2516 = vunpack.c.l.b16 %v2508
      %v2517 = vunpack.c.l.b16 %v2509
      %v2518 = vunpack.c.l.b16 %v2510
      %v2519 = vpack.c.b16 %v2516, %v2515
      %v2520 = vpack.c.b16 %v2518, %v2517
      %2521 = vrot.lane.b32.xlu0 %v1916, 109
      %v2522 = vpop.permute.xlu0 %2521
      %2523 = vrot.lane.b32.xlu0 %v1917, 109
      %v2524 = vpop.permute.xlu0 %2523
      %2525 = vrot.lane.b32.xlu0 %v1918, 109
      %v2526 = vpop.permute.xlu0 %2525
      %2527 = vrot.lane.b32.xlu0 %v1919, 109
      %v2528 = vpop.permute.xlu0 %2527
      %2529 = vrot.lane.b32.xlu0 %v1920, 109
      %v2530 = vpop.permute.xlu0 %2529
      %2531 = vrot.lane.b32.xlu0 %v1921, 109
      %v2532 = vpop.permute.xlu0 %2531
      %v2533 = vsel %vm963, %v2522, %v2524
      %v2534 = vsel %vm963, %v2524, %v2526
      %v2535 = vsel %vm963, %v2528, %v2530
      %v2536 = vsel %vm963, %v2530, %v2532
      %v2544 = vsel %vm1965, %v2519, 0
      %v2547 = vsel %vm1965, %v2520, 0
      %2549 = vmatprep.subr.bf16.mxu0 %v2534
      %2550 = vmatpush1.bf16.msra.mxu0 %v2533
      %2551 = vmatprep.subr.bf16.mxu0 %v2536
      %2552 = vmatpush1.bf16.msra.mxu0 %v2535
      %2553 = vmatprep.subr.bf16.mxu0 0
      %2554 = vmatpush1.bf16.msra.mxu0 0
      %2555 = vmatprep.subr.bf16.mxu0 0
      %2556 = vmatpush1.bf16.msra.mxu0 0
      %2557 = vmatprep.subr.bf16.mxu0 0
      %2558 = vmatpush1.bf16.msra.mxu0 0
      %2559 = vmatprep.subr.bf16.mxu0 0
      %2560 = vmatpush1.bf16.msra.mxu0 0
      %2561 = vmatprep.subr.bf16.mxu0 0
      %2562 = vmatpush1.bf16.msra.mxu0 0
      %2563 = vmatprep.subr.bf16.mxu0 0
      %2564 = vmatpush1.bf16.msra.mxu0 0
      %2565 = vmatprep.subr.bf16.mxu0 0
      %2566 = vmatpush1.bf16.msra.mxu0 0
      %2567 = vmatprep.subr.bf16.mxu0 0
      %2568 = vmatpush1.bf16.msra.mxu0 0
      %2569 = vmatprep.subr.bf16.mxu0 0
      %2570 = vmatpush1.bf16.msra.mxu0 0
      %2571 = vmatprep.subr.bf16.mxu0 0
      %2572 = vmatpush1.bf16.msra.mxu0 0
      %2573 = vmatprep.subr.bf16.mxu0 0
      %2574 = vmatpush1.bf16.msra.mxu0 0
      %2575 = vmatprep.subr.bf16.mxu0 0
      %2576 = vmatpush1.bf16.msra.mxu0 0
      %2577 = vmatprep.subr.bf16.mxu0 0
      %2578 = vmatpush1.bf16.msra.mxu0 0
      %2579 = vmatprep.subr.bf16.mxu0 0
      %2580 = vmatpush1.bf16.msra.mxu0 0
      %2581 = vmatprep.mubr.bf16.mxu0 0
      %2582 = vmatmul.mubr.bf16.gmra.mrb[0].mxu0 %v2544
      %v2583 = vpop.f32.mrb[0].mxu0
      %v2584 = vadd.f32 0.0, %v2583
      %v2585 = vpop.f32.mrb[0].mxu0
      %v2586 = vadd.f32 0.0, %v2585
      %v2587 = vpop.f32.mrb[0].mxu0
      %v2588 = vadd.f32 0.0, %v2587
      %v2589 = vpop.f32.mrb[0].mxu0
      %v2590 = vadd.f32 0.0, %v2589
      %2591 = vmatprep.mubr.bf16.mxu0 0
      %2592 = vmatmul.mubr.bf16.gmra.mrb[0].mxu0 %v2547
      %v2593 = vpop.f32.mrb[0].mxu0
      %v2594 = vadd.f32 0.0, %v2593
      %v2595 = vpop.f32.mrb[0].mxu0
      %v2596 = vadd.f32 0.0, %v2595
      %v2597 = vpop.f32.mrb[0].mxu0
      %v2598 = vadd.f32 0.0, %v2597
      %v2599 = vpop.f32.mrb[0].mxu0
      %v2600 = vadd.f32 0.0, %v2599
      %2601 = vdwg.mxu0
      %2602 = vmatprep.subr.bf16.mxu0 0
      %2603 = vmatpush1.bf16.msra.mxu0 %v2526
      %2604 = vmatprep.subr.bf16.mxu0 0
      %2605 = vmatpush1.bf16.msra.mxu0 %v2532
      %2606 = vmatprep.subr.bf16.mxu0 0
      %2607 = vmatpush1.bf16.msra.mxu0 0
      %2608 = vmatprep.subr.bf16.mxu0 0
      %2609 = vmatpush1.bf16.msra.mxu0 0
      %2610 = vmatprep.subr.bf16.mxu0 0
      %2611 = vmatpush1.bf16.msra.mxu0 0
      %2612 = vmatprep.subr.bf16.mxu0 0
      %2613 = vmatpush1.bf16.msra.mxu0 0
      %2614 = vmatprep.subr.bf16.mxu0 0
      %2615 = vmatpush1.bf16.msra.mxu0 0
      %2616 = vmatprep.subr.bf16.mxu0 0
      %2617 = vmatpush1.bf16.msra.mxu0 0
      %2618 = vmatprep.subr.bf16.mxu0 0
      %2619 = vmatpush1.bf16.msra.mxu0 0
      %2620 = vmatprep.subr.bf16.mxu0 0
      %2621 = vmatpush1.bf16.msra.mxu0 0
      %2622 = vmatprep.subr.bf16.mxu0 0
      %2623 = vmatpush1.bf16.msra.mxu0 0
      %2624 = vmatprep.subr.bf16.mxu0 0
      %2625 = vmatpush1.bf16.msra.mxu0 0
      %2626 = vmatprep.subr.bf16.mxu0 0
      %2627 = vmatpush1.bf16.msra.mxu0 0
      %2628 = vmatprep.subr.bf16.mxu0 0
      %2629 = vmatpush1.bf16.msra.mxu0 0
      %2630 = vmatprep.subr.bf16.mxu0 0
      %2631 = vmatpush1.bf16.msra.mxu0 0
      %2632 = vmatprep.subr.bf16.mxu0 0
      %2633 = vmatpush1.bf16.msra.mxu0 0
      %2634 = vmatprep.mubr.bf16.mxu0 0
      %2635 = vmatmul.mubr.bf16.gmra.mrb[0].mxu0 %v2544
      %v2636 = vpop.f32.mrb[0].mxu0
      %v2637 = vadd.f32 0.0, %v2636
      %v2638 = vpop.f32.mrb[0].mxu0
      %v2639 = vpop.f32.mrb[0].mxu0
      %v2640 = vadd.f32 0.0, %v2639
      %v2641 = vpop.f32.mrb[0].mxu0
      %2642 = vmatprep.mubr.bf16.mxu0 0
      %2643 = vmatmul.mubr.bf16.gmra.mrb[0].mxu0 %v2547
      %v2644 = vpop.f32.mrb[0].mxu0
      %v2645 = vadd.f32 0.0, %v2644
      %v2646 = vpop.f32.mrb[0].mxu0
      %v2647 = vpop.f32.mrb[0].mxu0
      %v2648 = vadd.f32 0.0, %v2647
      %v2649 = vpop.f32.mrb[0].mxu0
      %2650 = vdwg.mxu0
      %v2651 = vadd.f32 %v2494, %v2584
      %v2652 = vadd.f32 %v2495, %v2586
      %v2653 = vadd.f32 %v2496, %v2637
      %v2654 = vadd.f32 %v2497, %v2588
      %v2655 = vadd.f32 %v2498, %v2590
      %v2656 = vadd.f32 %v2499, %v2640
      %v2657 = vadd.f32 %v2500, %v2594
      %v2658 = vadd.f32 %v2501, %v2596
      %v2659 = vadd.f32 %v2502, %v2645
      %v2660 = vadd.f32 %v2503, %v2598
      %v2661 = vadd.f32 %v2504, %v2600
      %v2662 = vadd.f32 %v2505, %v2648
      %s2663 = scalar_lea.vmem %s3, 80
      %v2664 = vld [vmem:[%s2663] sm:$0xf]
      %v2665 = vld [vmem:[%s2663 + $0x4] sm:$0xf]
      %v2666 = vld [vmem:[%s2663 + $0x8] sm:$0xf]
      %v2667 = vld [vmem:[%s2663 + $0xc] sm:$0xf]
      %v2672 = vunpack.c.l.b16 %v2664
      %v2673 = vunpack.c.l.b16 %v2665
      %v2674 = vunpack.c.l.b16 %v2666
      %v2675 = vunpack.c.l.b16 %v2667
      %v2676 = vpack.c.b16 %v2673, %v2672
      %v2677 = vpack.c.b16 %v2675, %v2674
      %2678 = vrot.lane.b32.xlu0 %v1916, 108
      %v2679 = vpop.permute.xlu0 %2678
      %2680 = vrot.lane.b32.xlu0 %v1917, 108
      %v2681 = vpop.permute.xlu0 %2680
      %2682 = vrot.lane.b32.xlu0 %v1918, 108
      %v2683 = vpop.permute.xlu0 %2682
      %2684 = vrot.lane.b32.xlu0 %v1919, 108
      %v2685 = vpop.permute.xlu0 %2684
      %2686 = vrot.lane.b32.xlu0 %v1920, 108
      %v2687 = vpop.permute.xlu0 %2686
      %2688 = vrot.lane.b32.xlu0 %v1921, 108
      %v2689 = vpop.permute.xlu0 %2688
      %v2690 = vsel %vm1134, %v2679, %v2681
      %v2691 = vsel %vm1134, %v2681, %v2683
      %v2692 = vsel %vm1134, %v2685, %v2687
      %v2693 = vsel %vm1134, %v2687, %v2689
      %v2701 = vsel %vm1965, %v2676, 0
      %v2704 = vsel %vm1965, %v2677, 0
      %2706 = vmatprep.subr.bf16.mxu0 %v2691
      %2707 = vmatpush1.bf16.msra.mxu0 %v2690
      %2708 = vmatprep.subr.bf16.mxu0 %v2693
      %2709 = vmatpush1.bf16.msra.mxu0 %v2692
      %2710 = vmatprep.subr.bf16.mxu0 0
      %2711 = vmatpush1.bf16.msra.mxu0 0
      %2712 = vmatprep.subr.bf16.mxu0 0
      %2713 = vmatpush1.bf16.msra.mxu0 0
      %2714 = vmatprep.subr.bf16.mxu0 0
      %2715 = vmatpush1.bf16.msra.mxu0 0
      %2716 = vmatprep.subr.bf16.mxu0 0
      %2717 = vmatpush1.bf16.msra.mxu0 0
      %2718 = vmatprep.subr.bf16.mxu0 0
      %2719 = vmatpush1.bf16.msra.mxu0 0
      %2720 = vmatprep.subr.bf16.mxu0 0
      %2721 = vmatpush1.bf16.msra.mxu0 0
      %2722 = vmatprep.subr.bf16.mxu0 0
      %2723 = vmatpush1.bf16.msra.mxu0 0
      %2724 = vmatprep.subr.bf16.mxu0 0
      %2725 = vmatpush1.bf16.msra.mxu0 0
      %2726 = vmatprep.subr.bf16.mxu0 0
      %2727 = vmatpush1.bf16.msra.mxu0 0
      %2728 = vmatprep.subr.bf16.mxu0 0
      %2729 = vmatpush1.bf16.msra.mxu0 0
      %2730 = vmatprep.subr.bf16.mxu0 0
      %2731 = vmatpush1.bf16.msra.mxu0 0
      %2732 = vmatprep.subr.bf16.mxu0 0
      %2733 = vmatpush1.bf16.msra.mxu0 0
      %2734 = vmatprep.subr.bf16.mxu0 0
      %2735 = vmatpush1.bf16.msra.mxu0 0
      %2736 = vmatprep.subr.bf16.mxu0 0
      %2737 = vmatpush1.bf16.msra.mxu0 0
      %2738 = vmatprep.mubr.bf16.mxu0 0
      %2739 = vmatmul.mubr.bf16.gmra.mrb[0].mxu0 %v2701
      %v2740 = vpop.f32.mrb[0].mxu0
      %v2741 = vadd.f32 0.0, %v2740
      %v2742 = vpop.f32.mrb[0].mxu0
      %v2743 = vadd.f32 0.0, %v2742
      %v2744 = vpop.f32.mrb[0].mxu0
      %v2745 = vadd.f32 0.0, %v2744
      %v2746 = vpop.f32.mrb[0].mxu0
      %v2747 = vadd.f32 0.0, %v2746
      %2748 = vmatprep.mubr.bf16.mxu0 0
      %2749 = vmatmul.mubr.bf16.gmra.mrb[0].mxu0 %v2704
      %v2750 = vpop.f32.mrb[0].mxu0
      %v2751 = vadd.f32 0.0, %v2750
      %v2752 = vpop.f32.mrb[0].mxu0
      %v2753 = vadd.f32 0.0, %v2752
      %v2754 = vpop.f32.mrb[0].mxu0
      %v2755 = vadd.f32 0.0, %v2754
      %v2756 = vpop.f32.mrb[0].mxu0
      %v2757 = vadd.f32 0.0, %v2756
      %2758 = vdwg.mxu0
      %2759 = vmatprep.subr.bf16.mxu0 0
      %2760 = vmatpush1.bf16.msra.mxu0 %v2683
      %2761 = vmatprep.subr.bf16.mxu0 0
      %2762 = vmatpush1.bf16.msra.mxu0 %v2689
      %2763 = vmatprep.subr.bf16.mxu0 0
      %2764 = vmatpush1.bf16.msra.mxu0 0
      %2765 = vmatprep.subr.bf16.mxu0 0
      %2766 = vmatpush1.bf16.msra.mxu0 0
      %2767 = vmatprep.subr.bf16.mxu0 0
      %2768 = vmatpush1.bf16.msra.mxu0 0
      %2769 = vmatprep.subr.bf16.mxu0 0
      %2770 = vmatpush1.bf16.msra.mxu0 0
      %2771 = vmatprep.subr.bf16.mxu0 0
      %2772 = vmatpush1.bf16.msra.mxu0 0
      %2773 = vmatprep.subr.bf16.mxu0 0
      %2774 = vmatpush1.bf16.msra.mxu0 0
      %2775 = vmatprep.subr.bf16.mxu0 0
      %2776 = vmatpush1.bf16.msra.mxu0 0
      %2777 = vmatprep.subr.bf16.mxu0 0
      %2778 = vmatpush1.bf16.msra.mxu0 0
      %2779 = vmatprep.subr.bf16.mxu0 0
      %2780 = vmatpush1.bf16.msra.mxu0 0
      %2781 = vmatprep.subr.bf16.mxu0 0
      %2782 = vmatpush1.bf16.msra.mxu0 0
      %2783 = vmatprep.subr.bf16.mxu0 0
      %2784 = vmatpush1.bf16.msra.mxu0 0
      %2785 = vmatprep.subr.bf16.mxu0 0
      %2786 = vmatpush1.bf16.msra.mxu0 0
      %2787 = vmatprep.subr.bf16.mxu0 0
      %2788 = vmatpush1.bf16.msra.mxu0 0
      %2789 = vmatprep.subr.bf16.mxu0 0
      %2790 = vmatpush1.bf16.msra.mxu0 0
      %2791 = vmatprep.mubr.bf16.mxu0 0
      %2792 = vmatmul.mubr.bf16.gmra.mrb[0].mxu0 %v2701
      %v2793 = vpop.f32.mrb[0].mxu0
      %v2794 = vadd.f32 0.0, %v2793
      %v2795 = vpop.f32.mrb[0].mxu0
      %v2796 = vpop.f32.mrb[0].mxu0
      %v2797 = vadd.f32 0.0, %v2796
      %v2798 = vpop.f32.mrb[0].mxu0
      %2799 = vmatprep.mubr.bf16.mxu0 0
      %2800 = vmatmul.mubr.bf16.gmra.mrb[0].mxu0 %v2704
      %v2801 = vpop.f32.mrb[0].mxu0
      %v2802 = vadd.f32 0.0, %v2801
      %v2803 = vpop.f32.mrb[0].mxu0
      %v2804 = vpop.f32.mrb[0].mxu0
      %v2805 = vadd.f32 0.0, %v2804
      %v2806 = vpop.f32.mrb[0].mxu0
      %2807 = vdwg.mxu0
      %v2808 = vadd.f32 %v2651, %v2741
      %v2809 = vadd.f32 %v2652, %v2743
      %v2810 = vadd.f32 %v2653, %v2794
      %v2811 = vadd.f32 %v2654, %v2745
      %v2812 = vadd.f32 %v2655, %v2747
      %v2813 = vadd.f32 %v2656, %v2797
      %v2814 = vadd.f32 %v2657, %v2751
      %v2815 = vadd.f32 %v2658, %v2753
      %v2816 = vadd.f32 %v2659, %v2802
      %v2817 = vadd.f32 %v2660, %v2755
      %v2818 = vadd.f32 %v2661, %v2757
      %v2819 = vadd.f32 %v2662, %v2805
      %s2820 = scalar_lea.vmem %s3, 96
      %v2821 = vld [vmem:[%s2820] sm:$0xf]
      %v2822 = vld [vmem:[%s2820 + $0x4] sm:$0xf]
      %v2823 = vld [vmem:[%s2820 + $0x8] sm:$0xf]
      %v2824 = vld [vmem:[%s2820 + $0xc] sm:$0xf]
      %v2829 = vunpack.c.l.b16 %v2821
      %v2830 = vunpack.c.l.b16 %v2822
      %v2831 = vunpack.c.l.b16 %v2823
      %v2832 = vunpack.c.l.b16 %v2824
      %v2833 = vpack.c.b16 %v2830, %v2829
      %v2834 = vpack.c.b16 %v2832, %v2831
      %2835 = vrot.lane.b32.xlu0 %v1916, 92
      %v2836 = vpop.permute.xlu0 %2835
      %2837 = vrot.lane.b32.xlu0 %v1917, 92
      %v2838 = vpop.permute.xlu0 %2837
      %2839 = vrot.lane.b32.xlu0 %v1918, 92
      %v2840 = vpop.permute.xlu0 %2839
      %2841 = vrot.lane.b32.xlu0 %v1919, 92
      %v2842 = vpop.permute.xlu0 %2841
      %2843 = vrot.lane.b32.xlu0 %v1920, 92
      %v2844 = vpop.permute.xlu0 %2843
      %2845 = vrot.lane.b32.xlu0 %v1921, 92
      %v2846 = vpop.permute.xlu0 %2845
      %v2847 = vsel %vm1305, %v2836, %v2838
      %v2848 = vsel %vm1305, %v2838, %v2840
      %v2849 = vsel %vm1305, %v2842, %v2844
      %v2850 = vsel %vm1305, %v2844, %v2846
      %v2858 = vsel %vm1965, %v2833, 0
      %v2861 = vsel %vm1965, %v2834, 0
      %2863 = vmatprep.subr.bf16.mxu0 %v2848
      %2864 = vmatpush1.bf16.msra.mxu0 %v2847
      %2865 = vmatprep.subr.bf16.mxu0 %v2850
      %2866 = vmatpush1.bf16.msra.mxu0 %v2849
      %2867 = vmatprep.subr.bf16.mxu0 0
      %2868 = vmatpush1.bf16.msra.mxu0 0
      %2869 = vmatprep.subr.bf16.mxu0 0
      %2870 = vmatpush1.bf16.msra.mxu0 0
      %2871 = vmatprep.subr.bf16.mxu0 0
      %2872 = vmatpush1.bf16.msra.mxu0 0
      %2873 = vmatprep.subr.bf16.mxu0 0
      %2874 = vmatpush1.bf16.msra.mxu0 0
      %2875 = vmatprep.subr.bf16.mxu0 0
      %2876 = vmatpush1.bf16.msra.mxu0 0
      %2877 = vmatprep.subr.bf16.mxu0 0
      %2878 = vmatpush1.bf16.msra.mxu0 0
      %2879 = vmatprep.subr.bf16.mxu0 0
      %2880 = vmatpush1.bf16.msra.mxu0 0
      %2881 = vmatprep.subr.bf16.mxu0 0
      %2882 = vmatpush1.bf16.msra.mxu0 0
      %2883 = vmatprep.subr.bf16.mxu0 0
      %2884 = vmatpush1.bf16.msra.mxu0 0
      %2885 = vmatprep.subr.bf16.mxu0 0
      %2886 = vmatpush1.bf16.msra.mxu0 0
      %2887 = vmatprep.subr.bf16.mxu0 0
      %2888 = vmatpush1.bf16.msra.mxu0 0
      %2889 = vmatprep.subr.bf16.mxu0 0
      %2890 = vmatpush1.bf16.msra.mxu0 0
      %2891 = vmatprep.subr.bf16.mxu0 0
      %2892 = vmatpush1.bf16.msra.mxu0 0
      %2893 = vmatprep.subr.bf16.mxu0 0
      %2894 = vmatpush1.bf16.msra.mxu0 0
      %2895 = vmatprep.mubr.bf16.mxu0 0
      %2896 = vmatmul.mubr.bf16.gmra.mrb[0].mxu0 %v2858
      %v2897 = vpop.f32.mrb[0].mxu0
      %v2898 = vadd.f32 0.0, %v2897
      %v2899 = vpop.f32.mrb[0].mxu0
      %v2900 = vadd.f32 0.0, %v2899
      %v2901 = vpop.f32.mrb[0].mxu0
      %v2902 = vadd.f32 0.0, %v2901
      %v2903 = vpop.f32.mrb[0].mxu0
      %v2904 = vadd.f32 0.0, %v2903
      %2905 = vmatprep.mubr.bf16.mxu0 0
      %2906 = vmatmul.mubr.bf16.gmra.mrb[0].mxu0 %v2861
      %v2907 = vpop.f32.mrb[0].mxu0
      %v2908 = vadd.f32 0.0, %v2907
      %v2909 = vpop.f32.mrb[0].mxu0
      %v2910 = vadd.f32 0.0, %v2909
      %v2911 = vpop.f32.mrb[0].mxu0
      %v2912 = vadd.f32 0.0, %v2911
      %v2913 = vpop.f32.mrb[0].mxu0
      %v2914 = vadd.f32 0.0, %v2913
      %2915 = vdwg.mxu0
      %2916 = vmatprep.subr.bf16.mxu0 0
      %2917 = vmatpush1.bf16.msra.mxu0 %v2840
      %2918 = vmatprep.subr.bf16.mxu0 0
      %2919 = vmatpush1.bf16.msra.mxu0 %v2846
      %2920 = vmatprep.subr.bf16.mxu0 0
      %2921 = vmatpush1.bf16.msra.mxu0 0
      %2922 = vmatprep.subr.bf16.mxu0 0
      %2923 = vmatpush1.bf16.msra.mxu0 0
      %2924 = vmatprep.subr.bf16.mxu0 0
      %2925 = vmatpush1.bf16.msra.mxu0 0
      %2926 = vmatprep.subr.bf16.mxu0 0
      %2927 = vmatpush1.bf16.msra.mxu0 0
      %2928 = vmatprep.subr.bf16.mxu0 0
      %2929 = vmatpush1.bf16.msra.mxu0 0
      %2930 = vmatprep.subr.bf16.mxu0 0
      %2931 = vmatpush1.bf16.msra.mxu0 0
      %2932 = vmatprep.subr.bf16.mxu0 0
      %2933 = vmatpush1.bf16.msra.mxu0 0
      %2934 = vmatprep.subr.bf16.mxu0 0
      %2935 = vmatpush1.bf16.msra.mxu0 0
      %2936 = vmatprep.subr.bf16.mxu0 0
      %2937 = vmatpush1.bf16.msra.mxu0 0
      %2938 = vmatprep.subr.bf16.mxu0 0
      %2939 = vmatpush1.bf16.msra.mxu0 0
      %2940 = vmatprep.subr.bf16.mxu0 0
      %2941 = vmatpush1.bf16.msra.mxu0 0
      %2942 = vmatprep.subr.bf16.mxu0 0
      %2943 = vmatpush1.bf16.msra.mxu0 0
      %2944 = vmatprep.subr.bf16.mxu0 0
      %2945 = vmatpush1.bf16.msra.mxu0 0
      %2946 = vmatprep.subr.bf16.mxu0 0
      %2947 = vmatpush1.bf16.msra.mxu0 0
      %2948 = vmatprep.mubr.bf16.mxu0 0
      %2949 = vmatmul.mubr.bf16.gmra.mrb[0].mxu0 %v2858
      %v2950 = vpop.f32.mrb[0].mxu0
      %v2951 = vadd.f32 0.0, %v2950
      %v2952 = vpop.f32.mrb[0].mxu0
      %v2953 = vpop.f32.mrb[0].mxu0
      %v2954 = vadd.f32 0.0, %v2953
      %v2955 = vpop.f32.mrb[0].mxu0
      %2956 = vmatprep.mubr.bf16.mxu0 0
      %2957 = vmatmul.mubr.bf16.gmra.mrb[0].mxu0 %v2861
      %v2958 = vpop.f32.mrb[0].mxu0
      %v2959 = vadd.f32 0.0, %v2958
      %v2960 = vpop.f32.mrb[0].mxu0
      %v2961 = vpop.f32.mrb[0].mxu0
      %v2962 = vadd.f32 0.0, %v2961
      %v2963 = vpop.f32.mrb[0].mxu0
      %2964 = vdwg.mxu0
      %v2965 = vadd.f32 %v2808, %v2898
      %v2966 = vadd.f32 %v2809, %v2900
      %v2967 = vadd.f32 %v2810, %v2951
      %v2968 = vadd.f32 %v2811, %v2902
      %v2969 = vadd.f32 %v2812, %v2904
      %v2970 = vadd.f32 %v2813, %v2954
      %v2971 = vadd.f32 %v2814, %v2908
      %v2972 = vadd.f32 %v2815, %v2910
      %v2973 = vadd.f32 %v2816, %v2959
      %v2974 = vadd.f32 %v2817, %v2912
      %v2975 = vadd.f32 %v2818, %v2914
      %v2976 = vadd.f32 %v2819, %v2962
      %s2977 = scalar_lea.vmem %s3, 112
      %v2978 = vld [vmem:[%s2977] sm:$0xf]
      %v2979 = vld [vmem:[%s2977 + $0x4] sm:$0xf]
      %v2980 = vld [vmem:[%s2977 + $0x8] sm:$0xf]
      %v2981 = vld [vmem:[%s2977 + $0xc] sm:$0xf]
      %v2986 = vunpack.c.l.b16 %v2978
      %v2987 = vunpack.c.l.b16 %v2979
      %v2988 = vunpack.c.l.b16 %v2980
      %v2989 = vunpack.c.l.b16 %v2981
      %v2990 = vpack.c.b16 %v2987, %v2986
      %v2991 = vpack.c.b16 %v2989, %v2988
      %2992 = vrot.lane.b32.xlu0 %v1916, 91
      %v2993 = vpop.permute.xlu0 %2992
      %2994 = vrot.lane.b32.xlu0 %v1917, 91
      %v2995 = vpop.permute.xlu0 %2994
      %2996 = vrot.lane.b32.xlu0 %v1918, 91
      %v2997 = vpop.permute.xlu0 %2996
      %2998 = vrot.lane.b32.xlu0 %v1919, 91
      %v2999 = vpop.permute.xlu0 %2998
      %3000 = vrot.lane.b32.xlu0 %v1920, 91
      %v3001 = vpop.permute.xlu0 %3000
      %3002 = vrot.lane.b32.xlu0 %v1921, 91
      %v3003 = vpop.permute.xlu0 %3002
      %v3004 = vsel %vm1476, %v2993, %v2995
      %v3005 = vsel %vm1476, %v2995, %v2997
      %v3006 = vsel %vm1476, %v2999, %v3001
      %v3007 = vsel %vm1476, %v3001, %v3003
      %v3015 = vsel %vm1965, %v2990, 0
      %v3018 = vsel %vm1965, %v2991, 0
      %3020 = vmatprep.subr.bf16.mxu0 %v3005
      %3021 = vmatpush1.bf16.msra.mxu0 %v3004
      %3022 = vmatprep.subr.bf16.mxu0 %v3007
      %3023 = vmatpush1.bf16.msra.mxu0 %v3006
      %3024 = vmatprep.subr.bf16.mxu0 0
      %3025 = vmatpush1.bf16.msra.mxu0 0
      %3026 = vmatprep.subr.bf16.mxu0 0
      %3027 = vmatpush1.bf16.msra.mxu0 0
      %3028 = vmatprep.subr.bf16.mxu0 0
      %3029 = vmatpush1.bf16.msra.mxu0 0
      %3030 = vmatprep.subr.bf16.mxu0 0
      %3031 = vmatpush1.bf16.msra.mxu0 0
      %3032 = vmatprep.subr.bf16.mxu0 0
      %3033 = vmatpush1.bf16.msra.mxu0 0
      %3034 = vmatprep.subr.bf16.mxu0 0
      %3035 = vmatpush1.bf16.msra.mxu0 0
      %3036 = vmatprep.subr.bf16.mxu0 0
      %3037 = vmatpush1.bf16.msra.mxu0 0
      %3038 = vmatprep.subr.bf16.mxu0 0
      %3039 = vmatpush1.bf16.msra.mxu0 0
      %3040 = vmatprep.subr.bf16.mxu0 0
      %3041 = vmatpush1.bf16.msra.mxu0 0
      %3042 = vmatprep.subr.bf16.mxu0 0
      %3043 = vmatpush1.bf16.msra.mxu0 0
      %3044 = vmatprep.subr.bf16.mxu0 0
      %3045 = vmatpush1.bf16.msra.mxu0 0
      %3046 = vmatprep.subr.bf16.mxu0 0
      %3047 = vmatpush1.bf16.msra.mxu0 0
      %3048 = vmatprep.subr.bf16.mxu0 0
      %3049 = vmatpush1.bf16.msra.mxu0 0
      %3050 = vmatprep.subr.bf16.mxu0 0
      %3051 = vmatpush1.bf16.msra.mxu0 0
      %3052 = vmatprep.mubr.bf16.mxu0 0
      %3053 = vmatmul.mubr.bf16.gmra.mrb[0].mxu0 %v3015
      %v3054 = vpop.f32.mrb[0].mxu0
      %v3055 = vadd.f32 0.0, %v3054
      %v3056 = vpop.f32.mrb[0].mxu0
      %v3057 = vadd.f32 0.0, %v3056
      %v3058 = vpop.f32.mrb[0].mxu0
      %v3059 = vadd.f32 0.0, %v3058
      %v3060 = vpop.f32.mrb[0].mxu0
      %v3061 = vadd.f32 0.0, %v3060
      %3062 = vmatprep.mubr.bf16.mxu0 0
      %3063 = vmatmul.mubr.bf16.gmra.mrb[0].mxu0 %v3018
      %v3064 = vpop.f32.mrb[0].mxu0
      %v3065 = vadd.f32 0.0, %v3064
      %v3066 = vpop.f32.mrb[0].mxu0
      %v3067 = vadd.f32 0.0, %v3066
      %v3068 = vpop.f32.mrb[0].mxu0
      %v3069 = vadd.f32 0.0, %v3068
      %v3070 = vpop.f32.mrb[0].mxu0
      %v3071 = vadd.f32 0.0, %v3070
      %3072 = vdwg.mxu0
      %3073 = vmatprep.subr.bf16.mxu0 0
      %3074 = vmatpush1.bf16.msra.mxu0 %v2997
      %3075 = vmatprep.subr.bf16.mxu0 0
      %3076 = vmatpush1.bf16.msra.mxu0 %v3003
      %3077 = vmatprep.subr.bf16.mxu0 0
      %3078 = vmatpush1.bf16.msra.mxu0 0
      %3079 = vmatprep.subr.bf16.mxu0 0
      %3080 = vmatpush1.bf16.msra.mxu0 0
      %3081 = vmatprep.subr.bf16.mxu0 0
      %3082 = vmatpush1.bf16.msra.mxu0 0
      %3083 = vmatprep.subr.bf16.mxu0 0
      %3084 = vmatpush1.bf16.msra.mxu0 0
      %3085 = vmatprep.subr.bf16.mxu0 0
      %3086 = vmatpush1.bf16.msra.mxu0 0
      %3087 = vmatprep.subr.bf16.mxu0 0
      %3088 = vmatpush1.bf16.msra.mxu0 0
      %3089 = vmatprep.subr.bf16.mxu0 0
      %3090 = vmatpush1.bf16.msra.mxu0 0
      %3091 = vmatprep.subr.bf16.mxu0 0
      %3092 = vmatpush1.bf16.msra.mxu0 0
      %3093 = vmatprep.subr.bf16.mxu0 0
      %3094 = vmatpush1.bf16.msra.mxu0 0
      %3095 = vmatprep.subr.bf16.mxu0 0
      %3096 = vmatpush1.bf16.msra.mxu0 0
      %3097 = vmatprep.subr.bf16.mxu0 0
      %3098 = vmatpush1.bf16.msra.mxu0 0
      %3099 = vmatprep.subr.bf16.mxu0 0
      %3100 = vmatpush1.bf16.msra.mxu0 0
      %3101 = vmatprep.subr.bf16.mxu0 0
      %3102 = vmatpush1.bf16.msra.mxu0 0
      %3103 = vmatprep.subr.bf16.mxu0 0
      %3104 = vmatpush1.bf16.msra.mxu0 0
      %3105 = vmatprep.mubr.bf16.mxu0 0
      %3106 = vmatmul.mubr.bf16.gmra.mrb[0].mxu0 %v3015
      %v3107 = vpop.f32.mrb[0].mxu0
      %v3108 = vadd.f32 0.0, %v3107
      %v3109 = vpop.f32.mrb[0].mxu0
      %v3110 = vpop.f32.mrb[0].mxu0
      %v3111 = vadd.f32 0.0, %v3110
      %v3112 = vpop.f32.mrb[0].mxu0
      %3113 = vmatprep.mubr.bf16.mxu0 0
      %3114 = vmatmul.mubr.bf16.gmra.mrb[0].mxu0 %v3018
      %v3115 = vpop.f32.mrb[0].mxu0
      %v3116 = vadd.f32 0.0, %v3115
      %v3117 = vpop.f32.mrb[0].mxu0
      %v3118 = vpop.f32.mrb[0].mxu0
      %v3119 = vadd.f32 0.0, %v3118
      %v3120 = vpop.f32.mrb[0].mxu0
      %3121 = vdwg.mxu0
      %v3122 = vadd.f32 %v2965, %v3055
      %v3123 = vadd.f32 %v2966, %v3057
      %v3124 = vadd.f32 %v2967, %v3108
      %v3125 = vadd.f32 %v2968, %v3059
      %v3126 = vadd.f32 %v2969, %v3061
      %v3127 = vadd.f32 %v2970, %v3111
      %v3128 = vadd.f32 %v2971, %v3065
      %v3129 = vadd.f32 %v2972, %v3067
      %v3130 = vadd.f32 %v2973, %v3116
      %v3131 = vadd.f32 %v2974, %v3069
      %v3132 = vadd.f32 %v2975, %v3071
      %v3133 = vadd.f32 %v2976, %v3119
      %s3134 = scalar_lea.vmem %s3, 128
      %v3135 = vld [vmem:[%s3134] sm:$0xf]
      %v3136 = vld [vmem:[%s3134 + $0x4] sm:$0xf]
      %v3137 = vld [vmem:[%s3134 + $0x8] sm:$0xf]
      %v3138 = vld [vmem:[%s3134 + $0xc] sm:$0xf]
      %v3143 = vunpack.c.l.b16 %v3135
      %v3144 = vunpack.c.l.b16 %v3136
      %v3145 = vunpack.c.l.b16 %v3137
      %v3146 = vunpack.c.l.b16 %v3138
      %v3147 = vpack.c.b16 %v3144, %v3143
      %v3148 = vpack.c.b16 %v3146, %v3145
      %3149 = vrot.lane.b32.xlu0 %v1916, 90
      %v3150 = vpop.permute.xlu0 %3149
      %3151 = vrot.lane.b32.xlu0 %v1917, 90
      %v3152 = vpop.permute.xlu0 %3151
      %3153 = vrot.lane.b32.xlu0 %v1918, 90
      %v3154 = vpop.permute.xlu0 %3153
      %3155 = vrot.lane.b32.xlu0 %v1919, 90
      %v3156 = vpop.permute.xlu0 %3155
      %3157 = vrot.lane.b32.xlu0 %v1920, 90
      %v3158 = vpop.permute.xlu0 %3157
      %3159 = vrot.lane.b32.xlu0 %v1921, 90
      %v3160 = vpop.permute.xlu0 %3159
      %v3161 = vsel %vm1647, %v3150, %v3152
      %v3162 = vsel %vm1647, %v3152, %v3154
      %v3163 = vsel %vm1647, %v3156, %v3158
      %v3164 = vsel %vm1647, %v3158, %v3160
      %v3172 = vsel %vm1965, %v3147, 0
      %v3175 = vsel %vm1965, %v3148, 0
      %3177 = vmatprep.subr.bf16.mxu0 %v3162
      %3178 = vmatpush1.bf16.msra.mxu0 %v3161
      %3179 = vmatprep.subr.bf16.mxu0 %v3164
      %3180 = vmatpush1.bf16.msra.mxu0 %v3163
      %3181 = vmatprep.subr.bf16.mxu0 0
      %3182 = vmatpush1.bf16.msra.mxu0 0
      %3183 = vmatprep.subr.bf16.mxu0 0
      %3184 = vmatpush1.bf16.msra.mxu0 0
      %3185 = vmatprep.subr.bf16.mxu0 0
      %3186 = vmatpush1.bf16.msra.mxu0 0
      %3187 = vmatprep.subr.bf16.mxu0 0
      %3188 = vmatpush1.bf16.msra.mxu0 0
      %3189 = vmatprep.subr.bf16.mxu0 0
      %3190 = vmatpush1.bf16.msra.mxu0 0
      %3191 = vmatprep.subr.bf16.mxu0 0
      %3192 = vmatpush1.bf16.msra.mxu0 0
      %3193 = vmatprep.subr.bf16.mxu0 0
      %3194 = vmatpush1.bf16.msra.mxu0 0
      %3195 = vmatprep.subr.bf16.mxu0 0
      %3196 = vmatpush1.bf16.msra.mxu0 0
      %3197 = vmatprep.subr.bf16.mxu0 0
      %3198 = vmatpush1.bf16.msra.mxu0 0
      %3199 = vmatprep.subr.bf16.mxu0 0
      %3200 = vmatpush1.bf16.msra.mxu0 0
      %3201 = vmatprep.subr.bf16.mxu0 0
      %3202 = vmatpush1.bf16.msra.mxu0 0
      %3203 = vmatprep.subr.bf16.mxu0 0
      %3204 = vmatpush1.bf16.msra.mxu0 0
      %3205 = vmatprep.subr.bf16.mxu0 0
      %3206 = vmatpush1.bf16.msra.mxu0 0
      %3207 = vmatprep.subr.bf16.mxu0 0
      %3208 = vmatpush1.bf16.msra.mxu0 0
      %3209 = vmatprep.mubr.bf16.mxu0 0
      %3210 = vmatmul.mubr.bf16.gmra.mrb[0].mxu0 %v3172
      %v3211 = vpop.f32.mrb[0].mxu0
      %v3212 = vadd.f32 0.0, %v3211
      %v3213 = vpop.f32.mrb[0].mxu0
      %v3214 = vadd.f32 0.0, %v3213
      %v3215 = vpop.f32.mrb[0].mxu0
      %v3216 = vadd.f32 0.0, %v3215
      %v3217 = vpop.f32.mrb[0].mxu0
      %v3218 = vadd.f32 0.0, %v3217
      %3219 = vmatprep.mubr.bf16.mxu0 0
      %3220 = vmatmul.mubr.bf16.gmra.mrb[0].mxu0 %v3175
      %v3221 = vpop.f32.mrb[0].mxu0
      %v3222 = vadd.f32 0.0, %v3221
      %v3223 = vpop.f32.mrb[0].mxu0
      %v3224 = vadd.f32 0.0, %v3223
      %v3225 = vpop.f32.mrb[0].mxu0
      %v3226 = vadd.f32 0.0, %v3225
      %v3227 = vpop.f32.mrb[0].mxu0
      %v3228 = vadd.f32 0.0, %v3227
      %3229 = vdwg.mxu0
      %3230 = vmatprep.subr.bf16.mxu0 0
      %3231 = vmatpush1.bf16.msra.mxu0 %v3154
      %3232 = vmatprep.subr.bf16.mxu0 0
      %3233 = vmatpush1.bf16.msra.mxu0 %v3160
      %3234 = vmatprep.subr.bf16.mxu0 0
      %3235 = vmatpush1.bf16.msra.mxu0 0
      %3236 = vmatprep.subr.bf16.mxu0 0
      %3237 = vmatpush1.bf16.msra.mxu0 0
      %3238 = vmatprep.subr.bf16.mxu0 0
      %3239 = vmatpush1.bf16.msra.mxu0 0
      %3240 = vmatprep.subr.bf16.mxu0 0
      %3241 = vmatpush1.bf16.msra.mxu0 0
      %3242 = vmatprep.subr.bf16.mxu0 0
      %3243 = vmatpush1.bf16.msra.mxu0 0
      %3244 = vmatprep.subr.bf16.mxu0 0
      %3245 = vmatpush1.bf16.msra.mxu0 0
      %3246 = vmatprep.subr.bf16.mxu0 0
      %3247 = vmatpush1.bf16.msra.mxu0 0
      %3248 = vmatprep.subr.bf16.mxu0 0
      %3249 = vmatpush1.bf16.msra.mxu0 0
      %3250 = vmatprep.subr.bf16.mxu0 0
      %3251 = vmatpush1.bf16.msra.mxu0 0
      %3252 = vmatprep.subr.bf16.mxu0 0
      %3253 = vmatpush1.bf16.msra.mxu0 0
      %3254 = vmatprep.subr.bf16.mxu0 0
      %3255 = vmatpush1.bf16.msra.mxu0 0
      %3256 = vmatprep.subr.bf16.mxu0 0
      %3257 = vmatpush1.bf16.msra.mxu0 0
      %3258 = vmatprep.subr.bf16.mxu0 0
      %3259 = vmatpush1.bf16.msra.mxu0 0
      %3260 = vmatprep.subr.bf16.mxu0 0
      %3261 = vmatpush1.bf16.msra.mxu0 0
      %3262 = vmatprep.mubr.bf16.mxu0 0
      %3263 = vmatmul.mubr.bf16.gmra.mrb[0].mxu0 %v3172
      %v3264 = vpop.f32.mrb[0].mxu0
      %v3265 = vadd.f32 0.0, %v3264
      %v3266 = vpop.f32.mrb[0].mxu0
      %v3267 = vpop.f32.mrb[0].mxu0
      %v3268 = vadd.f32 0.0, %v3267
      %v3269 = vpop.f32.mrb[0].mxu0
      %3270 = vmatprep.mubr.bf16.mxu0 0
      %3271 = vmatmul.mubr.bf16.gmra.mrb[0].mxu0 %v3175
      %v3272 = vpop.f32.mrb[0].mxu0
      %v3273 = vadd.f32 0.0, %v3272
      %v3274 = vpop.f32.mrb[0].mxu0
      %v3275 = vpop.f32.mrb[0].mxu0
      %v3276 = vadd.f32 0.0, %v3275
      %v3277 = vpop.f32.mrb[0].mxu0
      %3278 = vdwg.mxu0
      %v3279 = vadd.f32 %v3122, %v3212
      %v3280 = vadd.f32 %v3123, %v3214
      %v3281 = vadd.f32 %v3124, %v3265
      %v3282 = vadd.f32 %v3125, %v3216
      %v3283 = vadd.f32 %v3126, %v3218
      %v3284 = vadd.f32 %v3127, %v3268
      %v3285 = vadd.f32 %v3128, %v3222
      %v3286 = vadd.f32 %v3129, %v3224
      %v3287 = vadd.f32 %v3130, %v3273
      %v3288 = vadd.f32 %v3131, %v3226
      %v3289 = vadd.f32 %v3132, %v3228
      %v3290 = vadd.f32 %v3133, %v3276
      %v3291 = vld [vmem:[%s4] sm:$0xff]
      %v3292 = vld [vmem:[%s4 + $0x8] sm:$0xff]
      %v3293 = vld [vmem:[%s4 + $0x10] sm:$0xff]
      %v3294 = vld [vmem:[%s4 + $0x18] sm:$0xff]
      %3296 = vset.pattern.permute.xlu0 0
      %3297 = vperm.xlu0 %3296, %v3291
      %v3298 = vpop.permute.xlu0 %3297
      %3301 = vset.pattern.permute.xlu0 0
      %3302 = vperm.xlu0 %3301, %v3292
      %v3303 = vpop.permute.xlu0 %3302
      %3306 = vset.pattern.permute.xlu0 0
      %3307 = vperm.xlu0 %3306, %v3293
      %v3308 = vpop.permute.xlu0 %3307
      %3311 = vset.pattern.permute.xlu0 0
      %3312 = vperm.xlu0 %3311, %v3294
      %v3313 = vpop.permute.xlu0 %3312
      %v3315 = vadd.f32 %v3279, %v3298
      %v3316 = vadd.f32 %v3280, %v3298
      %v3317 = vadd.f32 %v3281, %v3298
      %v3318 = vadd.f32 %v3282, %v3303
      %v3319 = vadd.f32 %v3283, %v3303
      %v3320 = vadd.f32 %v3284, %v3303
      %v3321 = vadd.f32 %v3285, %v3308
      %v3322 = vadd.f32 %v3286, %v3308
      %v3323 = vadd.f32 %v3287, %v3308
      %v3324 = vadd.f32 %v3288, %v3313
      %v3325 = vadd.f32 %v3289, %v3313
      %v3326 = vadd.f32 %v3290, %v3313
      %vm3327 = vcmp.ge.f32.partialorder %v3315, 0.0
      %vm3328 = vcmp.ge.f32.partialorder %v3316, 0.0
      %vm3329 = vcmp.ge.f32.partialorder %v3317, 0.0
      %vm3330 = vcmp.ge.f32.partialorder %v3318, 0.0
      %vm3331 = vcmp.ge.f32.partialorder %v3319, 0.0
      %vm3332 = vcmp.ge.f32.partialorder %v3320, 0.0
      %vm3333 = vcmp.ge.f32.partialorder %v3321, 0.0
      %vm3334 = vcmp.ge.f32.partialorder %v3322, 0.0
      %vm3335 = vcmp.ge.f32.partialorder %v3323, 0.0
      %vm3336 = vcmp.ge.f32.partialorder %v3324, 0.0
      %vm3337 = vcmp.ge.f32.partialorder %v3325, 0.0
      %vm3338 = vcmp.ge.f32.partialorder %v3326, 0.0
      %v3339 = vmul.f32 %v3315, 0.1
      %v3340 = vmul.f32 %v3316, 0.1
      %v3341 = vmul.f32 %v3317, 0.1
      %v3342 = vmul.f32 %v3318, 0.1
      %v3343 = vmul.f32 %v3319, 0.1
      %v3344 = vmul.f32 %v3320, 0.1
      %v3345 = vmul.f32 %v3321, 0.1
      %v3346 = vmul.f32 %v3322, 0.1
      %v3347 = vmul.f32 %v3323, 0.1
      %v3348 = vmul.f32 %v3324, 0.1
      %v3349 = vmul.f32 %v3325, 0.1
      %v3350 = vmul.f32 %v3326, 0.1
      %v3351 = vsel %vm3327, %v3315, %v3339
      %v3352 = vsel %vm3328, %v3316, %v3340
      %v3353 = vsel %vm3329, %v3317, %v3341
      %v3354 = vsel %vm3330, %v3318, %v3342
      %v3355 = vsel %vm3331, %v3319, %v3343
      %v3356 = vsel %vm3332, %v3320, %v3344
      %v3357 = vsel %vm3333, %v3321, %v3345
      %v3358 = vsel %vm3334, %v3322, %v3346
      %v3359 = vsel %vm3335, %v3323, %v3347
      %v3360 = vsel %vm3336, %v3324, %v3348
      %v3361 = vsel %vm3337, %v3325, %v3349
      %v3362 = vsel %vm3338, %v3326, %v3350
      %3363 = vst [vmem:[%s224] sm:$0xff] %v3351
      %3364 = vst [vmem:[%s224 + $0x8] sm:$0xff] %v3352
      %3365 = vst.msk [vmem:[%s224 + $0x10] sm:$0xff] %vm1965, %v3353
      %3366 = vst [vmem:[%s224 + $0x18] sm:$0xff] %v3354
      %3367 = vst [vmem:[%s224 + $0x20] sm:$0xff] %v3355
      %3368 = vst.msk [vmem:[%s224 + $0x28] sm:$0xff] %vm1965, %v3356
      %3369 = vst [vmem:[%s224 + $0x30] sm:$0xff] %v3357
      %3370 = vst [vmem:[%s224 + $0x38] sm:$0xff] %v3358
      %3371 = vst.msk [vmem:[%s224 + $0x40] sm:$0xff] %vm1965, %v3359
      %3372 = vst [vmem:[%s224 + $0x48] sm:$0xff] %v3360
      %3373 = vst [vmem:[%s224 + $0x50] sm:$0xff] %v3361
      %3374 = vst.msk [vmem:[%s224 + $0x58] sm:$0xff] %vm1965, %v3362
      %p3375 = scmp.lt.s32.totalorder %s16, 1
      %s3376 = scalar_select %p3375, %s16, 1
      %s3377 = smul.addr %s3376, 12
      %s3378 = smul.addr %s3377, 8
      %s3379 = scalar_lea.vmem %s5, %s3378
      // Predicated region
      $region41: #{lte_features.1} parent=39 // pred_check
        %p3380 = pneg %p144
      $region42: #{lte_features.1} parent=39 // pred_check_branch
        %3382 = sbr.rel (%p3380) target = $region44
      $region43: #{lte_features.1} parent=39 // pred_region
        _
      $region44: #{lte_features.1} parent=39 // pred_fallthru
        _
    $region40: #{lte_features.1} parent=5 // pred_fallthru
      _
    %p3383 = scmp.le.s32.totalorder 2, %s11
    // Predicated region
    $region45: #{lte_features.1} parent=5 // pred_check
      %p3384 = pneg %p3383
    $region46: #{lte_features.1} parent=5 // pred_check_branch
      %3386 = sbr.rel (%p3384) target = $region48
    $region47: #{lte_features.1} parent=5 // pred_region
      %s3387 = ssub.s32 %s11, 2
      // Predicated region
      $region49: #{lte_features.1} parent=47 // pred_check
        %p3388 = pneg %p150
      $region50: #{lte_features.1} parent=47 // pred_check_branch
        %3390 = sbr.rel (%p3388) target = $region52
      $region51: #{lte_features.1} parent=47 // pred_region
        %p3391 = scmp.lt.s32.totalorder %s17, 1
        %s3392 = scalar_select %p3391, %s17, 1
        %s3393 = smul.addr %s3392, 12
        %s3394 = smul.addr %s3393, 8
        %s3395 = scalar_lea.vmem %s5, %s3394
      $region52: #{lte_features.1} parent=47 // pred_fallthru
        _
    $region48: #{lte_features.1} parent=5 // pred_fallthru
      _
  $region6: #{lte_features.1} parent=0 // loop_footer
    %s15 = sadd.s32 1, %s11
  $region7: #{lte_features.1} parent=0 // loop_footer_branch
    %10 = sbr.rel target = $region3
  $region8: #{lte_features.1} parent=0 // loop_exit
    _

</llo_original>
